<compile_context>
chip_gen: v7x
topology: tpu7x:2x2x1
jax: 0.10.0
libtpu: 0.0.40
codegen_flags: <defaults>
</compile_context>

<pallas_src>
from functools import partial

import jax
import jax.numpy as jnp
from jax import lax
from jax.experimental import pallas as pl
from jax.experimental.pallas import tpu as pltpu


@partial(jax.jit, static_argnames=("radix", "cardinality"))
def splat_block_pallas(x, conv1_w, conv3_w, conv3_b, fc1_w, fc1_b, fc2_w, fc2_b, conv2_w,
                       *, radix, cardinality):
    assert radix > 1, "radix == 1 (sigmoid gate) path not implemented"
    N, C, H, W = x.shape
    Cr = C // radix
    G3 = radix * cardinality
    inter = fc1_w.shape[0]
    HW = H * W
    f32 = jnp.float32

    # ---- layout plumbing: NCHW -> (N, H*W, C) so channels sit on the 128-lane axis -------------
    x2d = jnp.transpose(x, (0, 2, 3, 1)).reshape(N, HW, C).astype(f32)

    # ---- fold module weights into dense, kernel-friendly matrices (tiny, traced once) ----------
    # conv1x1_1: (Cr, C, 1, 1) -> right-multiply matrix (C, Cr)
    w1m = jnp.transpose(conv1_w[:, :, 0, 0], (1, 0)).astype(f32)

    # conv3x3 grouped: 9 dense (Cr, C) per-tap matrices, zero outside each group's block
    cin_g, cout_g = Cr // G3, C // G3
    w3d = jnp.zeros((9, Cr, C), f32)
    for g in range(G3):
        blk = conv3_w[g * cout_g:(g + 1) * cout_g]                        # (cout_g, cin_g, 3, 3)
        blk = jnp.transpose(blk, (2, 3, 1, 0)).reshape(9, cin_g, cout_g)  # k = 3*di + dj
        w3d = w3d.at[:, g * cin_g:(g + 1) * cin_g, g * cout_g:(g + 1) * cout_g].set(blk)
    b3row = conv3_b.reshape(1, C).astype(f32)

    # radix split-sum matrix: S[c, j] = 1 iff c % Cr == j
    S = (jnp.arange(C)[:, None] % Cr == jnp.arange(Cr)[None, :]).astype(f32)

    # fc1 grouped 1x1 (Cr -> inter): block-diagonal dense, pre-multiplied by the split-sum matrix
    cin1, cout1 = Cr // cardinality, inter // cardinality
    wfc1 = jnp.zeros((Cr, inter), f32)
    for g in range(cardinality):
        blk = fc1_w[g * cout1:(g + 1) * cout1, :, 0, 0]                   # (cout1, cin1)
        wfc1 = wfc1.at[g * cin1:(g + 1) * cin1, g * cout1:(g + 1) * cout1].set(blk.T)
    wfc1_eff = (S @ wfc1).astype(f32)                                     # (C, inter)
    bfc1row = fc1_b.reshape(1, inter).astype(f32)

    # fc2 grouped 1x1 (inter -> C*radix): block-diagonal dense, columns permuted per rSoftMax so
    # column s of slice r is the radix-r logit of output channel s (same ordering as u's channels).
    cin2, cout2 = inter // cardinality, (C * radix) // cardinality
    wfc2 = jnp.zeros((inter, C * radix), f32)
    for g in range(cardinality):
        blk = fc2_w[g * cout2:(g + 1) * cout2, :, 0, 0]                   # (cout2, cin2)
        wfc2 = wfc2.at[g * cin2:(g + 1) * cin2, g * cout2:(g + 1) * cout2].set(blk.T)
    s_idx = jnp.arange(C)
    g_idx = s_idx // (C // cardinality)
    k_idx = s_idx % (C // cardinality)
    cols = [g_idx * (radix * C // cardinality) + r * (C // cardinality) + k_idx
            for r in range(radix)]
    wfc2p = jnp.stack([wfc2[:, c] for c in cols], axis=0).astype(f32)     # (radix, inter, C)
    bfc2p = jnp.stack([fc2_b[c].reshape(1, C) for c in cols], axis=0).astype(f32)  # (radix, 1, C)

    # attention-weighted split-sum + conv1x1_2 + 0.1 scale folded into one (C, C) matrix
    w2m = jnp.transpose(conv2_w[:, :, 0, 0], (1, 0)).astype(f32)          # (Cr, C)
    wcomb = (0.1 * (S @ w2m)).astype(f32)                                 # (C, C)

    # column validity masks for the 3x3 taps (output pixel at w == 0 / w == W-1)
    col = jnp.arange(HW, dtype=jnp.int32) % W
    mask_l = (col >= 1).astype(f32).reshape(HW, 1)
    mask_r = (col <= W - 2).astype(f32).reshape(HW, 1)

    # zero halo of P rows above/below y1 in flattened-pixel space (P >= W+1, sublane aligned)
    P = ((W + 1 + 7) // 8) * 8

    def kernel(x_ref, w1_ref, w3_ref, b3_ref, wfc1_ref, bfc1_ref, wfc2_ref, bfc2_ref,
               wcomb_ref, ml_ref, mr_ref, o_ref, ypad_ref):
        xb = x_ref[...]                                                   # (HW, C)

        # conv1x1_1 + ReLU -> y1 (HW, Cr)
        y1 = jnp.maximum(jnp.dot(xb, w1_ref[...], preferred_element_type=jnp.float32), 0.0)

        # stage y1 with zero halo rows (no HBM pre-padding)
        ypad_ref[0:P, :] = jnp.zeros((P, Cr), jnp.float32)
        ypad_ref[P + HW:P + HW + P, :] = jnp.zeros((P, Cr), jnp.float32)
        ypad_ref[P:P + HW, :] = y1

        ml = ml_ref[...]
        mr = mr_ref[...]

        # grouped 3x3 conv as 9 row-shifted MXU matmuls, + bias + ReLU -> u (HW, C)
        acc = jnp.zeros((HW, C), jnp.float32)
        for oi in (-1, 0, 1):
            for oj in (-1, 0, 1):
                start = P + oi * W + oj
                tap = ypad_ref[start:start + HW, :]                       # (HW, Cr)
                if oj == -1:
                    tap = tap * ml
                elif oj == 1:
                    tap = tap * mr
                k = (oi + 1) * 3 + (oj + 1)
                acc = acc + jnp.dot(tap, w3_ref[k], preferred_element_type=jnp.float32)
        u = jnp.maximum(acc + b3_ref[...], 0.0)

        # split attention: global avg pool (radix split-sum folded into wfc1_eff) -> fc1 -> ReLU
        um = jnp.sum(u, axis=0, keepdims=True) * (1.0 / HW)               # (1, C)
        h1 = jnp.maximum(
            jnp.dot(um, wfc1_ref[...], preferred_element_type=jnp.float32) + bfc1_ref[...], 0.0)

        # fc2 per radix slice + softmax over radix (only the r = 0 slice is consumed downstream)
        zs = [jnp.dot(h1, wfc2_ref[r], preferred_element_type=jnp.float32) + bfc2_ref[r]
              for r in range(radix)]                                      # radix x (1, C)
        zmax = zs[0]
        for r in range(1, radix):
            zmax = jnp.maximum(zmax, zs[r])
        es = [jnp.exp(z - zmax) for z in zs]
        den = es[0]
        for r in range(1, radix):
            den = den + es[r]
        attn = es[0] / den                                                # (1, C)

        # attention-weighted radix sum + conv1x1_2 + 0.1*(.) folded into wcomb, plus residual
        o_ref[...] = (jnp.dot(u * attn, wcomb_ref[...], preferred_element_type=jnp.float32)
                      + xb).astype(o_ref.dtype)

    def full(shape):
        return pl.BlockSpec(shape, lambda n, _s=shape: (0,) * len(_s))

    out2d = pl.pallas_call(
        kernel,
        out_shape=jax.ShapeDtypeStruct((N, HW, C), f32),
        grid=(N,),
        in_specs=[
            pl.BlockSpec((None, HW, C), lambda n: (n, 0, 0)),   # x, one sample per grid step
            full((C, Cr)),                                      # w1m
            full((9, Cr, C)),                                   # conv3x3 per-tap matrices
            full((1, C)),                                       # conv3x3 bias
            full((C, inter)),                                   # wfc1_eff
            full((1, inter)),                                   # fc1 bias
            full((radix, inter, C)),                            # fc2 per-radix matrices
            full((radix, 1, C)),                                # fc2 per-radix biases
            full((C, C)),                                       # wcomb
            full((HW, 1)),                                      # mask_l
            full((HW, 1)),                                      # mask_r
        ],
        out_specs=pl.BlockSpec((None, HW, C), lambda n: (n, 0, 0)),
        scratch_shapes=[pltpu.VMEM((HW + 2 * P, Cr), jnp.float32)],
        compiler_params=pltpu.CompilerParams(dimension_semantics=("parallel",)),
    )(x2d, w1m, w3d, b3row, wfc1_eff, bfc1row, wfc2p, bfc2p, wcomb, mask_l, mask_r)

    # back to NCHW
    return jnp.transpose(out2d.reshape(N, H, W, C), (0, 3, 1, 2))


def splat_block_reference(x, conv1_w, conv3_w, conv3_b, fc1_w, fc1_b, fc2_w, fc2_b, conv2_w,
                          radix, cardinality):
    """Pure-JAX reference mirroring the PyTorch SplatBlock.forward (radix > 1 path)."""
    N, C, H, W = x.shape
    Cr = C // radix
    dn = ("NCHW", "OIHW", "NCHW")
    residual = x
    y = lax.conv_general_dilated(x, conv1_w, (1, 1), ((0, 0), (0, 0)), dimension_numbers=dn)
    y = jnp.maximum(y, 0.0)
    y = lax.conv_general_dilated(y, conv3_w, (1, 1), ((1, 1), (1, 1)), dimension_numbers=dn,
                                 feature_group_count=radix * cardinality)
    y = jnp.maximum(y + conv3_b[None, :, None, None], 0.0)
    # Splat
    splited = jnp.split(y, radix, axis=1)
    gap = sum(splited)
    gap = jnp.mean(gap, axis=(2, 3), keepdims=True)
    gap = lax.conv_general_dilated(gap, fc1_w, (1, 1), ((0, 0), (0, 0)), dimension_numbers=dn,
                                   feature_group_count=cardinality) + fc1_b[None, :, None, None]
    gap = jnp.maximum(gap, 0.0)
    atten = lax.conv_general_dilated(gap, fc2_w, (1, 1), ((0, 0), (0, 0)), dimension_numbers=dn,
                                     feature_group_count=cardinality) + fc2_b[None, :, None, None]
    # rSoftMax (radix > 1), including its reshape/transpose channel ordering
    a = atten.reshape(N, cardinality, radix, -1)
    a = jnp.transpose(a, (0, 2, 1, 3))
    a = jax.nn.softmax(a, axis=1)
    a = a.reshape(N, -1, 1, 1)
    # torch zip() truncation: only the first `radix` chunks of size C//radix are consumed
    attens = [a[:, i * Cr:(i + 1) * Cr] for i in range(radix)]
    out = sum(att * sp for att, sp in zip(attens, splited))
    out = lax.conv_general_dilated(out, conv2_w, (1, 1), ((0, 0), (0, 0)), dimension_numbers=dn)
    return 0.1 * out + residual


if __name__ == "__main__":
    N, C, H, W = 2, 128, 16, 16          # C = 128 keeps the lane axis fully dense
    RADIX, CARD = 2, 2
    Cr = C // RADIX
    G3 = RADIX * CARD
    INTER = max(C * RADIX // 4, 32)

    key = jax.random.PRNGKey(0)
    ks = jax.random.split(key, 9)

    def uni(k, shape, fan_in):
        b = 1.0 / float(fan_in) ** 0.5
        return jax.random.uniform(k, shape, jnp.float32, -b, b)

    x = jax.random.normal(ks[0], (N, C, H, W), jnp.float32)
    # Deterministic synthetic params, shapes per the nn.Conv2d layers in SplatBlock/Splat.
    conv1_w = uni(ks[1], (Cr, C, 1, 1), C)                     # conv1x1_1 (bias=False)
    conv3_w = uni(ks[2], (C, Cr // G3, 3, 3), Cr // G3 * 9)    # conv3x3, groups = radix*cardinality
    conv3_b = uni(ks[3], (C,), Cr // G3 * 9)
    fc1_w = uni(ks[4], (INTER, Cr // CARD, 1, 1), Cr // CARD)  # Splat.fc1, groups = cardinality
    fc1_b = uni(ks[5], (INTER,), Cr // CARD)
    fc2_w = uni(ks[6], (C * RADIX, INTER // CARD, 1, 1), INTER // CARD)  # Splat.fc2
    fc2_b = uni(ks[7], (C * RADIX,), INTER // CARD)
    conv2_w = uni(ks[8], (C, Cr, 1, 1), Cr)                    # conv1x1_2 (bias=False)

    out = jax.block_until_ready(
        splat_block_pallas(x, conv1_w, conv3_w, conv3_b, fc1_w, fc1_b, fc2_w, fc2_b, conv2_w,
                           radix=RADIX, cardinality=CARD))
    ref = jax.block_until_ready(
        splat_block_reference(x, conv1_w, conv3_w, conv3_b, fc1_w, fc1_b, fc2_w, fc2_b, conv2_w,
                              RADIX, CARD))

    assert out.shape == (N, C, H, W) and out.dtype == jnp.float32
    max_err = float(jnp.max(jnp.abs(out - ref)))
    assert jnp.allclose(out, ref, atol=2e-3, rtol=2e-3), f"mismatch vs reference, max|err|={max_err}"
    print("KERNEL_OK")
</pallas_src>

<mosaic_0001>
module attributes {stable_mosaic.version = 11 : i64} {
  func.func @kernel(%arg0: i32, %arg1: memref<1x256x128xf32, #tpu.memory_space<vmem>>, %arg2: memref<128x64xf32, #tpu.memory_space<vmem>>, %arg3: memref<9x64x128xf32, #tpu.memory_space<vmem>>, %arg4: memref<1x128xf32, #tpu.memory_space<vmem>>, %arg5: memref<128x64xf32, #tpu.memory_space<vmem>>, %arg6: memref<1x64xf32, #tpu.memory_space<vmem>>, %arg7: memref<2x64x128xf32, #tpu.memory_space<vmem>>, %arg8: memref<2x1x128xf32, #tpu.memory_space<vmem>>, %arg9: memref<128x128xf32, #tpu.memory_space<vmem>>, %arg10: memref<256x1xf32, #tpu.memory_space<vmem>>, %arg11: memref<256x1xf32, #tpu.memory_space<vmem>>, %arg12: memref<1x256x128xf32, #tpu.memory_space<vmem>>, %arg13: memref<304x64xf32, #tpu.memory_space<vmem>>) attributes {dimension_semantics = [#tpu.dimension_semantics<parallel>], iteration_bounds = array<i64: 2>, scalar_prefetch = 0 : i64, scratch_operands = 1 : i64, tpu.core_type = #tpu.core_type<tc>, window_params = [{transform_indices = @transform_0, window_bounds = array<i64: 1, 256, 128>}, {pipeline_mode = #tpu.pipeline_mode<synchronous>, transform_indices = @transform_1, window_bounds = array<i64: 128, 64>}, {pipeline_mode = #tpu.pipeline_mode<synchronous>, transform_indices = @transform_2, window_bounds = array<i64: 9, 64, 128>}, {pipeline_mode = #tpu.pipeline_mode<synchronous>, transform_indices = @transform_3, window_bounds = array<i64: 1, 128>}, {pipeline_mode = #tpu.pipeline_mode<synchronous>, transform_indices = @transform_4, window_bounds = array<i64: 128, 64>}, {pipeline_mode = #tpu.pipeline_mode<synchronous>, transform_indices = @transform_5, window_bounds = array<i64: 1, 64>}, {pipeline_mode = #tpu.pipeline_mode<synchronous>, transform_indices = @transform_6, window_bounds = array<i64: 2, 64, 128>}, {pipeline_mode = #tpu.pipeline_mode<synchronous>, transform_indices = @transform_7, window_bounds = array<i64: 2, 1, 128>}, {pipeline_mode = #tpu.pipeline_mode<synchronous>, transform_indices = @transform_8, window_bounds = array<i64: 128, 128>}, {pipeline_mode = #tpu.pipeline_mode<synchronous>, transform_indices = @transform_9, window_bounds = array<i64: 256, 1>}, {pipeline_mode = #tpu.pipeline_mode<synchronous>, transform_indices = @transform_10, window_bounds = array<i64: 256, 1>}, {transform_indices = @transform_11, window_bounds = array<i64: 1, 256, 128>}]} {
    %c0 = arith.constant 0 : index
    %c0_0 = arith.constant 0 : index
    %c0_1 = arith.constant 0 : index
    %0 = vector.load %arg1[%c0, %c0_0, %c0_1] : memref<1x256x128xf32, #tpu.memory_space<vmem>>, vector<1x256x128xf32>
    %1 = vector.shape_cast %0 : vector<1x256x128xf32> to vector<256x128xf32>
    %c0_2 = arith.constant 0 : index
    %c0_3 = arith.constant 0 : index
    %2 = vector.load %arg2[%c0_2, %c0_3] : memref<128x64xf32, #tpu.memory_space<vmem>>, vector<128x64xf32>
    %cst = arith.constant dense<0.000000e+00> : vector<256x64xf32>
    %3 = tpu.matmul %1, %2, %cst {dimension_numbers = #tpu.dot_dimension_numbers<[1], [0], [0], [1], [0, 0, 1, 1], [], []>} : vector<256x128xf32>, vector<128x64xf32>, vector<256x64xf32> -> vector<256x64xf32>
    %cst_4 = arith.constant 0.000000e+00 : f32
    %4 = vector.broadcast %cst_4 : f32 to vector<256x64xf32>
    %5 = arith.maximumf %3, %4 : vector<256x64xf32>
    %cst_5 = arith.constant 0.000000e+00 : f32
    %6 = vector.broadcast %cst_5 : f32 to vector<24x64xf32>
    %c0_6 = arith.constant 0 : index
    %c0_7 = arith.constant 0 : index
    %7 = vector.load %arg13[%c0_6, %c0_7] : memref<304x64xf32, #tpu.memory_space<vmem>>, vector<24x64xf32>
    tpu.vector_store %arg13[%c0_6, %c0_7], %6 {strides = array<i32>} : memref<304x64xf32, #tpu.memory_space<vmem>>, vector<24x64xf32>,
    %cst_8 = arith.constant 0.000000e+00 : f32
    %8 = vector.broadcast %cst_8 : f32 to vector<24x64xf32>
    %c280 = arith.constant 280 : index
    %c0_9 = arith.constant 0 : index
    %9 = vector.load %arg13[%c280, %c0_9] : memref<304x64xf32, #tpu.memory_space<vmem>>, vector<24x64xf32>
    tpu.vector_store %arg13[%c280, %c0_9], %8 {strides = array<i32>} : memref<304x64xf32, #tpu.memory_space<vmem>>, vector<24x64xf32>,
    %c24 = arith.constant 24 : index
    %c0_10 = arith.constant 0 : index
    %10 = vector.load %arg13[%c24, %c0_10] : memref<304x64xf32, #tpu.memory_space<vmem>>, vector<256x64xf32>
    tpu.vector_store %arg13[%c24, %c0_10], %5 {strides = array<i32>} : memref<304x64xf32, #tpu.memory_space<vmem>>, vector<256x64xf32>,
    %c0_11 = arith.constant 0 : index
    %c0_12 = arith.constant 0 : index
    %11 = vector.load %arg10[%c0_11, %c0_12] : memref<256x1xf32, #tpu.memory_space<vmem>>, vector<256x1xf32>
    %c0_13 = arith.constant 0 : index
    %c0_14 = arith.constant 0 : index
    %12 = vector.load %arg11[%c0_13, %c0_14] : memref<256x1xf32, #tpu.memory_space<vmem>>, vector<256x1xf32>
    %cst_15 = arith.constant 0.000000e+00 : f32
    %13 = vector.broadcast %cst_15 : f32 to vector<256x128xf32>
    %c7 = arith.constant 7 : index
    %c0_16 = arith.constant 0 : index
    %14 = vector.load %arg13[%c7, %c0_16] : memref<304x64xf32, #tpu.memory_space<vmem>>, vector<256x64xf32>
    %15 = vector.broadcast %11 : vector<256x1xf32> to vector<256x64xf32>
    %16 = arith.mulf %14, %15 : vector<256x64xf32>
    %c0_17 = arith.constant 0 : index
    %c0_18 = arith.constant 0 : index
    %c0_19 = arith.constant 0 : index
    %17 = vector.load %arg3[%c0_17, %c0_18, %c0_19] : memref<9x64x128xf32, #tpu.memory_space<vmem>>, vector<1x64x128xf32>
    %18 = vector.shape_cast %17 : vector<1x64x128xf32> to vector<64x128xf32>
    %cst_20 = arith.constant dense<0.000000e+00> : vector<256x128xf32>
    %19 = tpu.matmul %16, %18, %cst_20 {dimension_numbers = #tpu.dot_dimension_numbers<[1], [0], [0], [1], [0, 0, 1, 1], [], []>} : vector<256x64xf32>, vector<64x128xf32>, vector<256x128xf32> -> vector<256x128xf32>
    %20 = arith.addf %13, %19 : vector<256x128xf32>
    %c8 = arith.constant 8 : index
    %c0_21 = arith.constant 0 : index
    %21 = vector.load %arg13[%c8, %c0_21] : memref<304x64xf32, #tpu.memory_space<vmem>>, vector<256x64xf32>
    %c1 = arith.constant 1 : index
    %c0_22 = arith.constant 0 : index
    %c0_23 = arith.constant 0 : index
    %22 = vector.load %arg3[%c1, %c0_22, %c0_23] : memref<9x64x128xf32, #tpu.memory_space<vmem>>, vector<1x64x128xf32>
    %23 = vector.shape_cast %22 : vector<1x64x128xf32> to vector<64x128xf32>
    %cst_24 = arith.constant dense<0.000000e+00> : vector<256x128xf32>
    %24 = tpu.matmul %21, %23, %cst_24 {dimension_numbers = #tpu.dot_dimension_numbers<[1], [0], [0], [1], [0, 0, 1, 1], [], []>} : vector<256x64xf32>, vector<64x128xf32>, vector<256x128xf32> -> vector<256x128xf32>
    %25 = arith.addf %20, %24 : vector<256x128xf32>
    %c9 = arith.constant 9 : index
    %c0_25 = arith.constant 0 : index
    %26 = vector.load %arg13[%c9, %c0_25] : memref<304x64xf32, #tpu.memory_space<vmem>>, vector<256x64xf32>
    %27 = vector.broadcast %12 : vector<256x1xf32> to vector<256x64xf32>
    %28 = arith.mulf %26, %27 : vector<256x64xf32>
    %c2 = arith.constant 2 : index
    %c0_26 = arith.constant 0 : index
    %c0_27 = arith.constant 0 : index
    %29 = vector.load %arg3[%c2, %c0_26, %c0_27] : memref<9x64x128xf32, #tpu.memory_space<vmem>>, vector<1x64x128xf32>
    %30 = vector.shape_cast %29 : vector<1x64x128xf32> to vector<64x128xf32>
    %cst_28 = arith.constant dense<0.000000e+00> : vector<256x128xf32>
    %31 = tpu.matmul %28, %30, %cst_28 {dimension_numbers = #tpu.dot_dimension_numbers<[1], [0], [0], [1], [0, 0, 1, 1], [], []>} : vector<256x64xf32>, vector<64x128xf32>, vector<256x128xf32> -> vector<256x128xf32>
    %32 = arith.addf %25, %31 : vector<256x128xf32>
    %c23 = arith.constant 23 : index
    %c0_29 = arith.constant 0 : index
    %33 = vector.load %arg13[%c23, %c0_29] : memref<304x64xf32, #tpu.memory_space<vmem>>, vector<256x64xf32>
    %34 = vector.broadcast %11 : vector<256x1xf32> to vector<256x64xf32>
    %35 = arith.mulf %33, %34 : vector<256x64xf32>
    %c3 = arith.constant 3 : index
    %c0_30 = arith.constant 0 : index
    %c0_31 = arith.constant 0 : index
    %36 = vector.load %arg3[%c3, %c0_30, %c0_31] : memref<9x64x128xf32, #tpu.memory_space<vmem>>, vector<1x64x128xf32>
    %37 = vector.shape_cast %36 : vector<1x64x128xf32> to vector<64x128xf32>
    %cst_32 = arith.constant dense<0.000000e+00> : vector<256x128xf32>
    %38 = tpu.matmul %35, %37, %cst_32 {dimension_numbers = #tpu.dot_dimension_numbers<[1], [0], [0], [1], [0, 0, 1, 1], [], []>} : vector<256x64xf32>, vector<64x128xf32>, vector<256x128xf32> -> vector<256x128xf32>
    %39 = arith.addf %32, %38 : vector<256x128xf32>
    %c24_33 = arith.constant 24 : index
    %c0_34 = arith.constant 0 : index
    %40 = vector.load %arg13[%c24_33, %c0_34] : memref<304x64xf32, #tpu.memory_space<vmem>>, vector<256x64xf32>
    %c4 = arith.constant 4 : index
    %c0_35 = arith.constant 0 : index
    %c0_36 = arith.constant 0 : index
    %41 = vector.load %arg3[%c4, %c0_35, %c0_36] : memref<9x64x128xf32, #tpu.memory_space<vmem>>, vector<1x64x128xf32>
    %42 = vector.shape_cast %41 : vector<1x64x128xf32> to vector<64x128xf32>
    %cst_37 = arith.constant dense<0.000000e+00> : vector<256x128xf32>
    %43 = tpu.matmul %40, %42, %cst_37 {dimension_numbers = #tpu.dot_dimension_numbers<[1], [0], [0], [1], [0, 0, 1, 1], [], []>} : vector<256x64xf32>, vector<64x128xf32>, vector<256x128xf32> -> vector<256x128xf32>
    %44 = arith.addf %39, %43 : vector<256x128xf32>
    %c25 = arith.constant 25 : index
    %c0_38 = arith.constant 0 : index
    %45 = vector.load %arg13[%c25, %c0_38] : memref<304x64xf32, #tpu.memory_space<vmem>>, vector<256x64xf32>
    %46 = vector.broadcast %12 : vector<256x1xf32> to vector<256x64xf32>
    %47 = arith.mulf %45, %46 : vector<256x64xf32>
    %c5 = arith.constant 5 : index
    %c0_39 = arith.constant 0 : index
    %c0_40 = arith.constant 0 : index
    %48 = vector.load %arg3[%c5, %c0_39, %c0_40] : memref<9x64x128xf32, #tpu.memory_space<vmem>>, vector<1x64x128xf32>
    %49 = vector.shape_cast %48 : vector<1x64x128xf32> to vector<64x128xf32>
    %cst_41 = arith.constant dense<0.000000e+00> : vector<256x128xf32>
    %50 = tpu.matmul %47, %49, %cst_41 {dimension_numbers = #tpu.dot_dimension_numbers<[1], [0], [0], [1], [0, 0, 1, 1], [], []>} : vector<256x64xf32>, vector<64x128xf32>, vector<256x128xf32> -> vector<256x128xf32>
    %51 = arith.addf %44, %50 : vector<256x128xf32>
    %c39 = arith.constant 39 : index
    %c0_42 = arith.constant 0 : index
    %52 = vector.load %arg13[%c39, %c0_42] : memref<304x64xf32, #tpu.memory_space<vmem>>, vector<256x64xf32>
    %53 = vector.broadcast %11 : vector<256x1xf32> to vector<256x64xf32>
    %54 = arith.mulf %52, %53 : vector<256x64xf32>
    %c6 = arith.constant 6 : index
    %c0_43 = arith.constant 0 : index
    %c0_44 = arith.constant 0 : index
    %55 = vector.load %arg3[%c6, %c0_43, %c0_44] : memref<9x64x128xf32, #tpu.memory_space<vmem>>, vector<1x64x128xf32>
    %56 = vector.shape_cast %55 : vector<1x64x128xf32> to vector<64x128xf32>
    %cst_45 = arith.constant dense<0.000000e+00> : vector<256x128xf32>
    %57 = tpu.matmul %54, %56, %cst_45 {dimension_numbers = #tpu.dot_dimension_numbers<[1], [0], [0], [1], [0, 0, 1, 1], [], []>} : vector<256x64xf32>, vector<64x128xf32>, vector<256x128xf32> -> vector<256x128xf32>
    %58 = arith.addf %51, %57 : vector<256x128xf32>
    %c40 = arith.constant 40 : index
    %c0_46 = arith.constant 0 : index
    %59 = vector.load %arg13[%c40, %c0_46] : memref<304x64xf32, #tpu.memory_space<vmem>>, vector<256x64xf32>
    %c7_47 = arith.constant 7 : index
    %c0_48 = arith.constant 0 : index
    %c0_49 = arith.constant 0 : index
    %60 = vector.load %arg3[%c7_47, %c0_48, %c0_49] : memref<9x64x128xf32, #tpu.memory_space<vmem>>, vector<1x64x128xf32>
    %61 = vector.shape_cast %60 : vector<1x64x128xf32> to vector<64x128xf32>
    %cst_50 = arith.constant dense<0.000000e+00> : vector<256x128xf32>
    %62 = tpu.matmul %59, %61, %cst_50 {dimension_numbers = #tpu.dot_dimension_numbers<[1], [0], [0], [1], [0, 0, 1, 1], [], []>} : vector<256x64xf32>, vector<64x128xf32>, vector<256x128xf32> -> vector<256x128xf32>
    %63 = arith.addf %58, %62 : vector<256x128xf32>
    %c41 = arith.constant 41 : index
    %c0_51 = arith.constant 0 : index
    %64 = vector.load %arg13[%c41, %c0_51] : memref<304x64xf32, #tpu.memory_space<vmem>>, vector<256x64xf32>
    %65 = vector.broadcast %12 : vector<256x1xf32> to vector<256x64xf32>
    %66 = arith.mulf %64, %65 : vector<256x64xf32>
    %c8_52 = arith.constant 8 : index
    %c0_53 = arith.constant 0 : index
    %c0_54 = arith.constant 0 : index
    %67 = vector.load %arg3[%c8_52, %c0_53, %c0_54] : memref<9x64x128xf32, #tpu.memory_space<vmem>>, vector<1x64x128xf32>
    %68 = vector.shape_cast %67 : vector<1x64x128xf32> to vector<64x128xf32>
    %cst_55 = arith.constant dense<0.000000e+00> : vector<256x128xf32>
    %69 = tpu.matmul %66, %68, %cst_55 {dimension_numbers = #tpu.dot_dimension_numbers<[1], [0], [0], [1], [0, 0, 1, 1], [], []>} : vector<256x64xf32>, vector<64x128xf32>, vector<256x128xf32> -> vector<256x128xf32>
    %70 = arith.addf %63, %69 : vector<256x128xf32>
    %c0_56 = arith.constant 0 : index
    %c0_57 = arith.constant 0 : index
    %71 = vector.load %arg4[%c0_56, %c0_57] : memref<1x128xf32, #tpu.memory_space<vmem>>, vector<1x128xf32>
    %72 = vector.broadcast %71 : vector<1x128xf32> to vector<256x128xf32>
    %73 = arith.addf %70, %72 : vector<256x128xf32>
    %cst_58 = arith.constant 0.000000e+00 : f32
    %74 = vector.broadcast %cst_58 : f32 to vector<256x128xf32>
    %75 = arith.maximumf %73, %74 : vector<256x128xf32>
    %cst_59 = arith.constant dense<0.000000e+00> : vector<128xf32>
    %76 = vector.multi_reduction <add>, %75, %cst_59 [0] : vector<256x128xf32> to vector<128xf32>
    %77 = vector.shape_cast %76 : vector<128xf32> to vector<1x128xf32>
    %cst_60 = arith.constant 3.906250e-03 : f32
    %78 = vector.broadcast %cst_60 : f32 to vector<1x128xf32>
    %79 = arith.mulf %77, %78 : vector<1x128xf32>
    %c0_61 = arith.constant 0 : index
    %c0_62 = arith.constant 0 : index
    %80 = vector.load %arg5[%c0_61, %c0_62] : memref<128x64xf32, #tpu.memory_space<vmem>>, vector<128x64xf32>
    %cst_63 = arith.constant dense<0.000000e+00> : vector<1x64xf32>
    %81 = tpu.matmul %79, %80, %cst_63 {dimension_numbers = #tpu.dot_dimension_numbers<[1], [0], [0], [1], [0, 0, 1, 1], [], []>} : vector<1x128xf32>, vector<128x64xf32>, vector<1x64xf32> -> vector<1x64xf32>
    %c0_64 = arith.constant 0 : index
    %c0_65 = arith.constant 0 : index
    %82 = vector.load %arg6[%c0_64, %c0_65] : memref<1x64xf32, #tpu.memory_space<vmem>>, vector<1x64xf32>
    %83 = arith.addf %81, %82 : vector<1x64xf32>
    %cst_66 = arith.constant 0.000000e+00 : f32
    %84 = vector.broadcast %cst_66 : f32 to vector<1x64xf32>
    %85 = arith.maximumf %83, %84 : vector<1x64xf32>
    %c0_67 = arith.constant 0 : index
    %c0_68 = arith.constant 0 : index
    %c0_69 = arith.constant 0 : index
    %86 = vector.load %arg7[%c0_67, %c0_68, %c0_69] : memref<2x64x128xf32, #tpu.memory_space<vmem>>, vector<1x64x128xf32>
    %87 = vector.shape_cast %86 : vector<1x64x128xf32> to vector<64x128xf32>
    %cst_70 = arith.constant dense<0.000000e+00> : vector<1x128xf32>
    %88 = tpu.matmul %85, %87, %cst_70 {dimension_numbers = #tpu.dot_dimension_numbers<[1], [0], [0], [1], [0, 0, 1, 1], [], []>} : vector<1x64xf32>, vector<64x128xf32>, vector<1x128xf32> -> vector<1x128xf32>
    %c0_71 = arith.constant 0 : index
    %c0_72 = arith.constant 0 : index
    %c0_73 = arith.constant 0 : index
    %89 = vector.load %arg8[%c0_71, %c0_72, %c0_73] : memref<2x1x128xf32, #tpu.memory_space<vmem>>, vector<1x1x128xf32>
    %90 = vector.shape_cast %89 : vector<1x1x128xf32> to vector<1x128xf32>
    %91 = arith.addf %88, %90 : vector<1x128xf32>
    %c1_74 = arith.constant 1 : index
    %c0_75 = arith.constant 0 : index
    %c0_76 = arith.constant 0 : index
    %92 = vector.load %arg7[%c1_74, %c0_75, %c0_76] : memref<2x64x128xf32, #tpu.memory_space<vmem>>, vector<1x64x128xf32>
    %93 = vector.shape_cast %92 : vector<1x64x128xf32> to vector<64x128xf32>
    %cst_77 = arith.constant dense<0.000000e+00> : vector<1x128xf32>
    %94 = tpu.matmul %85, %93, %cst_77 {dimension_numbers = #tpu.dot_dimension_numbers<[1], [0], [0], [1], [0, 0, 1, 1], [], []>} : vector<1x64xf32>, vector<64x128xf32>, vector<1x128xf32> -> vector<1x128xf32>
    %c1_78 = arith.constant 1 : index
    %c0_79 = arith.constant 0 : index
    %c0_80 = arith.constant 0 : index
    %95 = vector.load %arg8[%c1_78, %c0_79, %c0_80] : memref<2x1x128xf32, #tpu.memory_space<vmem>>, vector<1x1x128xf32>
    %96 = vector.shape_cast %95 : vector<1x1x128xf32> to vector<1x128xf32>
    %97 = arith.addf %94, %96 : vector<1x128xf32>
    %98 = arith.maximumf %91, %97 : vector<1x128xf32>
    %99 = arith.subf %91, %98 : vector<1x128xf32>
    %100 = math.exp %99 : vector<1x128xf32>
    %101 = arith.subf %97, %98 : vector<1x128xf32>
    %102 = math.exp %101 : vector<1x128xf32>
    %103 = arith.addf %100, %102 : vector<1x128xf32>
    %104 = arith.divf %100, %103 : vector<1x128xf32>
    %105 = vector.broadcast %104 : vector<1x128xf32> to vector<256x128xf32>
    %106 = arith.mulf %75, %105 : vector<256x128xf32>
    %c0_81 = arith.constant 0 : index
    %c0_82 = arith.constant 0 : index
    %107 = vector.load %arg9[%c0_81, %c0_82] : memref<128x128xf32, #tpu.memory_space<vmem>>, vector<128x128xf32>
    %cst_83 = arith.constant dense<0.000000e+00> : vector<256x128xf32>
    %108 = tpu.matmul %106, %107, %cst_83 {dimension_numbers = #tpu.dot_dimension_numbers<[1], [0], [0], [1], [0, 0, 1, 1], [], []>} : vector<256x128xf32>, vector<128x128xf32>, vector<256x128xf32> -> vector<256x128xf32>
    %109 = arith.addf %108, %1 : vector<256x128xf32>
    %c0_84 = arith.constant 0 : index
    %c0_85 = arith.constant 0 : index
    %c0_86 = arith.constant 0 : index
    %110 = vector.load %arg12[%c0_84, %c0_85, %c0_86] : memref<1x256x128xf32, #tpu.memory_space<vmem>>, vector<1x256x128xf32>
    %111 = vector.shape_cast %110 : vector<1x256x128xf32> to vector<256x128xf32>
    %112 = vector.shape_cast %109 : vector<256x128xf32> to vector<1x256x128xf32>
    tpu.vector_store %arg12[%c0_84, %c0_85, %c0_86], %112 {strides = array<i32>} : memref<1x256x128xf32, #tpu.memory_space<vmem>>, vector<1x256x128xf32>,
    return
  }
  func.func @transform_0(%arg0: i32) -> (i32, i32, i32) {
    %c0_i32 = arith.constant 0 : i32
    %c0_i32_0 = arith.constant 0 : i32
    %c0_i32_1 = arith.constant 0 : i32
    return %arg0, %c0_i32, %c0_i32_0 : i32, i32, i32
  }
  func.func @transform_1(%arg0: i32) -> (i32, i32) {
    %c0_i32 = arith.constant 0 : i32
    %c0_i32_0 = arith.constant 0 : i32
    %c0_i32_1 = arith.constant 0 : i32
    return %c0_i32, %c0_i32_0 : i32, i32
  }
  func.func @transform_2(%arg0: i32) -> (i32, i32, i32) {
    %c0_i32 = arith.constant 0 : i32
    %c0_i32_0 = arith.constant 0 : i32
    %c0_i32_1 = arith.constant 0 : i32
    %c0_i32_2 = arith.constant 0 : i32
    return %c0_i32, %c0_i32_0, %c0_i32_1 : i32, i32, i32
  }
  func.func @transform_3(%arg0: i32) -> (i32, i32) {
    %c0_i32 = arith.constant 0 : i32
    %c0_i32_0 = arith.constant 0 : i32
    %c0_i32_1 = arith.constant 0 : i32
    return %c0_i32, %c0_i32_0 : i32, i32
  }
  func.func @transform_4(%arg0: i32) -> (i32, i32) {
    %c0_i32 = arith.constant 0 : i32
    %c0_i32_0 = arith.constant 0 : i32
    %c0_i32_1 = arith.constant 0 : i32
    return %c0_i32, %c0_i32_0 : i32, i32
  }
  func.func @transform_5(%arg0: i32) -> (i32, i32) {
    %c0_i32 = arith.constant 0 : i32
    %c0_i32_0 = arith.constant 0 : i32
    %c0_i32_1 = arith.constant 0 : i32
    return %c0_i32, %c0_i32_0 : i32, i32
  }
  func.func @transform_6(%arg0: i32) -> (i32, i32, i32) {
    %c0_i32 = arith.constant 0 : i32
    %c0_i32_0 = arith.constant 0 : i32
    %c0_i32_1 = arith.constant 0 : i32
    %c0_i32_2 = arith.constant 0 : i32
    return %c0_i32, %c0_i32_0, %c0_i32_1 : i32, i32, i32
  }
  func.func @transform_7(%arg0: i32) -> (i32, i32, i32) {
    %c0_i32 = arith.constant 0 : i32
    %c0_i32_0 = arith.constant 0 : i32
    %c0_i32_1 = arith.constant 0 : i32
    %c0_i32_2 = arith.constant 0 : i32
    return %c0_i32, %c0_i32_0, %c0_i32_1 : i32, i32, i32
  }
  func.func @transform_8(%arg0: i32) -> (i32, i32) {
    %c0_i32 = arith.constant 0 : i32
    %c0_i32_0 = arith.constant 0 : i32
    %c0_i32_1 = arith.constant 0 : i32
    return %c0_i32, %c0_i32_0 : i32, i32
  }
  func.func @transform_9(%arg0: i32) -> (i32, i32) {
    %c0_i32 = arith.constant 0 : i32
    %c0_i32_0 = arith.constant 0 : i32
    %c0_i32_1 = arith.constant 0 : i32
    return %c0_i32, %c0_i32_0 : i32, i32
  }
  func.func @transform_10(%arg0: i32) -> (i32, i32) {
    %c0_i32 = arith.constant 0 : i32
    %c0_i32_0 = arith.constant 0 : i32
    %c0_i32_1 = arith.constant 0 : i32
    return %c0_i32, %c0_i32_0 : i32, i32
  }
  func.func @transform_11(%arg0: i32) -> (i32, i32, i32) {
    %c0_i32 = arith.constant 0 : i32
    %c0_i32_0 = arith.constant 0 : i32
    %c0_i32_1 = arith.constant 0 : i32
    return %arg0, %c0_i32, %c0_i32_0 : i32, i32, i32
  }
}

</mosaic_0001>

<llo_original>
// kernel: splat_block_pallas.1
$region0: #{splat_block_pallas.1}
  #allocation0 [shape = 'u32[]', space=smem, size = 0x4, offset = 0x4, fixed_abs, tag = 'smem constant byte address 0x4 - core index']
  #allocation1 [shape = 'u32[144,128]{1,0:T(1,128)}', space=vmem, size = 0x12000, scoped, tag = 'internal scratch']
  #allocation2 [shape = 'f32[304,64]{1,0:T(8,128)}', space=vmem, size = 0x26000, scoped, tag = 'scratch operand']
  %s0 = inlined_call_operand.vmem [shape: f32[2,256,128], index: 0, kind: input, shape index: {}]
  %s1 = inlined_call_operand.vmem [shape: f32[128,64], index: 1, kind: input, shape index: {}]
  %s2 = inlined_call_operand.vmem [shape: f32[9,64,128], index: 2, kind: input, shape index: {}]
  %s3 = inlined_call_operand.vmem [shape: f32[1,128], index: 3, kind: input, shape index: {}]
  %s4 = inlined_call_operand.vmem [shape: f32[128,64], index: 4, kind: input, shape index: {}]
  %s5 = inlined_call_operand.vmem [shape: f32[1,64], index: 5, kind: input, shape index: {}]
  %s6 = inlined_call_operand.vmem [shape: f32[2,64,128], index: 6, kind: input, shape index: {}]
  %s7 = inlined_call_operand.vmem [shape: f32[2,1,128], index: 7, kind: input, shape index: {}]
  %s8 = inlined_call_operand.vmem [shape: f32[128,128], index: 8, kind: input, shape index: {}]
  %s9 = inlined_call_operand.vmem [shape: f32[256,1], index: 9, kind: input, shape index: {}]
  %s10 = inlined_call_operand.vmem [shape: f32[256,1], index: 10, kind: input, shape index: {}]
  %s11 = inlined_call_operand.hbm [shape: f32[2,256,128], index: 11, kind: output, shape index: {}]
  %s12 = sld [smem:[#allocation0]]
  $region77: #{splat_block_pallas.1} parent=0
    _
  %s14 = ssub.s32 1, %s12
  %s15 = scalar_select 0, %s14, %s12
  $region1: #{splat_block_pallas.1} parent=0
    #allocation3 [shape = 'u8[262144]{0}', space=vmem, size = 0x40000, scoped, tag = 'output window, operand 0']
    #allocation4 [shape = 's32[2]{0}', space=sflag, size = 0x8, scoped, tag = 'scoped memory for splat_block_pallas.1']
    %16 = vsyncpa [#allocation4], 0
    %s17 = scalar_lea.sflag [#allocation4], 1
    %18 = vsyncpa %s17, 0
    loop: start=0, step=1, limit=4
    $region2: #{splat_block_pallas.1} parent=1 // loop_pre_header
      _
    $region3: #{splat_block_pallas.1} parent=1 // loop_header
      %s20 = sphi 0, %s24
      %p21 = scmp.ge.s32.totalorder %s20, 4
      %s30 = sphi 0, %s32
      %s33 = sphi 0, %s30
      %s34 = sphi 0, %s33
      %s50 = sphi 0, %s34
      %s54 = sphi 0, %s54
      %s56 = sphi 0, %s54
      %s57 = sphi 0, %s56
      %s71 = sphi 0, %s57
      %s75 = sphi 0, %s75
      %s77 = sphi 0, %s75
      %s78 = sphi 0, %s77
      %s92 = sphi 0, %s78
      %s96 = sphi 0, %s96
      %s98 = sphi 0, %s96
      %s99 = sphi 0, %s98
      %s113 = sphi 0, %s99
      %s117 = sphi 0, %s117
      %s119 = sphi 0, %s117
      %s120 = sphi 0, %s119
      %s134 = sphi 0, %s120
      %s138 = sphi 0, %s138
      %s140 = sphi 0, %s138
      %s141 = sphi 0, %s140
      %s155 = sphi 0, %s141
      %s159 = sphi 0, %s159
      %s161 = sphi 0, %s159
      %s162 = sphi 0, %s161
      %s176 = sphi 0, %s162
      %s180 = sphi 0, %s180
      %s182 = sphi 0, %s180
      %s183 = sphi 0, %s182
      %s197 = sphi 0, %s183
      %s201 = sphi 0, %s201
      %s203 = sphi 0, %s201
      %s204 = sphi 0, %s203
      %s218 = sphi 0, %s204
      %s222 = sphi 0, %s222
      %s224 = sphi 0, %s222
      %s225 = sphi 0, %s224
      %s239 = sphi 0, %s225
      %s243 = sphi 0, %s243
      %s245 = sphi 0, %s243
      %s246 = sphi 0, %s245
      %s260 = sphi 0, %s246
      %s266 = sphi 0, %s268
      %s269 = sphi 0, %s266
      %s270 = sphi 0, %s269
      %s286 = sphi 0, %s270
    $region4: #{splat_block_pallas.1} parent=1 // loop_header_branch
      %23 = sbr.rel (%p21) target = $region8
    $region5: #{splat_block_pallas.1} parent=1 // loop_body
      %s25 = ssub.s32 %s20, 1
      %s26 = ssub.s32 %s20, 2
      %s27 = sadd.s32 %s20, 1
      %s28 = ssub.s32 %s20, %s27
      %p29 = scmp.eq.s32.totalorder %s28, 0
      %s31 = sadd.s32 %s30, 1
      %s32 = scalar_select %p29, %s30, %s31
      %p35 = pneg %p29
      %p36 = scmp.eq.s32.totalorder %s20, 1
      %p37 = por %p35, %p36
      %p38 = scmp.ne.s32.totalorder %s30, %s33
      %p39 = scmp.eq.s32.totalorder %s20, 0
      %p40 = por %p38, %p39
      %p41 = scmp.ne.s32.totalorder %s30, %s33
      %p42 = scmp.eq.s32.totalorder %s25, 1
      %p43 = por %p41, %p42
      %p44 = scmp.ne.s32.totalorder %s33, %s34
      %p45 = scmp.eq.s32.totalorder %s25, 0
      %p46 = por %p44, %p45
      %p47 = scmp.ne.s32.totalorder %s33, %s34
      %p48 = scmp.eq.s32.totalorder %s26, 1
      %p49 = por %p47, %p48
      %p51 = scmp.ne.s32.totalorder %s34, %s50
      %p52 = scmp.eq.s32.totalorder %s26, 0
      %p53 = por %p51, %p52
      %s55 = sadd.s32 %s54, 1
      %p58 = scmp.eq.s32.totalorder %s20, 1
      %p59 = scmp.ne.s32.totalorder %s54, %s56
      %p60 = scmp.eq.s32.totalorder %s20, 0
      %p61 = por %p59, %p60
      %p62 = scmp.ne.s32.totalorder %s54, %s56
      %p63 = scmp.eq.s32.totalorder %s25, 1
      %p64 = por %p62, %p63
      %p65 = scmp.ne.s32.totalorder %s56, %s57
      %p66 = scmp.eq.s32.totalorder %s25, 0
      %p67 = por %p65, %p66
      %p68 = scmp.ne.s32.totalorder %s56, %s57
      %p69 = scmp.eq.s32.totalorder %s26, 1
      %p70 = por %p68, %p69
      %p72 = scmp.ne.s32.totalorder %s57, %s71
      %p73 = scmp.eq.s32.totalorder %s26, 0
      %p74 = por %p72, %p73
      %s76 = sadd.s32 %s75, 1
      %p79 = scmp.eq.s32.totalorder %s20, 1
      %p80 = scmp.ne.s32.totalorder %s75, %s77
      %p81 = scmp.eq.s32.totalorder %s20, 0
      %p82 = por %p80, %p81
      %p83 = scmp.ne.s32.totalorder %s75, %s77
      %p84 = scmp.eq.s32.totalorder %s25, 1
      %p85 = por %p83, %p84
      %p86 = scmp.ne.s32.totalorder %s77, %s78
      %p87 = scmp.eq.s32.totalorder %s25, 0
      %p88 = por %p86, %p87
      %p89 = scmp.ne.s32.totalorder %s77, %s78
      %p90 = scmp.eq.s32.totalorder %s26, 1
      %p91 = por %p89, %p90
      %p93 = scmp.ne.s32.totalorder %s78, %s92
      %p94 = scmp.eq.s32.totalorder %s26, 0
      %p95 = por %p93, %p94
      %s97 = sadd.s32 %s96, 1
      %p100 = scmp.eq.s32.totalorder %s20, 1
      %p101 = scmp.ne.s32.totalorder %s96, %s98
      %p102 = scmp.eq.s32.totalorder %s20, 0
      %p103 = por %p101, %p102
      %p104 = scmp.ne.s32.totalorder %s96, %s98
      %p105 = scmp.eq.s32.totalorder %s25, 1
      %p106 = por %p104, %p105
      %p107 = scmp.ne.s32.totalorder %s98, %s99
      %p108 = scmp.eq.s32.totalorder %s25, 0
      %p109 = por %p107, %p108
      %p110 = scmp.ne.s32.totalorder %s98, %s99
      %p111 = scmp.eq.s32.totalorder %s26, 1
      %p112 = por %p110, %p111
      %p114 = scmp.ne.s32.totalorder %s99, %s113
      %p115 = scmp.eq.s32.totalorder %s26, 0
      %p116 = por %p114, %p115
      %s118 = sadd.s32 %s117, 1
      %p121 = scmp.eq.s32.totalorder %s20, 1
      %p122 = scmp.ne.s32.totalorder %s117, %s119
      %p123 = scmp.eq.s32.totalorder %s20, 0
      %p124 = por %p122, %p123
      %p125 = scmp.ne.s32.totalorder %s117, %s119
      %p126 = scmp.eq.s32.totalorder %s25, 1
      %p127 = por %p125, %p126
      %p128 = scmp.ne.s32.totalorder %s119, %s120
      %p129 = scmp.eq.s32.totalorder %s25, 0
      %p130 = por %p128, %p129
      %p131 = scmp.ne.s32.totalorder %s119, %s120
      %p132 = scmp.eq.s32.totalorder %s26, 1
      %p133 = por %p131, %p132
      %p135 = scmp.ne.s32.totalorder %s120, %s134
      %p136 = scmp.eq.s32.totalorder %s26, 0
      %p137 = por %p135, %p136
      %s139 = sadd.s32 %s138, 1
      %p142 = scmp.eq.s32.totalorder %s20, 1
      %p143 = scmp.ne.s32.totalorder %s138, %s140
      %p144 = scmp.eq.s32.totalorder %s20, 0
      %p145 = por %p143, %p144
      %p146 = scmp.ne.s32.totalorder %s138, %s140
      %p147 = scmp.eq.s32.totalorder %s25, 1
      %p148 = por %p146, %p147
      %p149 = scmp.ne.s32.totalorder %s140, %s141
      %p150 = scmp.eq.s32.totalorder %s25, 0
      %p151 = por %p149, %p150
      %p152 = scmp.ne.s32.totalorder %s140, %s141
      %p153 = scmp.eq.s32.totalorder %s26, 1
      %p154 = por %p152, %p153
      %p156 = scmp.ne.s32.totalorder %s141, %s155
      %p157 = scmp.eq.s32.totalorder %s26, 0
      %p158 = por %p156, %p157
      %s160 = sadd.s32 %s159, 1
      %p163 = scmp.eq.s32.totalorder %s20, 1
      %p164 = scmp.ne.s32.totalorder %s159, %s161
      %p165 = scmp.eq.s32.totalorder %s20, 0
      %p166 = por %p164, %p165
      %p167 = scmp.ne.s32.totalorder %s159, %s161
      %p168 = scmp.eq.s32.totalorder %s25, 1
      %p169 = por %p167, %p168
      %p170 = scmp.ne.s32.totalorder %s161, %s162
      %p171 = scmp.eq.s32.totalorder %s25, 0
      %p172 = por %p170, %p171
      %p173 = scmp.ne.s32.totalorder %s161, %s162
      %p174 = scmp.eq.s32.totalorder %s26, 1
      %p175 = por %p173, %p174
      %p177 = scmp.ne.s32.totalorder %s162, %s176
      %p178 = scmp.eq.s32.totalorder %s26, 0
      %p179 = por %p177, %p178
      %s181 = sadd.s32 %s180, 1
      %p184 = scmp.eq.s32.totalorder %s20, 1
      %p185 = scmp.ne.s32.totalorder %s180, %s182
      %p186 = scmp.eq.s32.totalorder %s20, 0
      %p187 = por %p185, %p186
      %p188 = scmp.ne.s32.totalorder %s180, %s182
      %p189 = scmp.eq.s32.totalorder %s25, 1
      %p190 = por %p188, %p189
      %p191 = scmp.ne.s32.totalorder %s182, %s183
      %p192 = scmp.eq.s32.totalorder %s25, 0
      %p193 = por %p191, %p192
      %p194 = scmp.ne.s32.totalorder %s182, %s183
      %p195 = scmp.eq.s32.totalorder %s26, 1
      %p196 = por %p194, %p195
      %p198 = scmp.ne.s32.totalorder %s183, %s197
      %p199 = scmp.eq.s32.totalorder %s26, 0
      %p200 = por %p198, %p199
      %s202 = sadd.s32 %s201, 1
      %p205 = scmp.eq.s32.totalorder %s20, 1
      %p206 = scmp.ne.s32.totalorder %s201, %s203
      %p207 = scmp.eq.s32.totalorder %s20, 0
      %p208 = por %p206, %p207
      %p209 = scmp.ne.s32.totalorder %s201, %s203
      %p210 = scmp.eq.s32.totalorder %s25, 1
      %p211 = por %p209, %p210
      %p212 = scmp.ne.s32.totalorder %s203, %s204
      %p213 = scmp.eq.s32.totalorder %s25, 0
      %p214 = por %p212, %p213
      %p215 = scmp.ne.s32.totalorder %s203, %s204
      %p216 = scmp.eq.s32.totalorder %s26, 1
      %p217 = por %p215, %p216
      %p219 = scmp.ne.s32.totalorder %s204, %s218
      %p220 = scmp.eq.s32.totalorder %s26, 0
      %p221 = por %p219, %p220
      %s223 = sadd.s32 %s222, 1
      %p226 = scmp.eq.s32.totalorder %s20, 1
      %p227 = scmp.ne.s32.totalorder %s222, %s224
      %p228 = scmp.eq.s32.totalorder %s20, 0
      %p229 = por %p227, %p228
      %p230 = scmp.ne.s32.totalorder %s222, %s224
      %p231 = scmp.eq.s32.totalorder %s25, 1
      %p232 = por %p230, %p231
      %p233 = scmp.ne.s32.totalorder %s224, %s225
      %p234 = scmp.eq.s32.totalorder %s25, 0
      %p235 = por %p233, %p234
      %p236 = scmp.ne.s32.totalorder %s224, %s225
      %p237 = scmp.eq.s32.totalorder %s26, 1
      %p238 = por %p236, %p237
      %p240 = scmp.ne.s32.totalorder %s225, %s239
      %p241 = scmp.eq.s32.totalorder %s26, 0
      %p242 = por %p240, %p241
      %s244 = sadd.s32 %s243, 1
      %p247 = scmp.eq.s32.totalorder %s20, 1
      %p248 = scmp.ne.s32.totalorder %s243, %s245
      %p249 = scmp.eq.s32.totalorder %s20, 0
      %p250 = por %p248, %p249
      %p251 = scmp.ne.s32.totalorder %s243, %s245
      %p252 = scmp.eq.s32.totalorder %s25, 1
      %p253 = por %p251, %p252
      %p254 = scmp.ne.s32.totalorder %s245, %s246
      %p255 = scmp.eq.s32.totalorder %s25, 0
      %p256 = por %p254, %p255
      %p257 = scmp.ne.s32.totalorder %s245, %s246
      %p258 = scmp.eq.s32.totalorder %s26, 1
      %p259 = por %p257, %p258
      %p261 = scmp.ne.s32.totalorder %s246, %s260
      %p262 = scmp.eq.s32.totalorder %s26, 0
      %p263 = por %p261, %p262
      %s264 = ssub.s32 %s20, %s27
      %p265 = scmp.eq.s32.totalorder %s264, 0
      %s267 = sadd.s32 %s266, 1
      %s268 = scalar_select %p265, %s266, %s267
      %p271 = pneg %p265
      %p272 = scmp.eq.s32.totalorder %s20, 1
      %p273 = por %p271, %p272
      %p274 = scmp.ne.s32.totalorder %s266, %s269
      %p275 = scmp.eq.s32.totalorder %s20, 0
      %p276 = por %p274, %p275
      %p277 = scmp.ne.s32.totalorder %s266, %s269
      %p278 = scmp.eq.s32.totalorder %s25, 1
      %p279 = por %p277, %p278
      %p280 = scmp.ne.s32.totalorder %s269, %s270
      %p281 = scmp.eq.s32.totalorder %s25, 0
      %p282 = por %p280, %p281
      %p283 = scmp.ne.s32.totalorder %s269, %s270
      %p284 = scmp.eq.s32.totalorder %s26, 1
      %p285 = por %p283, %p284
      %p287 = scmp.ne.s32.totalorder %s270, %s286
      %p288 = scmp.eq.s32.totalorder %s26, 0
      %p289 = por %p287, %p288
      %p290 = scmp.le.s32.totalorder 1, %s20
      %p291 = scmp.lt.s32.totalorder %s20, 3
      %p292 = pnand %p290, %p291
      %p293 = pneg %p292
      // Predicated region
      $region9: #{splat_block_pallas.1} parent=5 // pred_check
        _
      $region10: #{splat_block_pallas.1} parent=5 // pred_check_branch
        %295 = sbr.rel (%p292) target = $region12
      $region11: #{splat_block_pallas.1} parent=5 // pred_region
        %s296 = ssub.s32 %s20, 1
        // Predicated region
        $region13: #{splat_block_pallas.1} parent=11 // pred_check
          %p297 = pneg %p67
        $region14: #{splat_block_pallas.1} parent=11 // pred_check_branch
          %299 = sbr.rel (%p297) target = $region16
        $region15: #{splat_block_pallas.1} parent=11 // pred_region
          _
        $region16: #{splat_block_pallas.1} parent=11 // pred_fallthru
          _
        // Predicated region
        $region17: #{splat_block_pallas.1} parent=11 // pred_check
          %p300 = pneg %p88
        $region18: #{splat_block_pallas.1} parent=11 // pred_check_branch
          %302 = sbr.rel (%p300) target = $region20
        $region19: #{splat_block_pallas.1} parent=11 // pred_region
          _
        $region20: #{splat_block_pallas.1} parent=11 // pred_fallthru
          _
        // Predicated region
        $region21: #{splat_block_pallas.1} parent=11 // pred_check
          %p303 = pneg %p109
        $region22: #{splat_block_pallas.1} parent=11 // pred_check_branch
          %305 = sbr.rel (%p303) target = $region24
        $region23: #{splat_block_pallas.1} parent=11 // pred_region
          _
        $region24: #{splat_block_pallas.1} parent=11 // pred_fallthru
          _
        // Predicated region
        $region25: #{splat_block_pallas.1} parent=11 // pred_check
          %p306 = pneg %p130
        $region26: #{splat_block_pallas.1} parent=11 // pred_check_branch
          %308 = sbr.rel (%p306) target = $region28
        $region27: #{splat_block_pallas.1} parent=11 // pred_region
          _
        $region28: #{splat_block_pallas.1} parent=11 // pred_fallthru
          _
        // Predicated region
        $region29: #{splat_block_pallas.1} parent=11 // pred_check
          %p309 = pneg %p151
        $region30: #{splat_block_pallas.1} parent=11 // pred_check_branch
          %311 = sbr.rel (%p309) target = $region32
        $region31: #{splat_block_pallas.1} parent=11 // pred_region
          _
        $region32: #{splat_block_pallas.1} parent=11 // pred_fallthru
          _
        // Predicated region
        $region33: #{splat_block_pallas.1} parent=11 // pred_check
          %p312 = pneg %p172
        $region34: #{splat_block_pallas.1} parent=11 // pred_check_branch
          %314 = sbr.rel (%p312) target = $region36
        $region35: #{splat_block_pallas.1} parent=11 // pred_region
          _
        $region36: #{splat_block_pallas.1} parent=11 // pred_fallthru
          _
        // Predicated region
        $region37: #{splat_block_pallas.1} parent=11 // pred_check
          %p315 = pneg %p193
        $region38: #{splat_block_pallas.1} parent=11 // pred_check_branch
          %317 = sbr.rel (%p315) target = $region40
        $region39: #{splat_block_pallas.1} parent=11 // pred_region
          _
        $region40: #{splat_block_pallas.1} parent=11 // pred_fallthru
          _
        // Predicated region
        $region41: #{splat_block_pallas.1} parent=11 // pred_check
          %p318 = pneg %p214
        $region42: #{splat_block_pallas.1} parent=11 // pred_check_branch
          %320 = sbr.rel (%p318) target = $region44
        $region43: #{splat_block_pallas.1} parent=11 // pred_region
          _
        $region44: #{splat_block_pallas.1} parent=11 // pred_fallthru
          _
        // Predicated region
        $region45: #{splat_block_pallas.1} parent=11 // pred_check
          %p321 = pneg %p235
        $region46: #{splat_block_pallas.1} parent=11 // pred_check_branch
          %323 = sbr.rel (%p321) target = $region48
        $region47: #{splat_block_pallas.1} parent=11 // pred_region
          _
        $region48: #{splat_block_pallas.1} parent=11 // pred_fallthru
          _
        // Predicated region
        $region49: #{splat_block_pallas.1} parent=11 // pred_check
          %p324 = pneg %p256
        $region50: #{splat_block_pallas.1} parent=11 // pred_check_branch
          %326 = sbr.rel (%p324) target = $region52
        $region51: #{splat_block_pallas.1} parent=11 // pred_region
          _
        $region52: #{splat_block_pallas.1} parent=11 // pred_fallthru
          _
      $region12: #{splat_block_pallas.1} parent=5 // pred_fallthru
        _
      %p327 = scmp.lt.s32.totalorder %s20, 2
      // Predicated region
      $region53: #{splat_block_pallas.1} parent=5 // pred_check
        %p328 = pneg %p327
      $region54: #{splat_block_pallas.1} parent=5 // pred_check_branch
        %330 = sbr.rel (%p328) target = $region56
      $region55: #{splat_block_pallas.1} parent=5 // pred_region
        // Predicated region
        $region57: #{splat_block_pallas.1} parent=55 // pred_check
          %p331 = pneg %p40
        $region58: #{splat_block_pallas.1} parent=55 // pred_check_branch
          %333 = sbr.rel (%p331) target = $region60
        $region59: #{splat_block_pallas.1} parent=55 // pred_region
          %p334 = scmp.lt.s32.totalorder %s20, 1
          %s335 = scalar_select %p334, %s20, 1
          %s336 = smul.addr %s335, 32
          %s337 = smul.addr %s336, 8
          %s338 = scalar_lea.vmem %s0, %s337
        $region60: #{splat_block_pallas.1} parent=55 // pred_fallthru
          _
      $region56: #{splat_block_pallas.1} parent=5 // pred_fallthru
        _
      %p339 = scmp.le.s32.totalorder 1, %s20
      %p340 = scmp.lt.s32.totalorder %s20, 3
      %p341 = pnand %p339, %p340
      %p342 = pneg %p341
      // Predicated region
      $region61: #{splat_block_pallas.1} parent=5 // pred_check
        _
      $region62: #{splat_block_pallas.1} parent=5 // pred_check_branch
        %344 = sbr.rel (%p341) target = $region64
      $region63: #{splat_block_pallas.1} parent=5 // pred_region
        %s345 = ssub.s32 %s20, 1
        %p346 = scmp.lt.s32.totalorder %s25, 1
        %s347 = scalar_select %p346, %s25, 1
        %s348 = smul.addr %s347, 32
        %s349 = smul.addr %s348, 8
        %s350 = scalar_lea.vmem %s0, %s349
        %p351 = pneg %p46
        %p352 = pneg %p43
        %p353 = pneg %p67
        %p354 = pneg %p64
        %p355 = pneg %p88
        %p356 = pneg %p85
        %p357 = pneg %p109
        %p358 = pneg %p106
        %p359 = pneg %p130
        %p360 = pneg %p127
        %p361 = pneg %p151
        %p362 = pneg %p148
        %p363 = pneg %p172
        %p364 = pneg %p169
        %p365 = pneg %p193
        %p366 = pneg %p190
        %p367 = pneg %p214
        %p368 = pneg %p211
        %p369 = pneg %p235
        %p370 = pneg %p232
        %p371 = pneg %p256
        %p372 = pneg %p253
        %p373 = pneg %p282
        %p374 = pneg %p279
        %s375 = sand.u32 %s269, 1
        %s376 = scalar_lea.sflag [#allocation4], %s375
        %s377 = sand.u32 %s269, 1
        %s378 = smul.addr %s377, 256
        %s379 = scalar_lea.vmem [#allocation3], %s378
        %p380 = scmp.lt.s32.totalorder %s25, 1
        %s381 = scalar_select %p380, %s25, 1
        %s382 = smul.addr %s381, 32
        %s383 = smul.addr %s382, 8
        %s384 = scalar_lea.vmem %s0, %s383
        %v385 = vld [vmem:[%s384] sm:$0xff]
        %v386 = vld [vmem:[%s384 + $0x8] sm:$0xff]
        %v387 = vld [vmem:[%s384 + $0x10] sm:$0xff]
        %v388 = vld [vmem:[%s384 + $0x18] sm:$0xff]
        %v389 = vld [vmem:[%s384 + $0x20] sm:$0xff]
        %v390 = vld [vmem:[%s384 + $0x28] sm:$0xff]
        %v391 = vld [vmem:[%s384 + $0x30] sm:$0xff]
        %v392 = vld [vmem:[%s384 + $0x38] sm:$0xff]
        %v393 = vld [vmem:[%s384 + $0x40] sm:$0xff]
        %v394 = vld [vmem:[%s384 + $0x48] sm:$0xff]
        %v395 = vld [vmem:[%s384 + $0x50] sm:$0xff]
        %v396 = vld [vmem:[%s384 + $0x58] sm:$0xff]
        %v397 = vld [vmem:[%s384 + $0x60] sm:$0xff]
        %v398 = vld [vmem:[%s384 + $0x68] sm:$0xff]
        %v399 = vld [vmem:[%s384 + $0x70] sm:$0xff]
        %v400 = vld [vmem:[%s384 + $0x78] sm:$0xff]
        %v401 = vld [vmem:[%s384 + $0x80] sm:$0xff]
        %v402 = vld [vmem:[%s384 + $0x88] sm:$0xff]
        %v403 = vld [vmem:[%s384 + $0x90] sm:$0xff]
        %v404 = vld [vmem:[%s384 + $0x98] sm:$0xff]
        %v405 = vld [vmem:[%s384 + $0xa0] sm:$0xff]
        %v406 = vld [vmem:[%s384 + $0xa8] sm:$0xff]
        %v407 = vld [vmem:[%s384 + $0xb0] sm:$0xff]
        %v408 = vld [vmem:[%s384 + $0xb8] sm:$0xff]
        %v409 = vld [vmem:[%s384 + $0xc0] sm:$0xff]
        %v410 = vld [vmem:[%s384 + $0xc8] sm:$0xff]
        %v411 = vld [vmem:[%s384 + $0xd0] sm:$0xff]
        %v412 = vld [vmem:[%s384 + $0xd8] sm:$0xff]
        %v413 = vld [vmem:[%s384 + $0xe0] sm:$0xff]
        %v414 = vld [vmem:[%s384 + $0xe8] sm:$0xff]
        %v415 = vld [vmem:[%s384 + $0xf0] sm:$0xff]
        %v416 = vld [vmem:[%s384 + $0xf8] sm:$0xff]
        %v417 = vld [vmem:[%s1] sm:$0xff]
        %v418 = vld [vmem:[%s1 + $0x8] sm:$0xff]
        %v419 = vld [vmem:[%s1 + $0x10] sm:$0xff]
        %v420 = vld [vmem:[%s1 + $0x18] sm:$0xff]
        %v421 = vld [vmem:[%s1 + $0x20] sm:$0xff]
        %v422 = vld [vmem:[%s1 + $0x28] sm:$0xff]
        %v423 = vld [vmem:[%s1 + $0x30] sm:$0xff]
        %v424 = vld [vmem:[%s1 + $0x38] sm:$0xff]
        %v425 = vld [vmem:[%s1 + $0x40] sm:$0xff]
        %v426 = vld [vmem:[%s1 + $0x48] sm:$0xff]
        %v427 = vld [vmem:[%s1 + $0x50] sm:$0xff]
        %v428 = vld [vmem:[%s1 + $0x58] sm:$0xff]
        %v429 = vld [vmem:[%s1 + $0x60] sm:$0xff]
        %v430 = vld [vmem:[%s1 + $0x68] sm:$0xff]
        %v431 = vld [vmem:[%s1 + $0x70] sm:$0xff]
        %v432 = vld [vmem:[%s1 + $0x78] sm:$0xff]
        %433 = vmatprep.subr.mxu0 0.0
        %434 = vmatpush1.msra.mxu0 %v417
        %435 = vmatprep.subr.mxu0 0.0
        %436 = vmatpush1.msra.mxu0 %v418
        %437 = vmatprep.subr.mxu0 0.0
        %438 = vmatpush1.msra.mxu0 %v419
        %439 = vmatprep.subr.mxu0 0.0
        %440 = vmatpush1.msra.mxu0 %v420
        %441 = vmatprep.subr.mxu0 0.0
        %442 = vmatpush1.msra.mxu0 %v421
        %443 = vmatprep.subr.mxu0 0.0
        %444 = vmatpush1.msra.mxu0 %v422
        %445 = vmatprep.subr.mxu0 0.0
        %446 = vmatpush1.msra.mxu0 %v423
        %447 = vmatprep.subr.mxu0 0.0
        %448 = vmatpush1.msra.mxu0 %v424
        %449 = vmatprep.subr.mxu0 0.0
        %450 = vmatpush1.msra.mxu0 %v425
        %451 = vmatprep.subr.mxu0 0.0
        %452 = vmatpush1.msra.mxu0 %v426
        %453 = vmatprep.subr.mxu0 0.0
        %454 = vmatpush1.msra.mxu0 %v427
        %455 = vmatprep.subr.mxu0 0.0
        %456 = vmatpush1.msra.mxu0 %v428
        %457 = vmatprep.subr.mxu0 0.0
        %458 = vmatpush1.msra.mxu0 %v429
        %459 = vmatprep.subr.mxu0 0.0
        %460 = vmatpush1.msra.mxu0 %v430
        %461 = vmatprep.subr.mxu0 0.0
        %462 = vmatpush1.msra.mxu0 %v431
        %463 = vmatprep.subr.mxu0 0.0
        %464 = vmatpush1.msra.mxu0 %v432
        %465 = vmatprep.subr.mxu0 0.0
        %466 = vmatpush1.msra.mxu0 0.0
        %467 = vmatprep.subr.mxu0 0.0
        %468 = vmatpush1.msra.mxu0 0.0
        %469 = vmatprep.subr.mxu0 0.0
        %470 = vmatpush1.msra.mxu0 0.0
        %471 = vmatprep.subr.mxu0 0.0
        %472 = vmatpush1.msra.mxu0 0.0
        %473 = vmatprep.subr.mxu0 0.0
        %474 = vmatpush1.msra.mxu0 0.0
        %475 = vmatprep.subr.mxu0 0.0
        %476 = vmatpush1.msra.mxu0 0.0
        %477 = vmatprep.subr.mxu0 0.0
        %478 = vmatpush1.msra.mxu0 0.0
        %479 = vmatprep.subr.mxu0 0.0
        %480 = vmatpush1.msra.mxu0 0.0
        %481 = vmatprep.subr.mxu0 0.0
        %482 = vmatpush1.msra.mxu0 0.0
        %483 = vmatprep.subr.mxu0 0.0
        %484 = vmatpush1.msra.mxu0 0.0
        %485 = vmatprep.subr.mxu0 0.0
        %486 = vmatpush1.msra.mxu0 0.0
        %487 = vmatprep.subr.mxu0 0.0
        %488 = vmatpush1.msra.mxu0 0.0
        %489 = vmatprep.subr.mxu0 0.0
        %490 = vmatpush1.msra.mxu0 0.0
        %491 = vmatprep.subr.mxu0 0.0
        %492 = vmatpush1.msra.mxu0 0.0
        %493 = vmatprep.subr.mxu0 0.0
        %494 = vmatpush1.msra.mxu0 0.0
        %495 = vmatprep.subr.mxu0 0.0
        %496 = vmatpush1.msra.mxu0 0.0
        %497 = vmatprep.mubr.f32.mxu0 0.0
        %498 = vmatmul.mubr.f32.gmra.mrb[0].mxu0 %v385
        %v499 = vpop.f32.mrb[0].mxu0
        %v500 = vadd.f32 0.0, %v499
        %v501 = vpop.f32.mrb[0].mxu0
        %502 = vmatprep.mubr.f32.mxu0 0.0
        %503 = vmatmul.mubr.f32.gmra.mrb[0].mxu0 %v386
        %v504 = vpop.f32.mrb[0].mxu0
        %v505 = vadd.f32 0.0, %v504
        %v506 = vpop.f32.mrb[0].mxu0
        %507 = vmatprep.mubr.f32.mxu0 0.0
        %508 = vmatmul.mubr.f32.gmra.mrb[0].mxu0 %v387
        %v509 = vpop.f32.mrb[0].mxu0
        %v510 = vadd.f32 0.0, %v509
        %v511 = vpop.f32.mrb[0].mxu0
        %512 = vmatprep.mubr.f32.mxu0 0.0
        %513 = vmatmul.mubr.f32.gmra.mrb[0].mxu0 %v388
        %v514 = vpop.f32.mrb[0].mxu0
        %v515 = vadd.f32 0.0, %v514
        %v516 = vpop.f32.mrb[0].mxu0
        %517 = vmatprep.mubr.f32.mxu0 0.0
        %518 = vmatmul.mubr.f32.gmra.mrb[0].mxu0 %v389
        %v519 = vpop.f32.mrb[0].mxu0
        %v520 = vadd.f32 0.0, %v519
        %v521 = vpop.f32.mrb[0].mxu0
        %522 = vmatprep.mubr.f32.mxu0 0.0
        %523 = vmatmul.mubr.f32.gmra.mrb[0].mxu0 %v390
        %v524 = vpop.f32.mrb[0].mxu0
        %v525 = vadd.f32 0.0, %v524
        %v526 = vpop.f32.mrb[0].mxu0
        %527 = vmatprep.mubr.f32.mxu0 0.0
        %528 = vmatmul.mubr.f32.gmra.mrb[0].mxu0 %v391
        %v529 = vpop.f32.mrb[0].mxu0
        %v530 = vadd.f32 0.0, %v529
        %v531 = vpop.f32.mrb[0].mxu0
        %532 = vmatprep.mubr.f32.mxu0 0.0
        %533 = vmatmul.mubr.f32.gmra.mrb[0].mxu0 %v392
        %v534 = vpop.f32.mrb[0].mxu0
        %v535 = vadd.f32 0.0, %v534
        %v536 = vpop.f32.mrb[0].mxu0
        %537 = vmatprep.mubr.f32.mxu0 0.0
        %538 = vmatmul.mubr.f32.gmra.mrb[0].mxu0 %v393
        %v539 = vpop.f32.mrb[0].mxu0
        %v540 = vadd.f32 0.0, %v539
        %v541 = vpop.f32.mrb[0].mxu0
        %542 = vmatprep.mubr.f32.mxu0 0.0
        %543 = vmatmul.mubr.f32.gmra.mrb[0].mxu0 %v394
        %v544 = vpop.f32.mrb[0].mxu0
        %v545 = vadd.f32 0.0, %v544
        %v546 = vpop.f32.mrb[0].mxu0
        %547 = vmatprep.mubr.f32.mxu0 0.0
        %548 = vmatmul.mubr.f32.gmra.mrb[0].mxu0 %v395
        %v549 = vpop.f32.mrb[0].mxu0
        %v550 = vadd.f32 0.0, %v549
        %v551 = vpop.f32.mrb[0].mxu0
        %552 = vmatprep.mubr.f32.mxu0 0.0
        %553 = vmatmul.mubr.f32.gmra.mrb[0].mxu0 %v396
        %v554 = vpop.f32.mrb[0].mxu0
        %v555 = vadd.f32 0.0, %v554
        %v556 = vpop.f32.mrb[0].mxu0
        %557 = vmatprep.mubr.f32.mxu0 0.0
        %558 = vmatmul.mubr.f32.gmra.mrb[0].mxu0 %v397
        %v559 = vpop.f32.mrb[0].mxu0
        %v560 = vadd.f32 0.0, %v559
        %v561 = vpop.f32.mrb[0].mxu0
        %562 = vmatprep.mubr.f32.mxu0 0.0
        %563 = vmatmul.mubr.f32.gmra.mrb[0].mxu0 %v398
        %v564 = vpop.f32.mrb[0].mxu0
        %v565 = vadd.f32 0.0, %v564
        %v566 = vpop.f32.mrb[0].mxu0
        %567 = vmatprep.mubr.f32.mxu0 0.0
        %568 = vmatmul.mubr.f32.gmra.mrb[0].mxu0 %v399
        %v569 = vpop.f32.mrb[0].mxu0
        %v570 = vadd.f32 0.0, %v569
        %v571 = vpop.f32.mrb[0].mxu0
        %572 = vmatprep.mubr.f32.mxu0 0.0
        %573 = vmatmul.mubr.f32.gmra.mrb[0].mxu0 %v400
        %v574 = vpop.f32.mrb[0].mxu0
        %v575 = vadd.f32 0.0, %v574
        %v576 = vpop.f32.mrb[0].mxu0
        %577 = vmatprep.mubr.f32.mxu0 0.0
        %578 = vmatmul.mubr.f32.gmra.mrb[0].mxu0 %v401
        %v579 = vpop.f32.mrb[0].mxu0
        %v580 = vadd.f32 0.0, %v579
        %v581 = vpop.f32.mrb[0].mxu0
        %582 = vmatprep.mubr.f32.mxu0 0.0
        %583 = vmatmul.mubr.f32.gmra.mrb[0].mxu0 %v402
        %v584 = vpop.f32.mrb[0].mxu0
        %v585 = vadd.f32 0.0, %v584
        %v586 = vpop.f32.mrb[0].mxu0
        %587 = vmatprep.mubr.f32.mxu0 0.0
        %588 = vmatmul.mubr.f32.gmra.mrb[0].mxu0 %v403
        %v589 = vpop.f32.mrb[0].mxu0
        %v590 = vadd.f32 0.0, %v589
        %v591 = vpop.f32.mrb[0].mxu0
        %592 = vmatprep.mubr.f32.mxu0 0.0
        %593 = vmatmul.mubr.f32.gmra.mrb[0].mxu0 %v404
        %v594 = vpop.f32.mrb[0].mxu0
        %v595 = vadd.f32 0.0, %v594
        %v596 = vpop.f32.mrb[0].mxu0
        %597 = vmatprep.mubr.f32.mxu0 0.0
        %598 = vmatmul.mubr.f32.gmra.mrb[0].mxu0 %v405
        %v599 = vpop.f32.mrb[0].mxu0
        %v600 = vadd.f32 0.0, %v599
        %v601 = vpop.f32.mrb[0].mxu0
        %602 = vmatprep.mubr.f32.mxu0 0.0
        %603 = vmatmul.mubr.f32.gmra.mrb[0].mxu0 %v406
        %v604 = vpop.f32.mrb[0].mxu0
        %v605 = vadd.f32 0.0, %v604
        %v606 = vpop.f32.mrb[0].mxu0
        %607 = vmatprep.mubr.f32.mxu0 0.0
        %608 = vmatmul.mubr.f32.gmra.mrb[0].mxu0 %v407
        %v609 = vpop.f32.mrb[0].mxu0
        %v610 = vadd.f32 0.0, %v609
        %v611 = vpop.f32.mrb[0].mxu0
        %612 = vmatprep.mubr.f32.mxu0 0.0
        %613 = vmatmul.mubr.f32.gmra.mrb[0].mxu0 %v408
        %v614 = vpop.f32.mrb[0].mxu0
        %v615 = vadd.f32 0.0, %v614
        %v616 = vpop.f32.mrb[0].mxu0
        %617 = vmatprep.mubr.f32.mxu0 0.0
        %618 = vmatmul.mubr.f32.gmra.mrb[0].mxu0 %v409
        %v619 = vpop.f32.mrb[0].mxu0
        %v620 = vadd.f32 0.0, %v619
        %v621 = vpop.f32.mrb[0].mxu0
        %622 = vmatprep.mubr.f32.mxu0 0.0
        %623 = vmatmul.mubr.f32.gmra.mrb[0].mxu0 %v410
        %v624 = vpop.f32.mrb[0].mxu0
        %v625 = vadd.f32 0.0, %v624
        %v626 = vpop.f32.mrb[0].mxu0
        %627 = vmatprep.mubr.f32.mxu0 0.0
        %628 = vmatmul.mubr.f32.gmra.mrb[0].mxu0 %v411
        %v629 = vpop.f32.mrb[0].mxu0
        %v630 = vadd.f32 0.0, %v629
        %v631 = vpop.f32.mrb[0].mxu0
        %632 = vmatprep.mubr.f32.mxu0 0.0
        %633 = vmatmul.mubr.f32.gmra.mrb[0].mxu0 %v412
        %v634 = vpop.f32.mrb[0].mxu0
        %v635 = vadd.f32 0.0, %v634
        %v636 = vpop.f32.mrb[0].mxu0
        %637 = vmatprep.mubr.f32.mxu0 0.0
        %638 = vmatmul.mubr.f32.gmra.mrb[0].mxu0 %v413
        %v639 = vpop.f32.mrb[0].mxu0
        %v640 = vadd.f32 0.0, %v639
        %v641 = vpop.f32.mrb[0].mxu0
        %642 = vmatprep.mubr.f32.mxu0 0.0
        %643 = vmatmul.mubr.f32.gmra.mrb[0].mxu0 %v414
        %v644 = vpop.f32.mrb[0].mxu0
        %v645 = vadd.f32 0.0, %v644
        %v646 = vpop.f32.mrb[0].mxu0
        %647 = vmatprep.mubr.f32.mxu0 0.0
        %648 = vmatmul.mubr.f32.gmra.mrb[0].mxu0 %v415
        %v649 = vpop.f32.mrb[0].mxu0
        %v650 = vadd.f32 0.0, %v649
        %v651 = vpop.f32.mrb[0].mxu0
        %652 = vmatprep.mubr.f32.mxu0 0.0
        %653 = vmatmul.mubr.f32.gmra.mrb[0].mxu0 %v416
        %v654 = vpop.f32.mrb[0].mxu0
        %v655 = vadd.f32 0.0, %v654
        %v656 = vpop.f32.mrb[0].mxu0
        %657 = vdwg.mxu0
        %v658 = vmax.f32 %v500, 0.0
        %v659 = vmax.f32 %v505, 0.0
        %v660 = vmax.f32 %v510, 0.0
        %v661 = vmax.f32 %v515, 0.0
        %v662 = vmax.f32 %v520, 0.0
        %v663 = vmax.f32 %v525, 0.0
        %v664 = vmax.f32 %v530, 0.0
        %v665 = vmax.f32 %v535, 0.0
        %v666 = vmax.f32 %v540, 0.0
        %v667 = vmax.f32 %v545, 0.0
        %v668 = vmax.f32 %v550, 0.0
        %v669 = vmax.f32 %v555, 0.0
        %v670 = vmax.f32 %v560, 0.0
        %v671 = vmax.f32 %v565, 0.0
        %v672 = vmax.f32 %v570, 0.0
        %v673 = vmax.f32 %v575, 0.0
        %v674 = vmax.f32 %v580, 0.0
        %v675 = vmax.f32 %v585, 0.0
        %v676 = vmax.f32 %v590, 0.0
        %v677 = vmax.f32 %v595, 0.0
        %v678 = vmax.f32 %v600, 0.0
        %v679 = vmax.f32 %v605, 0.0
        %v680 = vmax.f32 %v610, 0.0
        %v681 = vmax.f32 %v615, 0.0
        %v682 = vmax.f32 %v620, 0.0
        %v683 = vmax.f32 %v625, 0.0
        %v684 = vmax.f32 %v630, 0.0
        %v685 = vmax.f32 %v635, 0.0
        %v686 = vmax.f32 %v640, 0.0
        %v687 = vmax.f32 %v645, 0.0
        %v688 = vmax.f32 %v650, 0.0
        %v689 = vmax.f32 %v655, 0.0
        %vm690 = vcmask 523264
        %691 = vst.msk [vmem:[#allocation2] sm:$0xff] %vm690, 0.0
        %692 = vst.msk [vmem:[#allocation2 + $0x8] sm:$0xff] %vm690, 0.0
        %693 = vst.msk [vmem:[#allocation2 + $0x10] sm:$0xff] %vm690, 0.0
        %694 = vst.msk [vmem:[#allocation2 + $0x118] sm:$0xff] %vm690, 0.0
        %695 = vst.msk [vmem:[#allocation2 + $0x120] sm:$0xff] %vm690, 0.0
        %696 = vst.msk [vmem:[#allocation2 + $0x128] sm:$0xff] %vm690, 0.0
        %697 = vst.msk [vmem:[#allocation2 + $0x18] sm:$0xff] %vm690, %v658
        %698 = vst.msk [vmem:[#allocation2 + $0x20] sm:$0xff] %vm690, %v659
        %699 = vst.msk [vmem:[#allocation2 + $0x28] sm:$0xff] %vm690, %v660
        %700 = vst.msk [vmem:[#allocation2 + $0x30] sm:$0xff] %vm690, %v661
        %701 = vst.msk [vmem:[#allocation2 + $0x38] sm:$0xff] %vm690, %v662
        %702 = vst.msk [vmem:[#allocation2 + $0x40] sm:$0xff] %vm690, %v663
        %703 = vst.msk [vmem:[#allocation2 + $0x48] sm:$0xff] %vm690, %v664
        %704 = vst.msk [vmem:[#allocation2 + $0x50] sm:$0xff] %vm690, %v665
        %705 = vst.msk [vmem:[#allocation2 + $0x58] sm:$0xff] %vm690, %v666
        %706 = vst.msk [vmem:[#allocation2 + $0x60] sm:$0xff] %vm690, %v667
        %707 = vst.msk [vmem:[#allocation2 + $0x68] sm:$0xff] %vm690, %v668
        %708 = vst.msk [vmem:[#allocation2 + $0x70] sm:$0xff] %vm690, %v669
        %709 = vst.msk [vmem:[#allocation2 + $0x78] sm:$0xff] %vm690, %v670
        %710 = vst.msk [vmem:[#allocation2 + $0x80] sm:$0xff] %vm690, %v671
        %711 = vst.msk [vmem:[#allocation2 + $0x88] sm:$0xff] %vm690, %v672
        %712 = vst.msk [vmem:[#allocation2 + $0x90] sm:$0xff] %vm690, %v673
        %713 = vst.msk [vmem:[#allocation2 + $0x98] sm:$0xff] %vm690, %v674
        %714 = vst.msk [vmem:[#allocation2 + $0xa0] sm:$0xff] %vm690, %v675
        %715 = vst.msk [vmem:[#allocation2 + $0xa8] sm:$0xff] %vm690, %v676
        %716 = vst.msk [vmem:[#allocation2 + $0xb0] sm:$0xff] %vm690, %v677
        %717 = vst.msk [vmem:[#allocation2 + $0xb8] sm:$0xff] %vm690, %v678
        %718 = vst.msk [vmem:[#allocation2 + $0xc0] sm:$0xff] %vm690, %v679
        %719 = vst.msk [vmem:[#allocation2 + $0xc8] sm:$0xff] %vm690, %v680
        %720 = vst.msk [vmem:[#allocation2 + $0xd0] sm:$0xff] %vm690, %v681
        %721 = vst.msk [vmem:[#allocation2 + $0xd8] sm:$0xff] %vm690, %v682
        %722 = vst.msk [vmem:[#allocation2 + $0xe0] sm:$0xff] %vm690, %v683
        %723 = vst.msk [vmem:[#allocation2 + $0xe8] sm:$0xff] %vm690, %v684
        %724 = vst.msk [vmem:[#allocation2 + $0xf0] sm:$0xff] %vm690, %v685
        %725 = vst.msk [vmem:[#allocation2 + $0xf8] sm:$0xff] %vm690, %v686
        %726 = vst.msk [vmem:[#allocation2 + $0x100] sm:$0xff] %vm690, %v687
        %727 = vst.msk [vmem:[#allocation2 + $0x108] sm:$0xff] %vm690, %v688
        %728 = vst.msk [vmem:[#allocation2 + $0x110] sm:$0xff] %vm690, %v689
        %v729 = vld [vmem:[%s9] sm:$0xff]
        %v730 = vld [vmem:[%s9 + $0x8] sm:$0xff]
        %v731 = vld [vmem:[%s9 + $0x10] sm:$0xff]
        %v732 = vld [vmem:[%s9 + $0x18] sm:$0xff]
        %v733 = vld [vmem:[%s9 + $0x20] sm:$0xff]
        %v734 = vld [vmem:[%s9 + $0x28] sm:$0xff]
        %v735 = vld [vmem:[%s9 + $0x30] sm:$0xff]
        %v736 = vld [vmem:[%s9 + $0x38] sm:$0xff]
        %v737 = vld [vmem:[%s9 + $0x40] sm:$0xff]
        %v738 = vld [vmem:[%s9 + $0x48] sm:$0xff]
        %v739 = vld [vmem:[%s9 + $0x50] sm:$0xff]
        %v740 = vld [vmem:[%s9 + $0x58] sm:$0xff]
        %v741 = vld [vmem:[%s9 + $0x60] sm:$0xff]
        %v742 = vld [vmem:[%s9 + $0x68] sm:$0xff]
        %v743 = vld [vmem:[%s9 + $0x70] sm:$0xff]
        %v744 = vld [vmem:[%s9 + $0x78] sm:$0xff]
        %v745 = vld [vmem:[%s9 + $0x80] sm:$0xff]
        %v746 = vld [vmem:[%s9 + $0x88] sm:$0xff]
        %v747 = vld [vmem:[%s9 + $0x90] sm:$0xff]
        %v748 = vld [vmem:[%s9 + $0x98] sm:$0xff]
        %v749 = vld [vmem:[%s9 + $0xa0] sm:$0xff]
        %v750 = vld [vmem:[%s9 + $0xa8] sm:$0xff]
        %v751 = vld [vmem:[%s9 + $0xb0] sm:$0xff]
        %v752 = vld [vmem:[%s9 + $0xb8] sm:$0xff]
        %v753 = vld [vmem:[%s9 + $0xc0] sm:$0xff]
        %v754 = vld [vmem:[%s9 + $0xc8] sm:$0xff]
        %v755 = vld [vmem:[%s9 + $0xd0] sm:$0xff]
        %v756 = vld [vmem:[%s9 + $0xd8] sm:$0xff]
        %v757 = vld [vmem:[%s9 + $0xe0] sm:$0xff]
        %v758 = vld [vmem:[%s9 + $0xe8] sm:$0xff]
        %v759 = vld [vmem:[%s9 + $0xf0] sm:$0xff]
        %v760 = vld [vmem:[%s9 + $0xf8] sm:$0xff]
        %v761 = vld [vmem:[%s10] sm:$0xff]
        %v762 = vld [vmem:[%s10 + $0x8] sm:$0xff]
        %v763 = vld [vmem:[%s10 + $0x10] sm:$0xff]
        %v764 = vld [vmem:[%s10 + $0x18] sm:$0xff]
        %v765 = vld [vmem:[%s10 + $0x20] sm:$0xff]
        %v766 = vld [vmem:[%s10 + $0x28] sm:$0xff]
        %v767 = vld [vmem:[%s10 + $0x30] sm:$0xff]
        %v768 = vld [vmem:[%s10 + $0x38] sm:$0xff]
        %v769 = vld [vmem:[%s10 + $0x40] sm:$0xff]
        %v770 = vld [vmem:[%s10 + $0x48] sm:$0xff]
        %v771 = vld [vmem:[%s10 + $0x50] sm:$0xff]
        %v772 = vld [vmem:[%s10 + $0x58] sm:$0xff]
        %v773 = vld [vmem:[%s10 + $0x60] sm:$0xff]
        %v774 = vld [vmem:[%s10 + $0x68] sm:$0xff]
        %v775 = vld [vmem:[%s10 + $0x70] sm:$0xff]
        %v776 = vld [vmem:[%s10 + $0x78] sm:$0xff]
        %v777 = vld [vmem:[%s10 + $0x80] sm:$0xff]
        %v778 = vld [vmem:[%s10 + $0x88] sm:$0xff]
        %v779 = vld [vmem:[%s10 + $0x90] sm:$0xff]
        %v780 = vld [vmem:[%s10 + $0x98] sm:$0xff]
        %v781 = vld [vmem:[%s10 + $0xa0] sm:$0xff]
        %v782 = vld [vmem:[%s10 + $0xa8] sm:$0xff]
        %v783 = vld [vmem:[%s10 + $0xb0] sm:$0xff]
        %v784 = vld [vmem:[%s10 + $0xb8] sm:$0xff]
        %v785 = vld [vmem:[%s10 + $0xc0] sm:$0xff]
        %v786 = vld [vmem:[%s10 + $0xc8] sm:$0xff]
        %v787 = vld [vmem:[%s10 + $0xd0] sm:$0xff]
        %v788 = vld [vmem:[%s10 + $0xd8] sm:$0xff]
        %v789 = vld [vmem:[%s10 + $0xe0] sm:$0xff]
        %v790 = vld [vmem:[%s10 + $0xe8] sm:$0xff]
        %v791 = vld [vmem:[%s10 + $0xf0] sm:$0xff]
        %v792 = vld [vmem:[%s10 + $0xf8] sm:$0xff]
        %v793 = vld [vmem:[#allocation2 + $0x7] sm:$0xff]
        %v794 = vld [vmem:[#allocation2 + $0xf] sm:$0xff]
        %v795 = vld [vmem:[#allocation2 + $0x17] sm:$0xff]
        %v796 = vld [vmem:[#allocation2 + $0x1f] sm:$0xff]
        %v797 = vld [vmem:[#allocation2 + $0x27] sm:$0xff]
        %v798 = vld [vmem:[#allocation2 + $0x2f] sm:$0xff]
        %v799 = vld [vmem:[#allocation2 + $0x37] sm:$0xff]
        %v800 = vld [vmem:[#allocation2 + $0x3f] sm:$0xff]
        %v801 = vld [vmem:[#allocation2 + $0x47] sm:$0xff]
        %v802 = vld [vmem:[#allocation2 + $0x4f] sm:$0xff]
        %v803 = vld [vmem:[#allocation2 + $0x57] sm:$0xff]
        %v804 = vld [vmem:[#allocation2 + $0x5f] sm:$0xff]
        %v805 = vld [vmem:[#allocation2 + $0x67] sm:$0xff]
        %v806 = vld [vmem:[#allocation2 + $0x6f] sm:$0xff]
        %v807 = vld [vmem:[#allocation2 + $0x77] sm:$0xff]
        %v808 = vld [vmem:[#allocation2 + $0x7f] sm:$0xff]
        %v809 = vld [vmem:[#allocation2 + $0x87] sm:$0xff]
        %v810 = vld [vmem:[#allocation2 + $0x8f] sm:$0xff]
        %v811 = vld [vmem:[#allocation2 + $0x97] sm:$0xff]
        %v812 = vld [vmem:[#allocation2 + $0x9f] sm:$0xff]
        %v813 = vld [vmem:[#allocation2 + $0xa7] sm:$0xff]
        %v814 = vld [vmem:[#allocation2 + $0xaf] sm:$0xff]
        %v815 = vld [vmem:[#allocation2 + $0xb7] sm:$0xff]
        %v816 = vld [vmem:[#allocation2 + $0xbf] sm:$0xff]
        %v817 = vld [vmem:[#allocation2 + $0xc7] sm:$0xff]
        %v818 = vld [vmem:[#allocation2 + $0xcf] sm:$0xff]
        %v819 = vld [vmem:[#allocation2 + $0xd7] sm:$0xff]
        %v820 = vld [vmem:[#allocation2 + $0xdf] sm:$0xff]
        %v821 = vld [vmem:[#allocation2 + $0xe7] sm:$0xff]
        %v822 = vld [vmem:[#allocation2 + $0xef] sm:$0xff]
        %v823 = vld [vmem:[#allocation2 + $0xf7] sm:$0xff]
        %v824 = vld [vmem:[#allocation2 + $0xff] sm:$0xff]
        %826 = vset.pattern.permute.xlu0 0
        %827 = vperm.xlu0 %826, %v729
        %v828 = vpop.permute.xlu0 %827
        %831 = vset.pattern.permute.xlu0 0
        %832 = vperm.xlu0 %831, %v730
        %v833 = vpop.permute.xlu0 %832
        %836 = vset.pattern.permute.xlu0 0
        %837 = vperm.xlu0 %836, %v731
        %v838 = vpop.permute.xlu0 %837
        %841 = vset.pattern.permute.xlu0 0
        %842 = vperm.xlu0 %841, %v732
        %v843 = vpop.permute.xlu0 %842
        %846 = vset.pattern.permute.xlu0 0
        %847 = vperm.xlu0 %846, %v733
        %v848 = vpop.permute.xlu0 %847
        %851 = vset.pattern.permute.xlu0 0
        %852 = vperm.xlu0 %851, %v734
        %v853 = vpop.permute.xlu0 %852
        %856 = vset.pattern.permute.xlu0 0
        %857 = vperm.xlu0 %856, %v735
        %v858 = vpop.permute.xlu0 %857
        %861 = vset.pattern.permute.xlu0 0
        %862 = vperm.xlu0 %861, %v736
        %v863 = vpop.permute.xlu0 %862
        %866 = vset.pattern.permute.xlu0 0
        %867 = vperm.xlu0 %866, %v737
        %v868 = vpop.permute.xlu0 %867
        %871 = vset.pattern.permute.xlu0 0
        %872 = vperm.xlu0 %871, %v738
        %v873 = vpop.permute.xlu0 %872
        %876 = vset.pattern.permute.xlu0 0
        %877 = vperm.xlu0 %876, %v739
        %v878 = vpop.permute.xlu0 %877
        %881 = vset.pattern.permute.xlu0 0
        %882 = vperm.xlu0 %881, %v740
        %v883 = vpop.permute.xlu0 %882
        %886 = vset.pattern.permute.xlu0 0
        %887 = vperm.xlu0 %886, %v741
        %v888 = vpop.permute.xlu0 %887
        %891 = vset.pattern.permute.xlu0 0
        %892 = vperm.xlu0 %891, %v742
        %v893 = vpop.permute.xlu0 %892
        %896 = vset.pattern.permute.xlu0 0
        %897 = vperm.xlu0 %896, %v743
        %v898 = vpop.permute.xlu0 %897
        %901 = vset.pattern.permute.xlu0 0
        %902 = vperm.xlu0 %901, %v744
        %v903 = vpop.permute.xlu0 %902
        %906 = vset.pattern.permute.xlu0 0
        %907 = vperm.xlu0 %906, %v745
        %v908 = vpop.permute.xlu0 %907
        %911 = vset.pattern.permute.xlu0 0
        %912 = vperm.xlu0 %911, %v746
        %v913 = vpop.permute.xlu0 %912
        %916 = vset.pattern.permute.xlu0 0
        %917 = vperm.xlu0 %916, %v747
        %v918 = vpop.permute.xlu0 %917
        %921 = vset.pattern.permute.xlu0 0
        %922 = vperm.xlu0 %921, %v748
        %v923 = vpop.permute.xlu0 %922
        %926 = vset.pattern.permute.xlu0 0
        %927 = vperm.xlu0 %926, %v749
        %v928 = vpop.permute.xlu0 %927
        %931 = vset.pattern.permute.xlu0 0
        %932 = vperm.xlu0 %931, %v750
        %v933 = vpop.permute.xlu0 %932
        %936 = vset.pattern.permute.xlu0 0
        %937 = vperm.xlu0 %936, %v751
        %v938 = vpop.permute.xlu0 %937
        %941 = vset.pattern.permute.xlu0 0
        %942 = vperm.xlu0 %941, %v752
        %v943 = vpop.permute.xlu0 %942
        %946 = vset.pattern.permute.xlu0 0
        %947 = vperm.xlu0 %946, %v753
        %v948 = vpop.permute.xlu0 %947
        %951 = vset.pattern.permute.xlu0 0
        %952 = vperm.xlu0 %951, %v754
        %v953 = vpop.permute.xlu0 %952
        %956 = vset.pattern.permute.xlu0 0
        %957 = vperm.xlu0 %956, %v755
        %v958 = vpop.permute.xlu0 %957
        %961 = vset.pattern.permute.xlu0 0
        %962 = vperm.xlu0 %961, %v756
        %v963 = vpop.permute.xlu0 %962
        %966 = vset.pattern.permute.xlu0 0
        %967 = vperm.xlu0 %966, %v757
        %v968 = vpop.permute.xlu0 %967
        %971 = vset.pattern.permute.xlu0 0
        %972 = vperm.xlu0 %971, %v758
        %v973 = vpop.permute.xlu0 %972
        %976 = vset.pattern.permute.xlu0 0
        %977 = vperm.xlu0 %976, %v759
        %v978 = vpop.permute.xlu0 %977
        %981 = vset.pattern.permute.xlu0 0
        %982 = vperm.xlu0 %981, %v760
        %v983 = vpop.permute.xlu0 %982
        %v985 = vmul.f32 %v793, %v828
        %v986 = vmul.f32 %v794, %v833
        %v987 = vmul.f32 %v795, %v838
        %v988 = vmul.f32 %v796, %v843
        %v989 = vmul.f32 %v797, %v848
        %v990 = vmul.f32 %v798, %v853
        %v991 = vmul.f32 %v799, %v858
        %v992 = vmul.f32 %v800, %v863
        %v993 = vmul.f32 %v801, %v868
        %v994 = vmul.f32 %v802, %v873
        %v995 = vmul.f32 %v803, %v878
        %v996 = vmul.f32 %v804, %v883
        %v997 = vmul.f32 %v805, %v888
        %v998 = vmul.f32 %v806, %v893
        %v999 = vmul.f32 %v807, %v898
        %v1000 = vmul.f32 %v808, %v903
        %v1001 = vmul.f32 %v809, %v908
        %v1002 = vmul.f32 %v810, %v913
        %v1003 = vmul.f32 %v811, %v918
        %v1004 = vmul.f32 %v812, %v923
        %v1005 = vmul.f32 %v813, %v928
        %v1006 = vmul.f32 %v814, %v933
        %v1007 = vmul.f32 %v815, %v938
        %v1008 = vmul.f32 %v816, %v943
        %v1009 = vmul.f32 %v817, %v948
        %v1010 = vmul.f32 %v818, %v953
        %v1011 = vmul.f32 %v819, %v958
        %v1012 = vmul.f32 %v820, %v963
        %v1013 = vmul.f32 %v821, %v968
        %v1014 = vmul.f32 %v822, %v973
        %v1015 = vmul.f32 %v823, %v978
        %v1016 = vmul.f32 %v824, %v983
        %v1017 = vld [vmem:[%s2] sm:$0xff]
        %v1018 = vld [vmem:[%s2 + $0x8] sm:$0xff]
        %v1019 = vld [vmem:[%s2 + $0x10] sm:$0xff]
        %v1020 = vld [vmem:[%s2 + $0x18] sm:$0xff]
        %v1021 = vld [vmem:[%s2 + $0x20] sm:$0xff]
        %v1022 = vld [vmem:[%s2 + $0x28] sm:$0xff]
        %v1023 = vld [vmem:[%s2 + $0x30] sm:$0xff]
        %v1024 = vld [vmem:[%s2 + $0x38] sm:$0xff]
        %v1025 = vld [vmem:[#allocation2 + $0x8] sm:$0xff]
        %v1026 = vld [vmem:[#allocation2 + $0x10] sm:$0xff]
        %v1027 = vld [vmem:[#allocation2 + $0x18] sm:$0xff]
        %v1028 = vld [vmem:[#allocation2 + $0x20] sm:$0xff]
        %v1029 = vld [vmem:[#allocation2 + $0x28] sm:$0xff]
        %v1030 = vld [vmem:[#allocation2 + $0x30] sm:$0xff]
        %v1031 = vld [vmem:[#allocation2 + $0x38] sm:$0xff]
        %v1032 = vld [vmem:[#allocation2 + $0x40] sm:$0xff]
        %v1033 = vld [vmem:[#allocation2 + $0x48] sm:$0xff]
        %v1034 = vld [vmem:[#allocation2 + $0x50] sm:$0xff]
        %v1035 = vld [vmem:[#allocation2 + $0x58] sm:$0xff]
        %v1036 = vld [vmem:[#allocation2 + $0x60] sm:$0xff]
        %v1037 = vld [vmem:[#allocation2 + $0x68] sm:$0xff]
        %v1038 = vld [vmem:[#allocation2 + $0x70] sm:$0xff]
        %v1039 = vld [vmem:[#allocation2 + $0x78] sm:$0xff]
        %v1040 = vld [vmem:[#allocation2 + $0x80] sm:$0xff]
        %v1041 = vld [vmem:[#allocation2 + $0x88] sm:$0xff]
        %v1042 = vld [vmem:[#allocation2 + $0x90] sm:$0xff]
        %v1043 = vld [vmem:[#allocation2 + $0x98] sm:$0xff]
        %v1044 = vld [vmem:[#allocation2 + $0xa0] sm:$0xff]
        %v1045 = vld [vmem:[#allocation2 + $0xa8] sm:$0xff]
        %v1046 = vld [vmem:[#allocation2 + $0xb0] sm:$0xff]
        %v1047 = vld [vmem:[#allocation2 + $0xb8] sm:$0xff]
        %v1048 = vld [vmem:[#allocation2 + $0xc0] sm:$0xff]
        %v1049 = vld [vmem:[#allocation2 + $0xc8] sm:$0xff]
        %v1050 = vld [vmem:[#allocation2 + $0xd0] sm:$0xff]
        %v1051 = vld [vmem:[#allocation2 + $0xd8] sm:$0xff]
        %v1052 = vld [vmem:[#allocation2 + $0xe0] sm:$0xff]
        %v1053 = vld [vmem:[#allocation2 + $0xe8] sm:$0xff]
        %v1054 = vld [vmem:[#allocation2 + $0xf0] sm:$0xff]
        %v1055 = vld [vmem:[#allocation2 + $0xf8] sm:$0xff]
        %v1056 = vld [vmem:[#allocation2 + $0x100] sm:$0xff]
        %s1057 = scalar_lea.vmem %s2, 64
        %v1058 = vld [vmem:[%s1057] sm:$0xff]
        %v1059 = vld [vmem:[%s1057 + $0x8] sm:$0xff]
        %v1060 = vld [vmem:[%s1057 + $0x10] sm:$0xff]
        %v1061 = vld [vmem:[%s1057 + $0x18] sm:$0xff]
        %v1062 = vld [vmem:[%s1057 + $0x20] sm:$0xff]
        %v1063 = vld [vmem:[%s1057 + $0x28] sm:$0xff]
        %v1064 = vld [vmem:[%s1057 + $0x30] sm:$0xff]
        %v1065 = vld [vmem:[%s1057 + $0x38] sm:$0xff]
        %v1067 = vsel %vm690, %v1025, 0
        %v1070 = vsel %vm690, %v1026, 0
        %v1073 = vsel %vm690, %v1027, 0
        %v1076 = vsel %vm690, %v1028, 0
        %v1079 = vsel %vm690, %v1029, 0
        %v1082 = vsel %vm690, %v1030, 0
        %v1085 = vsel %vm690, %v1031, 0
        %v1088 = vsel %vm690, %v1032, 0
        %v1091 = vsel %vm690, %v1033, 0
        %v1094 = vsel %vm690, %v1034, 0
        %v1097 = vsel %vm690, %v1035, 0
        %v1100 = vsel %vm690, %v1036, 0
        %v1103 = vsel %vm690, %v1037, 0
        %v1106 = vsel %vm690, %v1038, 0
        %v1109 = vsel %vm690, %v1039, 0
        %v1112 = vsel %vm690, %v1040, 0
        %v1115 = vsel %vm690, %v1041, 0
        %v1118 = vsel %vm690, %v1042, 0
        %v1121 = vsel %vm690, %v1043, 0
        %v1124 = vsel %vm690, %v1044, 0
        %v1127 = vsel %vm690, %v1045, 0
        %v1130 = vsel %vm690, %v1046, 0
        %v1133 = vsel %vm690, %v1047, 0
        %v1136 = vsel %vm690, %v1048, 0
        %v1139 = vsel %vm690, %v1049, 0
        %v1142 = vsel %vm690, %v1050, 0
        %v1145 = vsel %vm690, %v1051, 0
        %v1148 = vsel %vm690, %v1052, 0
        %v1151 = vsel %vm690, %v1053, 0
        %v1154 = vsel %vm690, %v1054, 0
        %v1157 = vsel %vm690, %v1055, 0
        %v1160 = vsel %vm690, %v1056, 0
        %1162 = vmatprep.subr.mxu0 0.0
        %1163 = vmatpush1.msra.mxu0 %v1058
        %1164 = vmatprep.subr.mxu0 0.0
        %1165 = vmatpush1.msra.mxu0 %v1059
        %1166 = vmatprep.subr.mxu0 0.0
        %1167 = vmatpush1.msra.mxu0 %v1060
        %1168 = vmatprep.subr.mxu0 0.0
        %1169 = vmatpush1.msra.mxu0 %v1061
        %1170 = vmatprep.subr.mxu0 0.0
        %1171 = vmatpush1.msra.mxu0 %v1062
        %1172 = vmatprep.subr.mxu0 0.0
        %1173 = vmatpush1.msra.mxu0 %v1063
        %1174 = vmatprep.subr.mxu0 0.0
        %1175 = vmatpush1.msra.mxu0 %v1064
        %1176 = vmatprep.subr.mxu0 0.0
        %1177 = vmatpush1.msra.mxu0 %v1065
        %1178 = vmatprep.subr.mxu0 0.0
        %1179 = vmatpush1.msra.mxu0 0.0
        %1180 = vmatprep.subr.mxu0 0.0
        %1181 = vmatpush1.msra.mxu0 0.0
        %1182 = vmatprep.subr.mxu0 0.0
        %1183 = vmatpush1.msra.mxu0 0.0
        %1184 = vmatprep.subr.mxu0 0.0
        %1185 = vmatpush1.msra.mxu0 0.0
        %1186 = vmatprep.subr.mxu0 0.0
        %1187 = vmatpush1.msra.mxu0 0.0
        %1188 = vmatprep.subr.mxu0 0.0
        %1189 = vmatpush1.msra.mxu0 0.0
        %1190 = vmatprep.subr.mxu0 0.0
        %1191 = vmatpush1.msra.mxu0 0.0
        %1192 = vmatprep.subr.mxu0 0.0
        %1193 = vmatpush1.msra.mxu0 0.0
        %1194 = vmatprep.subr.mxu0 0.0
        %1195 = vmatpush1.msra.mxu0 0.0
        %1196 = vmatprep.subr.mxu0 0.0
        %1197 = vmatpush1.msra.mxu0 0.0
        %1198 = vmatprep.subr.mxu0 0.0
        %1199 = vmatpush1.msra.mxu0 0.0
        %1200 = vmatprep.subr.mxu0 0.0
        %1201 = vmatpush1.msra.mxu0 0.0
        %1202 = vmatprep.subr.mxu0 0.0
        %1203 = vmatpush1.msra.mxu0 0.0
        %1204 = vmatprep.subr.mxu0 0.0
        %1205 = vmatpush1.msra.mxu0 0.0
        %1206 = vmatprep.subr.mxu0 0.0
        %1207 = vmatpush1.msra.mxu0 0.0
        %1208 = vmatprep.subr.mxu0 0.0
        %1209 = vmatpush1.msra.mxu0 0.0
        %1210 = vmatprep.subr.mxu0 0.0
        %1211 = vmatpush1.msra.mxu0 0.0
        %1212 = vmatprep.subr.mxu0 0.0
        %1213 = vmatpush1.msra.mxu0 0.0
        %1214 = vmatprep.subr.mxu0 0.0
        %1215 = vmatpush1.msra.mxu0 0.0
        %1216 = vmatprep.subr.mxu0 0.0
        %1217 = vmatpush1.msra.mxu0 0.0
        %1218 = vmatprep.subr.mxu0 0.0
        %1219 = vmatpush1.msra.mxu0 0.0
        %1220 = vmatprep.subr.mxu0 0.0
        %1221 = vmatpush1.msra.mxu0 0.0
        %1222 = vmatprep.subr.mxu0 0.0
        %1223 = vmatpush1.msra.mxu0 0.0
        %1224 = vmatprep.subr.mxu0 0.0
        %1225 = vmatpush1.msra.mxu0 0.0
        %1226 = vmatprep.mubr.f32.mxu0 0.0
        %1227 = vmatmul.mubr.f32.gmra.mrb[0].mxu0 %v1067
        %v1228 = vpop.f32.mrb[0].mxu0
        %v1229 = vadd.f32 0.0, %v1228
        %v1230 = vpop.f32.mrb[0].mxu0
        %1231 = vmatprep.mubr.f32.mxu0 0.0
        %1232 = vmatmul.mubr.f32.gmra.mrb[0].mxu0 %v1070
        %v1233 = vpop.f32.mrb[0].mxu0
        %v1234 = vadd.f32 0.0, %v1233
        %v1235 = vpop.f32.mrb[0].mxu0
        %1236 = vmatprep.mubr.f32.mxu0 0.0
        %1237 = vmatmul.mubr.f32.gmra.mrb[0].mxu0 %v1073
        %v1238 = vpop.f32.mrb[0].mxu0
        %v1239 = vadd.f32 0.0, %v1238
        %v1240 = vpop.f32.mrb[0].mxu0
        %1241 = vmatprep.mubr.f32.mxu0 0.0
        %1242 = vmatmul.mubr.f32.gmra.mrb[0].mxu0 %v1076
        %v1243 = vpop.f32.mrb[0].mxu0
        %v1244 = vadd.f32 0.0, %v1243
        %v1245 = vpop.f32.mrb[0].mxu0
        %1246 = vmatprep.mubr.f32.mxu0 0.0
        %1247 = vmatmul.mubr.f32.gmra.mrb[0].mxu0 %v1079
        %v1248 = vpop.f32.mrb[0].mxu0
        %v1249 = vadd.f32 0.0, %v1248
        %v1250 = vpop.f32.mrb[0].mxu0
        %1251 = vmatprep.mubr.f32.mxu0 0.0
        %1252 = vmatmul.mubr.f32.gmra.mrb[0].mxu0 %v1082
        %v1253 = vpop.f32.mrb[0].mxu0
        %v1254 = vadd.f32 0.0, %v1253
        %v1255 = vpop.f32.mrb[0].mxu0
        %1256 = vmatprep.mubr.f32.mxu0 0.0
        %1257 = vmatmul.mubr.f32.gmra.mrb[0].mxu0 %v1085
        %v1258 = vpop.f32.mrb[0].mxu0
        %v1259 = vadd.f32 0.0, %v1258
        %v1260 = vpop.f32.mrb[0].mxu0
        %1261 = vmatprep.mubr.f32.mxu0 0.0
        %1262 = vmatmul.mubr.f32.gmra.mrb[0].mxu0 %v1088
        %v1263 = vpop.f32.mrb[0].mxu0
        %v1264 = vadd.f32 0.0, %v1263
        %v1265 = vpop.f32.mrb[0].mxu0
        %1266 = vmatprep.mubr.f32.mxu0 0.0
        %1267 = vmatmul.mubr.f32.gmra.mrb[0].mxu0 %v1091
        %v1268 = vpop.f32.mrb[0].mxu0
        %v1269 = vadd.f32 0.0, %v1268
        %v1270 = vpop.f32.mrb[0].mxu0
        %1271 = vmatprep.mubr.f32.mxu0 0.0
        %1272 = vmatmul.mubr.f32.gmra.mrb[0].mxu0 %v1094
        %v1273 = vpop.f32.mrb[0].mxu0
        %v1274 = vadd.f32 0.0, %v1273
        %v1275 = vpop.f32.mrb[0].mxu0
        %1276 = vmatprep.mubr.f32.mxu0 0.0
        %1277 = vmatmul.mubr.f32.gmra.mrb[0].mxu0 %v1097
        %v1278 = vpop.f32.mrb[0].mxu0
        %v1279 = vadd.f32 0.0, %v1278
        %v1280 = vpop.f32.mrb[0].mxu0
        %1281 = vmatprep.mubr.f32.mxu0 0.0
        %1282 = vmatmul.mubr.f32.gmra.mrb[0].mxu0 %v1100
        %v1283 = vpop.f32.mrb[0].mxu0
        %v1284 = vadd.f32 0.0, %v1283
        %v1285 = vpop.f32.mrb[0].mxu0
        %1286 = vmatprep.mubr.f32.mxu0 0.0
        %1287 = vmatmul.mubr.f32.gmra.mrb[0].mxu0 %v1103
        %v1288 = vpop.f32.mrb[0].mxu0
        %v1289 = vadd.f32 0.0, %v1288
        %v1290 = vpop.f32.mrb[0].mxu0
        %1291 = vmatprep.mubr.f32.mxu0 0.0
        %1292 = vmatmul.mubr.f32.gmra.mrb[0].mxu0 %v1106
        %v1293 = vpop.f32.mrb[0].mxu0
        %v1294 = vadd.f32 0.0, %v1293
        %v1295 = vpop.f32.mrb[0].mxu0
        %1296 = vmatprep.mubr.f32.mxu0 0.0
        %1297 = vmatmul.mubr.f32.gmra.mrb[0].mxu0 %v1109
        %v1298 = vpop.f32.mrb[0].mxu0
        %v1299 = vadd.f32 0.0, %v1298
        %v1300 = vpop.f32.mrb[0].mxu0
        %1301 = vmatprep.mubr.f32.mxu0 0.0
        %1302 = vmatmul.mubr.f32.gmra.mrb[0].mxu0 %v1112
        %v1303 = vpop.f32.mrb[0].mxu0
        %v1304 = vadd.f32 0.0, %v1303
        %v1305 = vpop.f32.mrb[0].mxu0
        %1306 = vmatprep.mubr.f32.mxu0 0.0
        %1307 = vmatmul.mubr.f32.gmra.mrb[0].mxu0 %v1115
        %v1308 = vpop.f32.mrb[0].mxu0
        %v1309 = vadd.f32 0.0, %v1308
        %v1310 = vpop.f32.mrb[0].mxu0
        %1311 = vmatprep.mubr.f32.mxu0 0.0
        %1312 = vmatmul.mubr.f32.gmra.mrb[0].mxu0 %v1118
        %v1313 = vpop.f32.mrb[0].mxu0
        %v1314 = vadd.f32 0.0, %v1313
        %v1315 = vpop.f32.mrb[0].mxu0
        %1316 = vmatprep.mubr.f32.mxu0 0.0
        %1317 = vmatmul.mubr.f32.gmra.mrb[0].mxu0 %v1121
        %v1318 = vpop.f32.mrb[0].mxu0
        %v1319 = vadd.f32 0.0, %v1318
        %v1320 = vpop.f32.mrb[0].mxu0
        %1321 = vmatprep.mubr.f32.mxu0 0.0
        %1322 = vmatmul.mubr.f32.gmra.mrb[0].mxu0 %v1124
        %v1323 = vpop.f32.mrb[0].mxu0
        %v1324 = vadd.f32 0.0, %v1323
        %v1325 = vpop.f32.mrb[0].mxu0
        %1326 = vmatprep.mubr.f32.mxu0 0.0
        %1327 = vmatmul.mubr.f32.gmra.mrb[0].mxu0 %v1127
        %v1328 = vpop.f32.mrb[0].mxu0
        %v1329 = vadd.f32 0.0, %v1328
        %v1330 = vpop.f32.mrb[0].mxu0
        %1331 = vmatprep.mubr.f32.mxu0 0.0
        %1332 = vmatmul.mubr.f32.gmra.mrb[0].mxu0 %v1130
        %v1333 = vpop.f32.mrb[0].mxu0
        %v1334 = vadd.f32 0.0, %v1333
        %v1335 = vpop.f32.mrb[0].mxu0
        %1336 = vmatprep.mubr.f32.mxu0 0.0
        %1337 = vmatmul.mubr.f32.gmra.mrb[0].mxu0 %v1133
        %v1338 = vpop.f32.mrb[0].mxu0
        %v1339 = vadd.f32 0.0, %v1338
        %v1340 = vpop.f32.mrb[0].mxu0
        %1341 = vmatprep.mubr.f32.mxu0 0.0
        %1342 = vmatmul.mubr.f32.gmra.mrb[0].mxu0 %v1136
        %v1343 = vpop.f32.mrb[0].mxu0
        %v1344 = vadd.f32 0.0, %v1343
        %v1345 = vpop.f32.mrb[0].mxu0
        %1346 = vmatprep.mubr.f32.mxu0 0.0
        %1347 = vmatmul.mubr.f32.gmra.mrb[0].mxu0 %v1139
        %v1348 = vpop.f32.mrb[0].mxu0
        %v1349 = vadd.f32 0.0, %v1348
        %v1350 = vpop.f32.mrb[0].mxu0
        %1351 = vmatprep.mubr.f32.mxu0 0.0
        %1352 = vmatmul.mubr.f32.gmra.mrb[0].mxu0 %v1142
        %v1353 = vpop.f32.mrb[0].mxu0
        %v1354 = vadd.f32 0.0, %v1353
        %v1355 = vpop.f32.mrb[0].mxu0
        %1356 = vmatprep.mubr.f32.mxu0 0.0
        %1357 = vmatmul.mubr.f32.gmra.mrb[0].mxu0 %v1145
        %v1358 = vpop.f32.mrb[0].mxu0
        %v1359 = vadd.f32 0.0, %v1358
        %v1360 = vpop.f32.mrb[0].mxu0
        %1361 = vmatprep.mubr.f32.mxu0 0.0
        %1362 = vmatmul.mubr.f32.gmra.mrb[0].mxu0 %v1148
        %v1363 = vpop.f32.mrb[0].mxu0
        %v1364 = vadd.f32 0.0, %v1363
        %v1365 = vpop.f32.mrb[0].mxu0
        %1366 = vmatprep.mubr.f32.mxu0 0.0
        %1367 = vmatmul.mubr.f32.gmra.mrb[0].mxu0 %v1151
        %v1368 = vpop.f32.mrb[0].mxu0
        %v1369 = vadd.f32 0.0, %v1368
        %v1370 = vpop.f32.mrb[0].mxu0
        %1371 = vmatprep.mubr.f32.mxu0 0.0
        %1372 = vmatmul.mubr.f32.gmra.mrb[0].mxu0 %v1154
        %v1373 = vpop.f32.mrb[0].mxu0
        %v1374 = vadd.f32 0.0, %v1373
        %v1375 = vpop.f32.mrb[0].mxu0
        %1376 = vmatprep.mubr.f32.mxu0 0.0
        %1377 = vmatmul.mubr.f32.gmra.mrb[0].mxu0 %v1157
        %v1378 = vpop.f32.mrb[0].mxu0
        %v1379 = vadd.f32 0.0, %v1378
        %v1380 = vpop.f32.mrb[0].mxu0
        %1381 = vmatprep.mubr.f32.mxu0 0.0
        %1382 = vmatmul.mubr.f32.gmra.mrb[0].mxu0 %v1160
        %v1383 = vpop.f32.mrb[0].mxu0
        %v1384 = vadd.f32 0.0, %v1383
        %v1385 = vpop.f32.mrb[0].mxu0
        %1386 = vdwg.mxu0
        %v1388 = vsel %vm690, %v985, 0
        %v1391 = vsel %vm690, %v986, 0
        %v1394 = vsel %vm690, %v987, 0
        %v1397 = vsel %vm690, %v988, 0
        %v1400 = vsel %vm690, %v989, 0
        %v1403 = vsel %vm690, %v990, 0
        %v1406 = vsel %vm690, %v991, 0
        %v1409 = vsel %vm690, %v992, 0
        %v1412 = vsel %vm690, %v993, 0
        %v1415 = vsel %vm690, %v994, 0
        %v1418 = vsel %vm690, %v995, 0
        %v1421 = vsel %vm690, %v996, 0
        %v1424 = vsel %vm690, %v997, 0
        %v1427 = vsel %vm690, %v998, 0
        %v1430 = vsel %vm690, %v999, 0
        %v1433 = vsel %vm690, %v1000, 0
        %v1436 = vsel %vm690, %v1001, 0
        %v1439 = vsel %vm690, %v1002, 0
        %v1442 = vsel %vm690, %v1003, 0
        %v1445 = vsel %vm690, %v1004, 0
        %v1448 = vsel %vm690, %v1005, 0
        %v1451 = vsel %vm690, %v1006, 0
        %v1454 = vsel %vm690, %v1007, 0
        %v1457 = vsel %vm690, %v1008, 0
        %v1460 = vsel %vm690, %v1009, 0
        %v1463 = vsel %vm690, %v1010, 0
        %v1466 = vsel %vm690, %v1011, 0
        %v1469 = vsel %vm690, %v1012, 0
        %v1472 = vsel %vm690, %v1013, 0
        %v1475 = vsel %vm690, %v1014, 0
        %v1478 = vsel %vm690, %v1015, 0
        %v1481 = vsel %vm690, %v1016, 0
        %1483 = vmatprep.subr.mxu0 0.0
        %1484 = vmatpush1.msra.mxu0 %v1017
        %1485 = vmatprep.subr.mxu0 0.0
        %1486 = vmatpush1.msra.mxu0 %v1018
        %1487 = vmatprep.subr.mxu0 0.0
        %1488 = vmatpush1.msra.mxu0 %v1019
        %1489 = vmatprep.subr.mxu0 0.0
        %1490 = vmatpush1.msra.mxu0 %v1020
        %1491 = vmatprep.subr.mxu0 0.0
        %1492 = vmatpush1.msra.mxu0 %v1021
        %1493 = vmatprep.subr.mxu0 0.0
        %1494 = vmatpush1.msra.mxu0 %v1022
        %1495 = vmatprep.subr.mxu0 0.0
        %1496 = vmatpush1.msra.mxu0 %v1023
        %1497 = vmatprep.subr.mxu0 0.0
        %1498 = vmatpush1.msra.mxu0 %v1024
        %1499 = vmatprep.subr.mxu0 0.0
        %1500 = vmatpush1.msra.mxu0 0.0
        %1501 = vmatprep.subr.mxu0 0.0
        %1502 = vmatpush1.msra.mxu0 0.0
        %1503 = vmatprep.subr.mxu0 0.0
        %1504 = vmatpush1.msra.mxu0 0.0
        %1505 = vmatprep.subr.mxu0 0.0
        %1506 = vmatpush1.msra.mxu0 0.0
        %1507 = vmatprep.subr.mxu0 0.0
        %1508 = vmatpush1.msra.mxu0 0.0
        %1509 = vmatprep.subr.mxu0 0.0
        %1510 = vmatpush1.msra.mxu0 0.0
        %1511 = vmatprep.subr.mxu0 0.0
        %1512 = vmatpush1.msra.mxu0 0.0
        %1513 = vmatprep.subr.mxu0 0.0
        %1514 = vmatpush1.msra.mxu0 0.0
        %1515 = vmatprep.subr.mxu0 0.0
        %1516 = vmatpush1.msra.mxu0 0.0
        %1517 = vmatprep.subr.mxu0 0.0
        %1518 = vmatpush1.msra.mxu0 0.0
        %1519 = vmatprep.subr.mxu0 0.0
        %1520 = vmatpush1.msra.mxu0 0.0
        %1521 = vmatprep.subr.mxu0 0.0
        %1522 = vmatpush1.msra.mxu0 0.0
        %1523 = vmatprep.subr.mxu0 0.0
        %1524 = vmatpush1.msra.mxu0 0.0
        %1525 = vmatprep.subr.mxu0 0.0
        %1526 = vmatpush1.msra.mxu0 0.0
        %1527 = vmatprep.subr.mxu0 0.0
        %1528 = vmatpush1.msra.mxu0 0.0
        %1529 = vmatprep.subr.mxu0 0.0
        %1530 = vmatpush1.msra.mxu0 0.0
        %1531 = vmatprep.subr.mxu0 0.0
        %1532 = vmatpush1.msra.mxu0 0.0
        %1533 = vmatprep.subr.mxu0 0.0
        %1534 = vmatpush1.msra.mxu0 0.0
        %1535 = vmatprep.subr.mxu0 0.0
        %1536 = vmatpush1.msra.mxu0 0.0
        %1537 = vmatprep.subr.mxu0 0.0
        %1538 = vmatpush1.msra.mxu0 0.0
        %1539 = vmatprep.subr.mxu0 0.0
        %1540 = vmatpush1.msra.mxu0 0.0
        %1541 = vmatprep.subr.mxu0 0.0
        %1542 = vmatpush1.msra.mxu0 0.0
        %1543 = vmatprep.subr.mxu0 0.0
        %1544 = vmatpush1.msra.mxu0 0.0
        %1545 = vmatprep.subr.mxu0 0.0
        %1546 = vmatpush1.msra.mxu0 0.0
        %1547 = vmatprep.mubr.f32.mxu0 0.0
        %1548 = vmatmul.mubr.f32.gmra.mrb[0].mxu0 %v1388
        %v1549 = vpop.f32.mrb[0].mxu0
        %v1550 = vadd.f32 %v1229, %v1549
        %v1551 = vpop.f32.mrb[0].mxu0
        %1552 = vmatprep.mubr.f32.mxu0 0.0
        %1553 = vmatmul.mubr.f32.gmra.mrb[0].mxu0 %v1391
        %v1554 = vpop.f32.mrb[0].mxu0
        %v1555 = vadd.f32 %v1234, %v1554
        %v1556 = vpop.f32.mrb[0].mxu0
        %1557 = vmatprep.mubr.f32.mxu0 0.0
        %1558 = vmatmul.mubr.f32.gmra.mrb[0].mxu0 %v1394
        %v1559 = vpop.f32.mrb[0].mxu0
        %v1560 = vadd.f32 %v1239, %v1559
        %v1561 = vpop.f32.mrb[0].mxu0
        %1562 = vmatprep.mubr.f32.mxu0 0.0
        %1563 = vmatmul.mubr.f32.gmra.mrb[0].mxu0 %v1397
        %v1564 = vpop.f32.mrb[0].mxu0
        %v1565 = vadd.f32 %v1244, %v1564
        %v1566 = vpop.f32.mrb[0].mxu0
        %1567 = vmatprep.mubr.f32.mxu0 0.0
        %1568 = vmatmul.mubr.f32.gmra.mrb[0].mxu0 %v1400
        %v1569 = vpop.f32.mrb[0].mxu0
        %v1570 = vadd.f32 %v1249, %v1569
        %v1571 = vpop.f32.mrb[0].mxu0
        %1572 = vmatprep.mubr.f32.mxu0 0.0
        %1573 = vmatmul.mubr.f32.gmra.mrb[0].mxu0 %v1403
        %v1574 = vpop.f32.mrb[0].mxu0
        %v1575 = vadd.f32 %v1254, %v1574
        %v1576 = vpop.f32.mrb[0].mxu0
        %1577 = vmatprep.mubr.f32.mxu0 0.0
        %1578 = vmatmul.mubr.f32.gmra.mrb[0].mxu0 %v1406
        %v1579 = vpop.f32.mrb[0].mxu0
        %v1580 = vadd.f32 %v1259, %v1579
        %v1581 = vpop.f32.mrb[0].mxu0
        %1582 = vmatprep.mubr.f32.mxu0 0.0
        %1583 = vmatmul.mubr.f32.gmra.mrb[0].mxu0 %v1409
        %v1584 = vpop.f32.mrb[0].mxu0
        %v1585 = vadd.f32 %v1264, %v1584
        %v1586 = vpop.f32.mrb[0].mxu0
        %1587 = vmatprep.mubr.f32.mxu0 0.0
        %1588 = vmatmul.mubr.f32.gmra.mrb[0].mxu0 %v1412
        %v1589 = vpop.f32.mrb[0].mxu0
        %v1590 = vadd.f32 %v1269, %v1589
        %v1591 = vpop.f32.mrb[0].mxu0
        %1592 = vmatprep.mubr.f32.mxu0 0.0
        %1593 = vmatmul.mubr.f32.gmra.mrb[0].mxu0 %v1415
        %v1594 = vpop.f32.mrb[0].mxu0
        %v1595 = vadd.f32 %v1274, %v1594
        %v1596 = vpop.f32.mrb[0].mxu0
        %1597 = vmatprep.mubr.f32.mxu0 0.0
        %1598 = vmatmul.mubr.f32.gmra.mrb[0].mxu0 %v1418
        %v1599 = vpop.f32.mrb[0].mxu0
        %v1600 = vadd.f32 %v1279, %v1599
        %v1601 = vpop.f32.mrb[0].mxu0
        %1602 = vmatprep.mubr.f32.mxu0 0.0
        %1603 = vmatmul.mubr.f32.gmra.mrb[0].mxu0 %v1421
        %v1604 = vpop.f32.mrb[0].mxu0
        %v1605 = vadd.f32 %v1284, %v1604
        %v1606 = vpop.f32.mrb[0].mxu0
        %1607 = vmatprep.mubr.f32.mxu0 0.0
        %1608 = vmatmul.mubr.f32.gmra.mrb[0].mxu0 %v1424
        %v1609 = vpop.f32.mrb[0].mxu0
        %v1610 = vadd.f32 %v1289, %v1609
        %v1611 = vpop.f32.mrb[0].mxu0
        %1612 = vmatprep.mubr.f32.mxu0 0.0
        %1613 = vmatmul.mubr.f32.gmra.mrb[0].mxu0 %v1427
        %v1614 = vpop.f32.mrb[0].mxu0
        %v1615 = vadd.f32 %v1294, %v1614
        %v1616 = vpop.f32.mrb[0].mxu0
        %1617 = vmatprep.mubr.f32.mxu0 0.0
        %1618 = vmatmul.mubr.f32.gmra.mrb[0].mxu0 %v1430
        %v1619 = vpop.f32.mrb[0].mxu0
        %v1620 = vadd.f32 %v1299, %v1619
        %v1621 = vpop.f32.mrb[0].mxu0
        %1622 = vmatprep.mubr.f32.mxu0 0.0
        %1623 = vmatmul.mubr.f32.gmra.mrb[0].mxu0 %v1433
        %v1624 = vpop.f32.mrb[0].mxu0
        %v1625 = vadd.f32 %v1304, %v1624
        %v1626 = vpop.f32.mrb[0].mxu0
        %1627 = vmatprep.mubr.f32.mxu0 0.0
        %1628 = vmatmul.mubr.f32.gmra.mrb[0].mxu0 %v1436
        %v1629 = vpop.f32.mrb[0].mxu0
        %v1630 = vadd.f32 %v1309, %v1629
        %v1631 = vpop.f32.mrb[0].mxu0
        %1632 = vmatprep.mubr.f32.mxu0 0.0
        %1633 = vmatmul.mubr.f32.gmra.mrb[0].mxu0 %v1439
        %v1634 = vpop.f32.mrb[0].mxu0
        %v1635 = vadd.f32 %v1314, %v1634
        %v1636 = vpop.f32.mrb[0].mxu0
        %1637 = vmatprep.mubr.f32.mxu0 0.0
        %1638 = vmatmul.mubr.f32.gmra.mrb[0].mxu0 %v1442
        %v1639 = vpop.f32.mrb[0].mxu0
        %v1640 = vadd.f32 %v1319, %v1639
        %v1641 = vpop.f32.mrb[0].mxu0
        %1642 = vmatprep.mubr.f32.mxu0 0.0
        %1643 = vmatmul.mubr.f32.gmra.mrb[0].mxu0 %v1445
        %v1644 = vpop.f32.mrb[0].mxu0
        %v1645 = vadd.f32 %v1324, %v1644
        %v1646 = vpop.f32.mrb[0].mxu0
        %1647 = vmatprep.mubr.f32.mxu0 0.0
        %1648 = vmatmul.mubr.f32.gmra.mrb[0].mxu0 %v1448
        %v1649 = vpop.f32.mrb[0].mxu0
        %v1650 = vadd.f32 %v1329, %v1649
        %v1651 = vpop.f32.mrb[0].mxu0
        %1652 = vmatprep.mubr.f32.mxu0 0.0
        %1653 = vmatmul.mubr.f32.gmra.mrb[0].mxu0 %v1451
        %v1654 = vpop.f32.mrb[0].mxu0
        %v1655 = vadd.f32 %v1334, %v1654
        %v1656 = vpop.f32.mrb[0].mxu0
        %1657 = vmatprep.mubr.f32.mxu0 0.0
        %1658 = vmatmul.mubr.f32.gmra.mrb[0].mxu0 %v1454
        %v1659 = vpop.f32.mrb[0].mxu0
        %v1660 = vadd.f32 %v1339, %v1659
        %v1661 = vpop.f32.mrb[0].mxu0
        %1662 = vmatprep.mubr.f32.mxu0 0.0
        %1663 = vmatmul.mubr.f32.gmra.mrb[0].mxu0 %v1457
        %v1664 = vpop.f32.mrb[0].mxu0
        %v1665 = vadd.f32 %v1344, %v1664
        %v1666 = vpop.f32.mrb[0].mxu0
        %1667 = vmatprep.mubr.f32.mxu0 0.0
        %1668 = vmatmul.mubr.f32.gmra.mrb[0].mxu0 %v1460
        %v1669 = vpop.f32.mrb[0].mxu0
        %v1670 = vadd.f32 %v1349, %v1669
        %v1671 = vpop.f32.mrb[0].mxu0
        %1672 = vmatprep.mubr.f32.mxu0 0.0
        %1673 = vmatmul.mubr.f32.gmra.mrb[0].mxu0 %v1463
        %v1674 = vpop.f32.mrb[0].mxu0
        %v1675 = vadd.f32 %v1354, %v1674
        %v1676 = vpop.f32.mrb[0].mxu0
        %1677 = vmatprep.mubr.f32.mxu0 0.0
        %1678 = vmatmul.mubr.f32.gmra.mrb[0].mxu0 %v1466
        %v1679 = vpop.f32.mrb[0].mxu0
        %v1680 = vadd.f32 %v1359, %v1679
        %v1681 = vpop.f32.mrb[0].mxu0
        %1682 = vmatprep.mubr.f32.mxu0 0.0
        %1683 = vmatmul.mubr.f32.gmra.mrb[0].mxu0 %v1469
        %v1684 = vpop.f32.mrb[0].mxu0
        %v1685 = vadd.f32 %v1364, %v1684
        %v1686 = vpop.f32.mrb[0].mxu0
        %1687 = vmatprep.mubr.f32.mxu0 0.0
        %1688 = vmatmul.mubr.f32.gmra.mrb[0].mxu0 %v1472
        %v1689 = vpop.f32.mrb[0].mxu0
        %v1690 = vadd.f32 %v1369, %v1689
        %v1691 = vpop.f32.mrb[0].mxu0
        %1692 = vmatprep.mubr.f32.mxu0 0.0
        %1693 = vmatmul.mubr.f32.gmra.mrb[0].mxu0 %v1475
        %v1694 = vpop.f32.mrb[0].mxu0
        %v1695 = vadd.f32 %v1374, %v1694
        %v1696 = vpop.f32.mrb[0].mxu0
        %1697 = vmatprep.mubr.f32.mxu0 0.0
        %1698 = vmatmul.mubr.f32.gmra.mrb[0].mxu0 %v1478
        %v1699 = vpop.f32.mrb[0].mxu0
        %v1700 = vadd.f32 %v1379, %v1699
        %v1701 = vpop.f32.mrb[0].mxu0
        %1702 = vmatprep.mubr.f32.mxu0 0.0
        %1703 = vmatmul.mubr.f32.gmra.mrb[0].mxu0 %v1481
        %v1704 = vpop.f32.mrb[0].mxu0
        %v1705 = vadd.f32 %v1384, %v1704
        %v1706 = vpop.f32.mrb[0].mxu0
        %1707 = vdwg.mxu0
        %v1708 = vld [vmem:[#allocation2 + $0x9] sm:$0xff]
        %v1709 = vld [vmem:[#allocation2 + $0x11] sm:$0xff]
        %v1710 = vld [vmem:[#allocation2 + $0x19] sm:$0xff]
        %v1711 = vld [vmem:[#allocation2 + $0x21] sm:$0xff]
        %v1712 = vld [vmem:[#allocation2 + $0x29] sm:$0xff]
        %v1713 = vld [vmem:[#allocation2 + $0x31] sm:$0xff]
        %v1714 = vld [vmem:[#allocation2 + $0x39] sm:$0xff]
        %v1715 = vld [vmem:[#allocation2 + $0x41] sm:$0xff]
        %v1716 = vld [vmem:[#allocation2 + $0x49] sm:$0xff]
        %v1717 = vld [vmem:[#allocation2 + $0x51] sm:$0xff]
        %v1718 = vld [vmem:[#allocation2 + $0x59] sm:$0xff]
        %v1719 = vld [vmem:[#allocation2 + $0x61] sm:$0xff]
        %v1720 = vld [vmem:[#allocation2 + $0x69] sm:$0xff]
        %v1721 = vld [vmem:[#allocation2 + $0x71] sm:$0xff]
        %v1722 = vld [vmem:[#allocation2 + $0x79] sm:$0xff]
        %v1723 = vld [vmem:[#allocation2 + $0x81] sm:$0xff]
        %v1724 = vld [vmem:[#allocation2 + $0x89] sm:$0xff]
        %v1725 = vld [vmem:[#allocation2 + $0x91] sm:$0xff]
        %v1726 = vld [vmem:[#allocation2 + $0x99] sm:$0xff]
        %v1727 = vld [vmem:[#allocation2 + $0xa1] sm:$0xff]
        %v1728 = vld [vmem:[#allocation2 + $0xa9] sm:$0xff]
        %v1729 = vld [vmem:[#allocation2 + $0xb1] sm:$0xff]
        %v1730 = vld [vmem:[#allocation2 + $0xb9] sm:$0xff]
        %v1731 = vld [vmem:[#allocation2 + $0xc1] sm:$0xff]
        %v1732 = vld [vmem:[#allocation2 + $0xc9] sm:$0xff]
        %v1733 = vld [vmem:[#allocation2 + $0xd1] sm:$0xff]
        %v1734 = vld [vmem:[#allocation2 + $0xd9] sm:$0xff]
        %v1735 = vld [vmem:[#allocation2 + $0xe1] sm:$0xff]
        %v1736 = vld [vmem:[#allocation2 + $0xe9] sm:$0xff]
        %v1737 = vld [vmem:[#allocation2 + $0xf1] sm:$0xff]
        %v1738 = vld [vmem:[#allocation2 + $0xf9] sm:$0xff]
        %v1739 = vld [vmem:[#allocation2 + $0x101] sm:$0xff]
        %1741 = vset.pattern.permute.xlu0 0
        %1742 = vperm.xlu0 %1741, %v761
        %v1743 = vpop.permute.xlu0 %1742
        %1746 = vset.pattern.permute.xlu0 0
        %1747 = vperm.xlu0 %1746, %v762
        %v1748 = vpop.permute.xlu0 %1747
        %1751 = vset.pattern.permute.xlu0 0
        %1752 = vperm.xlu0 %1751, %v763
        %v1753 = vpop.permute.xlu0 %1752
        %1756 = vset.pattern.permute.xlu0 0
        %1757 = vperm.xlu0 %1756, %v764
        %v1758 = vpop.permute.xlu0 %1757
        %1761 = vset.pattern.permute.xlu0 0
        %1762 = vperm.xlu0 %1761, %v765
        %v1763 = vpop.permute.xlu0 %1762
        %1766 = vset.pattern.permute.xlu0 0
        %1767 = vperm.xlu0 %1766, %v766
        %v1768 = vpop.permute.xlu0 %1767
        %1771 = vset.pattern.permute.xlu0 0
        %1772 = vperm.xlu0 %1771, %v767
        %v1773 = vpop.permute.xlu0 %1772
        %1776 = vset.pattern.permute.xlu0 0
        %1777 = vperm.xlu0 %1776, %v768
        %v1778 = vpop.permute.xlu0 %1777
        %1781 = vset.pattern.permute.xlu0 0
        %1782 = vperm.xlu0 %1781, %v769
        %v1783 = vpop.permute.xlu0 %1782
        %1786 = vset.pattern.permute.xlu0 0
        %1787 = vperm.xlu0 %1786, %v770
        %v1788 = vpop.permute.xlu0 %1787
        %1791 = vset.pattern.permute.xlu0 0
        %1792 = vperm.xlu0 %1791, %v771
        %v1793 = vpop.permute.xlu0 %1792
        %1796 = vset.pattern.permute.xlu0 0
        %1797 = vperm.xlu0 %1796, %v772
        %v1798 = vpop.permute.xlu0 %1797
        %1801 = vset.pattern.permute.xlu0 0
        %1802 = vperm.xlu0 %1801, %v773
        %v1803 = vpop.permute.xlu0 %1802
        %1806 = vset.pattern.permute.xlu0 0
        %1807 = vperm.xlu0 %1806, %v774
        %v1808 = vpop.permute.xlu0 %1807
        %1811 = vset.pattern.permute.xlu0 0
        %1812 = vperm.xlu0 %1811, %v775
        %v1813 = vpop.permute.xlu0 %1812
        %1816 = vset.pattern.permute.xlu0 0
        %1817 = vperm.xlu0 %1816, %v776
        %v1818 = vpop.permute.xlu0 %1817
        %1821 = vset.pattern.permute.xlu0 0
        %1822 = vperm.xlu0 %1821, %v777
        %v1823 = vpop.permute.xlu0 %1822
        %1826 = vset.pattern.permute.xlu0 0
        %1827 = vperm.xlu0 %1826, %v778
        %v1828 = vpop.permute.xlu0 %1827
        %1831 = vset.pattern.permute.xlu0 0
        %1832 = vperm.xlu0 %1831, %v779
        %v1833 = vpop.permute.xlu0 %1832
        %1836 = vset.pattern.permute.xlu0 0
        %1837 = vperm.xlu0 %1836, %v780
        %v1838 = vpop.permute.xlu0 %1837
        %1841 = vset.pattern.permute.xlu0 0
        %1842 = vperm.xlu0 %1841, %v781
        %v1843 = vpop.permute.xlu0 %1842
        %1846 = vset.pattern.permute.xlu0 0
        %1847 = vperm.xlu0 %1846, %v782
        %v1848 = vpop.permute.xlu0 %1847
        %1851 = vset.pattern.permute.xlu0 0
        %1852 = vperm.xlu0 %1851, %v783
        %v1853 = vpop.permute.xlu0 %1852
        %1856 = vset.pattern.permute.xlu0 0
        %1857 = vperm.xlu0 %1856, %v784
        %v1858 = vpop.permute.xlu0 %1857
        %1861 = vset.pattern.permute.xlu0 0
        %1862 = vperm.xlu0 %1861, %v785
        %v1863 = vpop.permute.xlu0 %1862
        %1866 = vset.pattern.permute.xlu0 0
        %1867 = vperm.xlu0 %1866, %v786
        %v1868 = vpop.permute.xlu0 %1867
        %1871 = vset.pattern.permute.xlu0 0
        %1872 = vperm.xlu0 %1871, %v787
        %v1873 = vpop.permute.xlu0 %1872
        %1876 = vset.pattern.permute.xlu0 0
        %1877 = vperm.xlu0 %1876, %v788
        %v1878 = vpop.permute.xlu0 %1877
        %1881 = vset.pattern.permute.xlu0 0
        %1882 = vperm.xlu0 %1881, %v789
        %v1883 = vpop.permute.xlu0 %1882
        %1886 = vset.pattern.permute.xlu0 0
        %1887 = vperm.xlu0 %1886, %v790
        %v1888 = vpop.permute.xlu0 %1887
        %1891 = vset.pattern.permute.xlu0 0
        %1892 = vperm.xlu0 %1891, %v791
        %v1893 = vpop.permute.xlu0 %1892
        %1896 = vset.pattern.permute.xlu0 0
        %1897 = vperm.xlu0 %1896, %v792
        %v1898 = vpop.permute.xlu0 %1897
        %v1900 = vmul.f32 %v1708, %v1743
        %v1901 = vmul.f32 %v1709, %v1748
        %v1902 = vmul.f32 %v1710, %v1753
        %v1903 = vmul.f32 %v1711, %v1758
        %v1904 = vmul.f32 %v1712, %v1763
        %v1905 = vmul.f32 %v1713, %v1768
        %v1906 = vmul.f32 %v1714, %v1773
        %v1907 = vmul.f32 %v1715, %v1778
        %v1908 = vmul.f32 %v1716, %v1783
        %v1909 = vmul.f32 %v1717, %v1788
        %v1910 = vmul.f32 %v1718, %v1793
        %v1911 = vmul.f32 %v1719, %v1798
        %v1912 = vmul.f32 %v1720, %v1803
        %v1913 = vmul.f32 %v1721, %v1808
        %v1914 = vmul.f32 %v1722, %v1813
        %v1915 = vmul.f32 %v1723, %v1818
        %v1916 = vmul.f32 %v1724, %v1823
        %v1917 = vmul.f32 %v1725, %v1828
        %v1918 = vmul.f32 %v1726, %v1833
        %v1919 = vmul.f32 %v1727, %v1838
        %v1920 = vmul.f32 %v1728, %v1843
        %v1921 = vmul.f32 %v1729, %v1848
        %v1922 = vmul.f32 %v1730, %v1853
        %v1923 = vmul.f32 %v1731, %v1858
        %v1924 = vmul.f32 %v1732, %v1863
        %v1925 = vmul.f32 %v1733, %v1868
        %v1926 = vmul.f32 %v1734, %v1873
        %v1927 = vmul.f32 %v1735, %v1878
        %v1928 = vmul.f32 %v1736, %v1883
        %v1929 = vmul.f32 %v1737, %v1888
        %v1930 = vmul.f32 %v1738, %v1893
        %v1931 = vmul.f32 %v1739, %v1898
        %s1932 = scalar_lea.vmem %s2, 128
        %v1933 = vld [vmem:[%s1932] sm:$0xff]
        %v1934 = vld [vmem:[%s1932 + $0x8] sm:$0xff]
        %v1935 = vld [vmem:[%s1932 + $0x10] sm:$0xff]
        %v1936 = vld [vmem:[%s1932 + $0x18] sm:$0xff]
        %v1937 = vld [vmem:[%s1932 + $0x20] sm:$0xff]
        %v1938 = vld [vmem:[%s1932 + $0x28] sm:$0xff]
        %v1939 = vld [vmem:[%s1932 + $0x30] sm:$0xff]
        %v1940 = vld [vmem:[%s1932 + $0x38] sm:$0xff]
        %v1942 = vsel %vm690, %v1900, 0
        %v1945 = vsel %vm690, %v1901, 0
        %v1948 = vsel %vm690, %v1902, 0
        %v1951 = vsel %vm690, %v1903, 0
        %v1954 = vsel %vm690, %v1904, 0
        %v1957 = vsel %vm690, %v1905, 0
        %v1960 = vsel %vm690, %v1906, 0
        %v1963 = vsel %vm690, %v1907, 0
        %v1966 = vsel %vm690, %v1908, 0
        %v1969 = vsel %vm690, %v1909, 0
        %v1972 = vsel %vm690, %v1910, 0
        %v1975 = vsel %vm690, %v1911, 0
        %v1978 = vsel %vm690, %v1912, 0
        %v1981 = vsel %vm690, %v1913, 0
        %v1984 = vsel %vm690, %v1914, 0
        %v1987 = vsel %vm690, %v1915, 0
        %v1990 = vsel %vm690, %v1916, 0
        %v1993 = vsel %vm690, %v1917, 0
        %v1996 = vsel %vm690, %v1918, 0
        %v1999 = vsel %vm690, %v1919, 0
        %v2002 = vsel %vm690, %v1920, 0
        %v2005 = vsel %vm690, %v1921, 0
        %v2008 = vsel %vm690, %v1922, 0
        %v2011 = vsel %vm690, %v1923, 0
        %v2014 = vsel %vm690, %v1924, 0
        %v2017 = vsel %vm690, %v1925, 0
        %v2020 = vsel %vm690, %v1926, 0
        %v2023 = vsel %vm690, %v1927, 0
        %v2026 = vsel %vm690, %v1928, 0
        %v2029 = vsel %vm690, %v1929, 0
        %v2032 = vsel %vm690, %v1930, 0
        %v2035 = vsel %vm690, %v1931, 0
        %2037 = vmatprep.subr.mxu0 0.0
        %2038 = vmatpush1.msra.mxu0 %v1933
        %2039 = vmatprep.subr.mxu0 0.0
        %2040 = vmatpush1.msra.mxu0 %v1934
        %2041 = vmatprep.subr.mxu0 0.0
        %2042 = vmatpush1.msra.mxu0 %v1935
        %2043 = vmatprep.subr.mxu0 0.0
        %2044 = vmatpush1.msra.mxu0 %v1936
        %2045 = vmatprep.subr.mxu0 0.0
        %2046 = vmatpush1.msra.mxu0 %v1937
        %2047 = vmatprep.subr.mxu0 0.0
        %2048 = vmatpush1.msra.mxu0 %v1938
        %2049 = vmatprep.subr.mxu0 0.0
        %2050 = vmatpush1.msra.mxu0 %v1939
        %2051 = vmatprep.subr.mxu0 0.0
        %2052 = vmatpush1.msra.mxu0 %v1940
        %2053 = vmatprep.subr.mxu0 0.0
        %2054 = vmatpush1.msra.mxu0 0.0
        %2055 = vmatprep.subr.mxu0 0.0
        %2056 = vmatpush1.msra.mxu0 0.0
        %2057 = vmatprep.subr.mxu0 0.0
        %2058 = vmatpush1.msra.mxu0 0.0
        %2059 = vmatprep.subr.mxu0 0.0
        %2060 = vmatpush1.msra.mxu0 0.0
        %2061 = vmatprep.subr.mxu0 0.0
        %2062 = vmatpush1.msra.mxu0 0.0
        %2063 = vmatprep.subr.mxu0 0.0
        %2064 = vmatpush1.msra.mxu0 0.0
        %2065 = vmatprep.subr.mxu0 0.0
        %2066 = vmatpush1.msra.mxu0 0.0
        %2067 = vmatprep.subr.mxu0 0.0
        %2068 = vmatpush1.msra.mxu0 0.0
        %2069 = vmatprep.subr.mxu0 0.0
        %2070 = vmatpush1.msra.mxu0 0.0
        %2071 = vmatprep.subr.mxu0 0.0
        %2072 = vmatpush1.msra.mxu0 0.0
        %2073 = vmatprep.subr.mxu0 0.0
        %2074 = vmatpush1.msra.mxu0 0.0
        %2075 = vmatprep.subr.mxu0 0.0
        %2076 = vmatpush1.msra.mxu0 0.0
        %2077 = vmatprep.subr.mxu0 0.0
        %2078 = vmatpush1.msra.mxu0 0.0
        %2079 = vmatprep.subr.mxu0 0.0
        %2080 = vmatpush1.msra.mxu0 0.0
        %2081 = vmatprep.subr.mxu0 0.0
        %2082 = vmatpush1.msra.mxu0 0.0
        %2083 = vmatprep.subr.mxu0 0.0
        %2084 = vmatpush1.msra.mxu0 0.0
        %2085 = vmatprep.subr.mxu0 0.0
        %2086 = vmatpush1.msra.mxu0 0.0
        %2087 = vmatprep.subr.mxu0 0.0
        %2088 = vmatpush1.msra.mxu0 0.0
        %2089 = vmatprep.subr.mxu0 0.0
        %2090 = vmatpush1.msra.mxu0 0.0
        %2091 = vmatprep.subr.mxu0 0.0
        %2092 = vmatpush1.msra.mxu0 0.0
        %2093 = vmatprep.subr.mxu0 0.0
        %2094 = vmatpush1.msra.mxu0 0.0
        %2095 = vmatprep.subr.mxu0 0.0
        %2096 = vmatpush1.msra.mxu0 0.0
        %2097 = vmatprep.subr.mxu0 0.0
        %2098 = vmatpush1.msra.mxu0 0.0
        %2099 = vmatprep.subr.mxu0 0.0
        %2100 = vmatpush1.msra.mxu0 0.0
        %2101 = vmatprep.mubr.f32.mxu0 0.0
        %2102 = vmatmul.mubr.f32.gmra.mrb[0].mxu0 %v1942
        %v2103 = vpop.f32.mrb[0].mxu0
        %v2104 = vadd.f32 0.0, %v2103
        %v2105 = vpop.f32.mrb[0].mxu0
        %2106 = vmatprep.mubr.f32.mxu0 0.0
        %2107 = vmatmul.mubr.f32.gmra.mrb[0].mxu0 %v1945
        %v2108 = vpop.f32.mrb[0].mxu0
        %v2109 = vadd.f32 0.0, %v2108
        %v2110 = vpop.f32.mrb[0].mxu0
        %2111 = vmatprep.mubr.f32.mxu0 0.0
        %2112 = vmatmul.mubr.f32.gmra.mrb[0].mxu0 %v1948
        %v2113 = vpop.f32.mrb[0].mxu0
        %v2114 = vadd.f32 0.0, %v2113
        %v2115 = vpop.f32.mrb[0].mxu0
        %2116 = vmatprep.mubr.f32.mxu0 0.0
        %2117 = vmatmul.mubr.f32.gmra.mrb[0].mxu0 %v1951
        %v2118 = vpop.f32.mrb[0].mxu0
        %v2119 = vadd.f32 0.0, %v2118
        %v2120 = vpop.f32.mrb[0].mxu0
        %2121 = vmatprep.mubr.f32.mxu0 0.0
        %2122 = vmatmul.mubr.f32.gmra.mrb[0].mxu0 %v1954
        %v2123 = vpop.f32.mrb[0].mxu0
        %v2124 = vadd.f32 0.0, %v2123
        %v2125 = vpop.f32.mrb[0].mxu0
        %2126 = vmatprep.mubr.f32.mxu0 0.0
        %2127 = vmatmul.mubr.f32.gmra.mrb[0].mxu0 %v1957
        %v2128 = vpop.f32.mrb[0].mxu0
        %v2129 = vadd.f32 0.0, %v2128
        %v2130 = vpop.f32.mrb[0].mxu0
        %2131 = vmatprep.mubr.f32.mxu0 0.0
        %2132 = vmatmul.mubr.f32.gmra.mrb[0].mxu0 %v1960
        %v2133 = vpop.f32.mrb[0].mxu0
        %v2134 = vadd.f32 0.0, %v2133
        %v2135 = vpop.f32.mrb[0].mxu0
        %2136 = vmatprep.mubr.f32.mxu0 0.0
        %2137 = vmatmul.mubr.f32.gmra.mrb[0].mxu0 %v1963
        %v2138 = vpop.f32.mrb[0].mxu0
        %v2139 = vadd.f32 0.0, %v2138
        %v2140 = vpop.f32.mrb[0].mxu0
        %2141 = vmatprep.mubr.f32.mxu0 0.0
        %2142 = vmatmul.mubr.f32.gmra.mrb[0].mxu0 %v1966
        %v2143 = vpop.f32.mrb[0].mxu0
        %v2144 = vadd.f32 0.0, %v2143
        %v2145 = vpop.f32.mrb[0].mxu0
        %2146 = vmatprep.mubr.f32.mxu0 0.0
        %2147 = vmatmul.mubr.f32.gmra.mrb[0].mxu0 %v1969
        %v2148 = vpop.f32.mrb[0].mxu0
        %v2149 = vadd.f32 0.0, %v2148
        %v2150 = vpop.f32.mrb[0].mxu0
        %2151 = vmatprep.mubr.f32.mxu0 0.0
        %2152 = vmatmul.mubr.f32.gmra.mrb[0].mxu0 %v1972
        %v2153 = vpop.f32.mrb[0].mxu0
        %v2154 = vadd.f32 0.0, %v2153
        %v2155 = vpop.f32.mrb[0].mxu0
        %2156 = vmatprep.mubr.f32.mxu0 0.0
        %2157 = vmatmul.mubr.f32.gmra.mrb[0].mxu0 %v1975
        %v2158 = vpop.f32.mrb[0].mxu0
        %v2159 = vadd.f32 0.0, %v2158
        %v2160 = vpop.f32.mrb[0].mxu0
        %2161 = vmatprep.mubr.f32.mxu0 0.0
        %2162 = vmatmul.mubr.f32.gmra.mrb[0].mxu0 %v1978
        %v2163 = vpop.f32.mrb[0].mxu0
        %v2164 = vadd.f32 0.0, %v2163
        %v2165 = vpop.f32.mrb[0].mxu0
        %2166 = vmatprep.mubr.f32.mxu0 0.0
        %2167 = vmatmul.mubr.f32.gmra.mrb[0].mxu0 %v1981
        %v2168 = vpop.f32.mrb[0].mxu0
        %v2169 = vadd.f32 0.0, %v2168
        %v2170 = vpop.f32.mrb[0].mxu0
        %2171 = vmatprep.mubr.f32.mxu0 0.0
        %2172 = vmatmul.mubr.f32.gmra.mrb[0].mxu0 %v1984
        %v2173 = vpop.f32.mrb[0].mxu0
        %v2174 = vadd.f32 0.0, %v2173
        %v2175 = vpop.f32.mrb[0].mxu0
        %2176 = vmatprep.mubr.f32.mxu0 0.0
        %2177 = vmatmul.mubr.f32.gmra.mrb[0].mxu0 %v1987
        %v2178 = vpop.f32.mrb[0].mxu0
        %v2179 = vadd.f32 0.0, %v2178
        %v2180 = vpop.f32.mrb[0].mxu0
        %2181 = vmatprep.mubr.f32.mxu0 0.0
        %2182 = vmatmul.mubr.f32.gmra.mrb[0].mxu0 %v1990
        %v2183 = vpop.f32.mrb[0].mxu0
        %v2184 = vadd.f32 0.0, %v2183
        %v2185 = vpop.f32.mrb[0].mxu0
        %2186 = vmatprep.mubr.f32.mxu0 0.0
        %2187 = vmatmul.mubr.f32.gmra.mrb[0].mxu0 %v1993
        %v2188 = vpop.f32.mrb[0].mxu0
        %v2189 = vadd.f32 0.0, %v2188
        %v2190 = vpop.f32.mrb[0].mxu0
        %2191 = vmatprep.mubr.f32.mxu0 0.0
        %2192 = vmatmul.mubr.f32.gmra.mrb[0].mxu0 %v1996
        %v2193 = vpop.f32.mrb[0].mxu0
        %v2194 = vadd.f32 0.0, %v2193
        %v2195 = vpop.f32.mrb[0].mxu0
        %2196 = vmatprep.mubr.f32.mxu0 0.0
        %2197 = vmatmul.mubr.f32.gmra.mrb[0].mxu0 %v1999
        %v2198 = vpop.f32.mrb[0].mxu0
        %v2199 = vadd.f32 0.0, %v2198
        %v2200 = vpop.f32.mrb[0].mxu0
        %2201 = vmatprep.mubr.f32.mxu0 0.0
        %2202 = vmatmul.mubr.f32.gmra.mrb[0].mxu0 %v2002
        %v2203 = vpop.f32.mrb[0].mxu0
        %v2204 = vadd.f32 0.0, %v2203
        %v2205 = vpop.f32.mrb[0].mxu0
        %2206 = vmatprep.mubr.f32.mxu0 0.0
        %2207 = vmatmul.mubr.f32.gmra.mrb[0].mxu0 %v2005
        %v2208 = vpop.f32.mrb[0].mxu0
        %v2209 = vadd.f32 0.0, %v2208
        %v2210 = vpop.f32.mrb[0].mxu0
        %2211 = vmatprep.mubr.f32.mxu0 0.0
        %2212 = vmatmul.mubr.f32.gmra.mrb[0].mxu0 %v2008
        %v2213 = vpop.f32.mrb[0].mxu0
        %v2214 = vadd.f32 0.0, %v2213
        %v2215 = vpop.f32.mrb[0].mxu0
        %2216 = vmatprep.mubr.f32.mxu0 0.0
        %2217 = vmatmul.mubr.f32.gmra.mrb[0].mxu0 %v2011
        %v2218 = vpop.f32.mrb[0].mxu0
        %v2219 = vadd.f32 0.0, %v2218
        %v2220 = vpop.f32.mrb[0].mxu0
        %2221 = vmatprep.mubr.f32.mxu0 0.0
        %2222 = vmatmul.mubr.f32.gmra.mrb[0].mxu0 %v2014
        %v2223 = vpop.f32.mrb[0].mxu0
        %v2224 = vadd.f32 0.0, %v2223
        %v2225 = vpop.f32.mrb[0].mxu0
        %2226 = vmatprep.mubr.f32.mxu0 0.0
        %2227 = vmatmul.mubr.f32.gmra.mrb[0].mxu0 %v2017
        %v2228 = vpop.f32.mrb[0].mxu0
        %v2229 = vadd.f32 0.0, %v2228
        %v2230 = vpop.f32.mrb[0].mxu0
        %2231 = vmatprep.mubr.f32.mxu0 0.0
        %2232 = vmatmul.mubr.f32.gmra.mrb[0].mxu0 %v2020
        %v2233 = vpop.f32.mrb[0].mxu0
        %v2234 = vadd.f32 0.0, %v2233
        %v2235 = vpop.f32.mrb[0].mxu0
        %2236 = vmatprep.mubr.f32.mxu0 0.0
        %2237 = vmatmul.mubr.f32.gmra.mrb[0].mxu0 %v2023
        %v2238 = vpop.f32.mrb[0].mxu0
        %v2239 = vadd.f32 0.0, %v2238
        %v2240 = vpop.f32.mrb[0].mxu0
        %2241 = vmatprep.mubr.f32.mxu0 0.0
        %2242 = vmatmul.mubr.f32.gmra.mrb[0].mxu0 %v2026
        %v2243 = vpop.f32.mrb[0].mxu0
        %v2244 = vadd.f32 0.0, %v2243
        %v2245 = vpop.f32.mrb[0].mxu0
        %2246 = vmatprep.mubr.f32.mxu0 0.0
        %2247 = vmatmul.mubr.f32.gmra.mrb[0].mxu0 %v2029
        %v2248 = vpop.f32.mrb[0].mxu0
        %v2249 = vadd.f32 0.0, %v2248
        %v2250 = vpop.f32.mrb[0].mxu0
        %2251 = vmatprep.mubr.f32.mxu0 0.0
        %2252 = vmatmul.mubr.f32.gmra.mrb[0].mxu0 %v2032
        %v2253 = vpop.f32.mrb[0].mxu0
        %v2254 = vadd.f32 0.0, %v2253
        %v2255 = vpop.f32.mrb[0].mxu0
        %2256 = vmatprep.mubr.f32.mxu0 0.0
        %2257 = vmatmul.mubr.f32.gmra.mrb[0].mxu0 %v2035
        %v2258 = vpop.f32.mrb[0].mxu0
        %v2259 = vadd.f32 0.0, %v2258
        %v2260 = vpop.f32.mrb[0].mxu0
        %2261 = vdwg.mxu0
        %v2262 = vadd.f32 %v1550, %v2104
        %v2263 = vadd.f32 %v1555, %v2109
        %v2264 = vadd.f32 %v1560, %v2114
        %v2265 = vadd.f32 %v1565, %v2119
        %v2266 = vadd.f32 %v1570, %v2124
        %v2267 = vadd.f32 %v1575, %v2129
        %v2268 = vadd.f32 %v1580, %v2134
        %v2269 = vadd.f32 %v1585, %v2139
        %v2270 = vadd.f32 %v1590, %v2144
        %v2271 = vadd.f32 %v1595, %v2149
        %v2272 = vadd.f32 %v1600, %v2154
        %v2273 = vadd.f32 %v1605, %v2159
        %v2274 = vadd.f32 %v1610, %v2164
        %v2275 = vadd.f32 %v1615, %v2169
        %v2276 = vadd.f32 %v1620, %v2174
        %v2277 = vadd.f32 %v1625, %v2179
        %v2278 = vadd.f32 %v1630, %v2184
        %v2279 = vadd.f32 %v1635, %v2189
        %v2280 = vadd.f32 %v1640, %v2194
        %v2281 = vadd.f32 %v1645, %v2199
        %v2282 = vadd.f32 %v1650, %v2204
        %v2283 = vadd.f32 %v1655, %v2209
        %v2284 = vadd.f32 %v1660, %v2214
        %v2285 = vadd.f32 %v1665, %v2219
        %v2286 = vadd.f32 %v1670, %v2224
        %v2287 = vadd.f32 %v1675, %v2229
        %v2288 = vadd.f32 %v1680, %v2234
        %v2289 = vadd.f32 %v1685, %v2239
        %v2290 = vadd.f32 %v1690, %v2244
        %v2291 = vadd.f32 %v1695, %v2249
        %v2292 = vadd.f32 %v1700, %v2254
        %v2293 = vadd.f32 %v1705, %v2259
        %v2294 = vld [vmem:[#allocation2 + $0x17] sm:$0xff]
        %v2295 = vld [vmem:[#allocation2 + $0x1f] sm:$0xff]
        %v2296 = vld [vmem:[#allocation2 + $0x27] sm:$0xff]
        %v2297 = vld [vmem:[#allocation2 + $0x2f] sm:$0xff]
        %v2298 = vld [vmem:[#allocation2 + $0x37] sm:$0xff]
        %v2299 = vld [vmem:[#allocation2 + $0x3f] sm:$0xff]
        %v2300 = vld [vmem:[#allocation2 + $0x47] sm:$0xff]
        %v2301 = vld [vmem:[#allocation2 + $0x4f] sm:$0xff]
        %v2302 = vld [vmem:[#allocation2 + $0x57] sm:$0xff]
        %v2303 = vld [vmem:[#allocation2 + $0x5f] sm:$0xff]
        %v2304 = vld [vmem:[#allocation2 + $0x67] sm:$0xff]
        %v2305 = vld [vmem:[#allocation2 + $0x6f] sm:$0xff]
        %v2306 = vld [vmem:[#allocation2 + $0x77] sm:$0xff]
        %v2307 = vld [vmem:[#allocation2 + $0x7f] sm:$0xff]
        %v2308 = vld [vmem:[#allocation2 + $0x87] sm:$0xff]
        %v2309 = vld [vmem:[#allocation2 + $0x8f] sm:$0xff]
        %v2310 = vld [vmem:[#allocation2 + $0x97] sm:$0xff]
        %v2311 = vld [vmem:[#allocation2 + $0x9f] sm:$0xff]
        %v2312 = vld [vmem:[#allocation2 + $0xa7] sm:$0xff]
        %v2313 = vld [vmem:[#allocation2 + $0xaf] sm:$0xff]
        %v2314 = vld [vmem:[#allocation2 + $0xb7] sm:$0xff]
        %v2315 = vld [vmem:[#allocation2 + $0xbf] sm:$0xff]
        %v2316 = vld [vmem:[#allocation2 + $0xc7] sm:$0xff]
        %v2317 = vld [vmem:[#allocation2 + $0xcf] sm:$0xff]
        %v2318 = vld [vmem:[#allocation2 + $0xd7] sm:$0xff]
        %v2319 = vld [vmem:[#allocation2 + $0xdf] sm:$0xff]
        %v2320 = vld [vmem:[#allocation2 + $0xe7] sm:$0xff]
        %v2321 = vld [vmem:[#allocation2 + $0xef] sm:$0xff]
        %v2322 = vld [vmem:[#allocation2 + $0xf7] sm:$0xff]
        %v2323 = vld [vmem:[#allocation2 + $0xff] sm:$0xff]
        %v2324 = vld [vmem:[#allocation2 + $0x107] sm:$0xff]
        %v2325 = vld [vmem:[#allocation2 + $0x10f] sm:$0xff]
        %v2326 = vmul.f32 %v2294, %v828
        %v2327 = vmul.f32 %v2295, %v833
        %v2328 = vmul.f32 %v2296, %v838
        %v2329 = vmul.f32 %v2297, %v843
        %v2330 = vmul.f32 %v2298, %v848
        %v2331 = vmul.f32 %v2299, %v853
        %v2332 = vmul.f32 %v2300, %v858
        %v2333 = vmul.f32 %v2301, %v863
        %v2334 = vmul.f32 %v2302, %v868
        %v2335 = vmul.f32 %v2303, %v873
        %v2336 = vmul.f32 %v2304, %v878
        %v2337 = vmul.f32 %v2305, %v883
        %v2338 = vmul.f32 %v2306, %v888
        %v2339 = vmul.f32 %v2307, %v893
        %v2340 = vmul.f32 %v2308, %v898
        %v2341 = vmul.f32 %v2309, %v903
        %v2342 = vmul.f32 %v2310, %v908
        %v2343 = vmul.f32 %v2311, %v913
        %v2344 = vmul.f32 %v2312, %v918
        %v2345 = vmul.f32 %v2313, %v923
        %v2346 = vmul.f32 %v2314, %v928
        %v2347 = vmul.f32 %v2315, %v933
        %v2348 = vmul.f32 %v2316, %v938
        %v2349 = vmul.f32 %v2317, %v943
        %v2350 = vmul.f32 %v2318, %v948
        %v2351 = vmul.f32 %v2319, %v953
        %v2352 = vmul.f32 %v2320, %v958
        %v2353 = vmul.f32 %v2321, %v963
        %v2354 = vmul.f32 %v2322, %v968
        %v2355 = vmul.f32 %v2323, %v973
        %v2356 = vmul.f32 %v2324, %v978
        %v2357 = vmul.f32 %v2325, %v983
        %s2358 = scalar_lea.vmem %s2, 192
        %v2359 = vld [vmem:[%s2358] sm:$0xff]
        %v2360 = vld [vmem:[%s2358 + $0x8] sm:$0xff]
        %v2361 = vld [vmem:[%s2358 + $0x10] sm:$0xff]
        %v2362 = vld [vmem:[%s2358 + $0x18] sm:$0xff]
        %v2363 = vld [vmem:[%s2358 + $0x20] sm:$0xff]
        %v2364 = vld [vmem:[%s2358 + $0x28] sm:$0xff]
        %v2365 = vld [vmem:[%s2358 + $0x30] sm:$0xff]
        %v2366 = vld [vmem:[%s2358 + $0x38] sm:$0xff]
        %v2368 = vsel %vm690, %v2326, 0
        %v2371 = vsel %vm690, %v2327, 0
        %v2374 = vsel %vm690, %v2328, 0
        %v2377 = vsel %vm690, %v2329, 0
        %v2380 = vsel %vm690, %v2330, 0
        %v2383 = vsel %vm690, %v2331, 0
        %v2386 = vsel %vm690, %v2332, 0
        %v2389 = vsel %vm690, %v2333, 0
        %v2392 = vsel %vm690, %v2334, 0
        %v2395 = vsel %vm690, %v2335, 0
        %v2398 = vsel %vm690, %v2336, 0
        %v2401 = vsel %vm690, %v2337, 0
        %v2404 = vsel %vm690, %v2338, 0
        %v2407 = vsel %vm690, %v2339, 0
        %v2410 = vsel %vm690, %v2340, 0
        %v2413 = vsel %vm690, %v2341, 0
        %v2416 = vsel %vm690, %v2342, 0
        %v2419 = vsel %vm690, %v2343, 0
        %v2422 = vsel %vm690, %v2344, 0
        %v2425 = vsel %vm690, %v2345, 0
        %v2428 = vsel %vm690, %v2346, 0
        %v2431 = vsel %vm690, %v2347, 0
        %v2434 = vsel %vm690, %v2348, 0
        %v2437 = vsel %vm690, %v2349, 0
        %v2440 = vsel %vm690, %v2350, 0
        %v2443 = vsel %vm690, %v2351, 0
        %v2446 = vsel %vm690, %v2352, 0
        %v2449 = vsel %vm690, %v2353, 0
        %v2452 = vsel %vm690, %v2354, 0
        %v2455 = vsel %vm690, %v2355, 0
        %v2458 = vsel %vm690, %v2356, 0
        %v2461 = vsel %vm690, %v2357, 0
        %2463 = vmatprep.subr.mxu0 0.0
        %2464 = vmatpush1.msra.mxu0 %v2359
        %2465 = vmatprep.subr.mxu0 0.0
        %2466 = vmatpush1.msra.mxu0 %v2360
        %2467 = vmatprep.subr.mxu0 0.0
        %2468 = vmatpush1.msra.mxu0 %v2361
        %2469 = vmatprep.subr.mxu0 0.0
        %2470 = vmatpush1.msra.mxu0 %v2362
        %2471 = vmatprep.subr.mxu0 0.0
        %2472 = vmatpush1.msra.mxu0 %v2363
        %2473 = vmatprep.subr.mxu0 0.0
        %2474 = vmatpush1.msra.mxu0 %v2364
        %2475 = vmatprep.subr.mxu0 0.0
        %2476 = vmatpush1.msra.mxu0 %v2365
        %2477 = vmatprep.subr.mxu0 0.0
        %2478 = vmatpush1.msra.mxu0 %v2366
        %2479 = vmatprep.subr.mxu0 0.0
        %2480 = vmatpush1.msra.mxu0 0.0
        %2481 = vmatprep.subr.mxu0 0.0
        %2482 = vmatpush1.msra.mxu0 0.0
        %2483 = vmatprep.subr.mxu0 0.0
        %2484 = vmatpush1.msra.mxu0 0.0
        %2485 = vmatprep.subr.mxu0 0.0
        %2486 = vmatpush1.msra.mxu0 0.0
        %2487 = vmatprep.subr.mxu0 0.0
        %2488 = vmatpush1.msra.mxu0 0.0
        %2489 = vmatprep.subr.mxu0 0.0
        %2490 = vmatpush1.msra.mxu0 0.0
        %2491 = vmatprep.subr.mxu0 0.0
        %2492 = vmatpush1.msra.mxu0 0.0
        %2493 = vmatprep.subr.mxu0 0.0
        %2494 = vmatpush1.msra.mxu0 0.0
        %2495 = vmatprep.subr.mxu0 0.0
        %2496 = vmatpush1.msra.mxu0 0.0
        %2497 = vmatprep.subr.mxu0 0.0
        %2498 = vmatpush1.msra.mxu0 0.0
        %2499 = vmatprep.subr.mxu0 0.0
        %2500 = vmatpush1.msra.mxu0 0.0
        %2501 = vmatprep.subr.mxu0 0.0
        %2502 = vmatpush1.msra.mxu0 0.0
        %2503 = vmatprep.subr.mxu0 0.0
        %2504 = vmatpush1.msra.mxu0 0.0
        %2505 = vmatprep.subr.mxu0 0.0
        %2506 = vmatpush1.msra.mxu0 0.0
        %2507 = vmatprep.subr.mxu0 0.0
        %2508 = vmatpush1.msra.mxu0 0.0
        %2509 = vmatprep.subr.mxu0 0.0
        %2510 = vmatpush1.msra.mxu0 0.0
        %2511 = vmatprep.subr.mxu0 0.0
        %2512 = vmatpush1.msra.mxu0 0.0
        %2513 = vmatprep.subr.mxu0 0.0
        %2514 = vmatpush1.msra.mxu0 0.0
        %2515 = vmatprep.subr.mxu0 0.0
        %2516 = vmatpush1.msra.mxu0 0.0
        %2517 = vmatprep.subr.mxu0 0.0
        %2518 = vmatpush1.msra.mxu0 0.0
        %2519 = vmatprep.subr.mxu0 0.0
        %2520 = vmatpush1.msra.mxu0 0.0
        %2521 = vmatprep.subr.mxu0 0.0
        %2522 = vmatpush1.msra.mxu0 0.0
        %2523 = vmatprep.subr.mxu0 0.0
        %2524 = vmatpush1.msra.mxu0 0.0
        %2525 = vmatprep.subr.mxu0 0.0
        %2526 = vmatpush1.msra.mxu0 0.0
        %2527 = vmatprep.mubr.f32.mxu0 0.0
        %2528 = vmatmul.mubr.f32.gmra.mrb[0].mxu0 %v2368
        %v2529 = vpop.f32.mrb[0].mxu0
        %v2530 = vadd.f32 0.0, %v2529
        %v2531 = vpop.f32.mrb[0].mxu0
        %2532 = vmatprep.mubr.f32.mxu0 0.0
        %2533 = vmatmul.mubr.f32.gmra.mrb[0].mxu0 %v2371
        %v2534 = vpop.f32.mrb[0].mxu0
        %v2535 = vadd.f32 0.0, %v2534
        %v2536 = vpop.f32.mrb[0].mxu0
        %2537 = vmatprep.mubr.f32.mxu0 0.0
        %2538 = vmatmul.mubr.f32.gmra.mrb[0].mxu0 %v2374
        %v2539 = vpop.f32.mrb[0].mxu0
        %v2540 = vadd.f32 0.0, %v2539
        %v2541 = vpop.f32.mrb[0].mxu0
        %2542 = vmatprep.mubr.f32.mxu0 0.0
        %2543 = vmatmul.mubr.f32.gmra.mrb[0].mxu0 %v2377
        %v2544 = vpop.f32.mrb[0].mxu0
        %v2545 = vadd.f32 0.0, %v2544
        %v2546 = vpop.f32.mrb[0].mxu0
        %2547 = vmatprep.mubr.f32.mxu0 0.0
        %2548 = vmatmul.mubr.f32.gmra.mrb[0].mxu0 %v2380
        %v2549 = vpop.f32.mrb[0].mxu0
        %v2550 = vadd.f32 0.0, %v2549
        %v2551 = vpop.f32.mrb[0].mxu0
        %2552 = vmatprep.mubr.f32.mxu0 0.0
        %2553 = vmatmul.mubr.f32.gmra.mrb[0].mxu0 %v2383
        %v2554 = vpop.f32.mrb[0].mxu0
        %v2555 = vadd.f32 0.0, %v2554
        %v2556 = vpop.f32.mrb[0].mxu0
        %2557 = vmatprep.mubr.f32.mxu0 0.0
        %2558 = vmatmul.mubr.f32.gmra.mrb[0].mxu0 %v2386
        %v2559 = vpop.f32.mrb[0].mxu0
        %v2560 = vadd.f32 0.0, %v2559
        %v2561 = vpop.f32.mrb[0].mxu0
        %2562 = vmatprep.mubr.f32.mxu0 0.0
        %2563 = vmatmul.mubr.f32.gmra.mrb[0].mxu0 %v2389
        %v2564 = vpop.f32.mrb[0].mxu0
        %v2565 = vadd.f32 0.0, %v2564
        %v2566 = vpop.f32.mrb[0].mxu0
        %2567 = vmatprep.mubr.f32.mxu0 0.0
        %2568 = vmatmul.mubr.f32.gmra.mrb[0].mxu0 %v2392
        %v2569 = vpop.f32.mrb[0].mxu0
        %v2570 = vadd.f32 0.0, %v2569
        %v2571 = vpop.f32.mrb[0].mxu0
        %2572 = vmatprep.mubr.f32.mxu0 0.0
        %2573 = vmatmul.mubr.f32.gmra.mrb[0].mxu0 %v2395
        %v2574 = vpop.f32.mrb[0].mxu0
        %v2575 = vadd.f32 0.0, %v2574
        %v2576 = vpop.f32.mrb[0].mxu0
        %2577 = vmatprep.mubr.f32.mxu0 0.0
        %2578 = vmatmul.mubr.f32.gmra.mrb[0].mxu0 %v2398
        %v2579 = vpop.f32.mrb[0].mxu0
        %v2580 = vadd.f32 0.0, %v2579
        %v2581 = vpop.f32.mrb[0].mxu0
        %2582 = vmatprep.mubr.f32.mxu0 0.0
        %2583 = vmatmul.mubr.f32.gmra.mrb[0].mxu0 %v2401
        %v2584 = vpop.f32.mrb[0].mxu0
        %v2585 = vadd.f32 0.0, %v2584
        %v2586 = vpop.f32.mrb[0].mxu0
        %2587 = vmatprep.mubr.f32.mxu0 0.0
        %2588 = vmatmul.mubr.f32.gmra.mrb[0].mxu0 %v2404
        %v2589 = vpop.f32.mrb[0].mxu0
        %v2590 = vadd.f32 0.0, %v2589
        %v2591 = vpop.f32.mrb[0].mxu0
        %2592 = vmatprep.mubr.f32.mxu0 0.0
        %2593 = vmatmul.mubr.f32.gmra.mrb[0].mxu0 %v2407
        %v2594 = vpop.f32.mrb[0].mxu0
        %v2595 = vadd.f32 0.0, %v2594
        %v2596 = vpop.f32.mrb[0].mxu0
        %2597 = vmatprep.mubr.f32.mxu0 0.0
        %2598 = vmatmul.mubr.f32.gmra.mrb[0].mxu0 %v2410
        %v2599 = vpop.f32.mrb[0].mxu0
        %v2600 = vadd.f32 0.0, %v2599
        %v2601 = vpop.f32.mrb[0].mxu0
        %2602 = vmatprep.mubr.f32.mxu0 0.0
        %2603 = vmatmul.mubr.f32.gmra.mrb[0].mxu0 %v2413
        %v2604 = vpop.f32.mrb[0].mxu0
        %v2605 = vadd.f32 0.0, %v2604
        %v2606 = vpop.f32.mrb[0].mxu0
        %2607 = vmatprep.mubr.f32.mxu0 0.0
        %2608 = vmatmul.mubr.f32.gmra.mrb[0].mxu0 %v2416
        %v2609 = vpop.f32.mrb[0].mxu0
        %v2610 = vadd.f32 0.0, %v2609
        %v2611 = vpop.f32.mrb[0].mxu0
        %2612 = vmatprep.mubr.f32.mxu0 0.0
        %2613 = vmatmul.mubr.f32.gmra.mrb[0].mxu0 %v2419
        %v2614 = vpop.f32.mrb[0].mxu0
        %v2615 = vadd.f32 0.0, %v2614
        %v2616 = vpop.f32.mrb[0].mxu0
        %2617 = vmatprep.mubr.f32.mxu0 0.0
        %2618 = vmatmul.mubr.f32.gmra.mrb[0].mxu0 %v2422
        %v2619 = vpop.f32.mrb[0].mxu0
        %v2620 = vadd.f32 0.0, %v2619
        %v2621 = vpop.f32.mrb[0].mxu0
        %2622 = vmatprep.mubr.f32.mxu0 0.0
        %2623 = vmatmul.mubr.f32.gmra.mrb[0].mxu0 %v2425
        %v2624 = vpop.f32.mrb[0].mxu0
        %v2625 = vadd.f32 0.0, %v2624
        %v2626 = vpop.f32.mrb[0].mxu0
        %2627 = vmatprep.mubr.f32.mxu0 0.0
        %2628 = vmatmul.mubr.f32.gmra.mrb[0].mxu0 %v2428
        %v2629 = vpop.f32.mrb[0].mxu0
        %v2630 = vadd.f32 0.0, %v2629
        %v2631 = vpop.f32.mrb[0].mxu0
        %2632 = vmatprep.mubr.f32.mxu0 0.0
        %2633 = vmatmul.mubr.f32.gmra.mrb[0].mxu0 %v2431
        %v2634 = vpop.f32.mrb[0].mxu0
        %v2635 = vadd.f32 0.0, %v2634
        %v2636 = vpop.f32.mrb[0].mxu0
        %2637 = vmatprep.mubr.f32.mxu0 0.0
        %2638 = vmatmul.mubr.f32.gmra.mrb[0].mxu0 %v2434
        %v2639 = vpop.f32.mrb[0].mxu0
        %v2640 = vadd.f32 0.0, %v2639
        %v2641 = vpop.f32.mrb[0].mxu0
        %2642 = vmatprep.mubr.f32.mxu0 0.0
        %2643 = vmatmul.mubr.f32.gmra.mrb[0].mxu0 %v2437
        %v2644 = vpop.f32.mrb[0].mxu0
        %v2645 = vadd.f32 0.0, %v2644
        %v2646 = vpop.f32.mrb[0].mxu0
        %2647 = vmatprep.mubr.f32.mxu0 0.0
        %2648 = vmatmul.mubr.f32.gmra.mrb[0].mxu0 %v2440
        %v2649 = vpop.f32.mrb[0].mxu0
        %v2650 = vadd.f32 0.0, %v2649
        %v2651 = vpop.f32.mrb[0].mxu0
        %2652 = vmatprep.mubr.f32.mxu0 0.0
        %2653 = vmatmul.mubr.f32.gmra.mrb[0].mxu0 %v2443
        %v2654 = vpop.f32.mrb[0].mxu0
        %v2655 = vadd.f32 0.0, %v2654
        %v2656 = vpop.f32.mrb[0].mxu0
        %2657 = vmatprep.mubr.f32.mxu0 0.0
        %2658 = vmatmul.mubr.f32.gmra.mrb[0].mxu0 %v2446
        %v2659 = vpop.f32.mrb[0].mxu0
        %v2660 = vadd.f32 0.0, %v2659
        %v2661 = vpop.f32.mrb[0].mxu0
        %2662 = vmatprep.mubr.f32.mxu0 0.0
        %2663 = vmatmul.mubr.f32.gmra.mrb[0].mxu0 %v2449
        %v2664 = vpop.f32.mrb[0].mxu0
        %v2665 = vadd.f32 0.0, %v2664
        %v2666 = vpop.f32.mrb[0].mxu0
        %2667 = vmatprep.mubr.f32.mxu0 0.0
        %2668 = vmatmul.mubr.f32.gmra.mrb[0].mxu0 %v2452
        %v2669 = vpop.f32.mrb[0].mxu0
        %v2670 = vadd.f32 0.0, %v2669
        %v2671 = vpop.f32.mrb[0].mxu0
        %2672 = vmatprep.mubr.f32.mxu0 0.0
        %2673 = vmatmul.mubr.f32.gmra.mrb[0].mxu0 %v2455
        %v2674 = vpop.f32.mrb[0].mxu0
        %v2675 = vadd.f32 0.0, %v2674
        %v2676 = vpop.f32.mrb[0].mxu0
        %2677 = vmatprep.mubr.f32.mxu0 0.0
        %2678 = vmatmul.mubr.f32.gmra.mrb[0].mxu0 %v2458
        %v2679 = vpop.f32.mrb[0].mxu0
        %v2680 = vadd.f32 0.0, %v2679
        %v2681 = vpop.f32.mrb[0].mxu0
        %2682 = vmatprep.mubr.f32.mxu0 0.0
        %2683 = vmatmul.mubr.f32.gmra.mrb[0].mxu0 %v2461
        %v2684 = vpop.f32.mrb[0].mxu0
        %v2685 = vadd.f32 0.0, %v2684
        %v2686 = vpop.f32.mrb[0].mxu0
        %2687 = vdwg.mxu0
        %v2688 = vadd.f32 %v2262, %v2530
        %v2689 = vadd.f32 %v2263, %v2535
        %v2690 = vadd.f32 %v2264, %v2540
        %v2691 = vadd.f32 %v2265, %v2545
        %v2692 = vadd.f32 %v2266, %v2550
        %v2693 = vadd.f32 %v2267, %v2555
        %v2694 = vadd.f32 %v2268, %v2560
        %v2695 = vadd.f32 %v2269, %v2565
        %v2696 = vadd.f32 %v2270, %v2570
        %v2697 = vadd.f32 %v2271, %v2575
        %v2698 = vadd.f32 %v2272, %v2580
        %v2699 = vadd.f32 %v2273, %v2585
        %v2700 = vadd.f32 %v2274, %v2590
        %v2701 = vadd.f32 %v2275, %v2595
        %v2702 = vadd.f32 %v2276, %v2600
        %v2703 = vadd.f32 %v2277, %v2605
        %v2704 = vadd.f32 %v2278, %v2610
        %v2705 = vadd.f32 %v2279, %v2615
        %v2706 = vadd.f32 %v2280, %v2620
        %v2707 = vadd.f32 %v2281, %v2625
        %v2708 = vadd.f32 %v2282, %v2630
        %v2709 = vadd.f32 %v2283, %v2635
        %v2710 = vadd.f32 %v2284, %v2640
        %v2711 = vadd.f32 %v2285, %v2645
        %v2712 = vadd.f32 %v2286, %v2650
        %v2713 = vadd.f32 %v2287, %v2655
        %v2714 = vadd.f32 %v2288, %v2660
        %v2715 = vadd.f32 %v2289, %v2665
        %v2716 = vadd.f32 %v2290, %v2670
        %v2717 = vadd.f32 %v2291, %v2675
        %v2718 = vadd.f32 %v2292, %v2680
        %v2719 = vadd.f32 %v2293, %v2685
        %v2720 = vld [vmem:[#allocation2 + $0x18] sm:$0xff]
        %v2721 = vld [vmem:[#allocation2 + $0x20] sm:$0xff]
        %v2722 = vld [vmem:[#allocation2 + $0x28] sm:$0xff]
        %v2723 = vld [vmem:[#allocation2 + $0x30] sm:$0xff]
        %v2724 = vld [vmem:[#allocation2 + $0x38] sm:$0xff]
        %v2725 = vld [vmem:[#allocation2 + $0x40] sm:$0xff]
        %v2726 = vld [vmem:[#allocation2 + $0x48] sm:$0xff]
        %v2727 = vld [vmem:[#allocation2 + $0x50] sm:$0xff]
        %v2728 = vld [vmem:[#allocation2 + $0x58] sm:$0xff]
        %v2729 = vld [vmem:[#allocation2 + $0x60] sm:$0xff]
        %v2730 = vld [vmem:[#allocation2 + $0x68] sm:$0xff]
        %v2731 = vld [vmem:[#allocation2 + $0x70] sm:$0xff]
        %v2732 = vld [vmem:[#allocation2 + $0x78] sm:$0xff]
        %v2733 = vld [vmem:[#allocation2 + $0x80] sm:$0xff]
        %v2734 = vld [vmem:[#allocation2 + $0x88] sm:$0xff]
        %v2735 = vld [vmem:[#allocation2 + $0x90] sm:$0xff]
        %v2736 = vld [vmem:[#allocation2 + $0x98] sm:$0xff]
        %v2737 = vld [vmem:[#allocation2 + $0xa0] sm:$0xff]
        %v2738 = vld [vmem:[#allocation2 + $0xa8] sm:$0xff]
        %v2739 = vld [vmem:[#allocation2 + $0xb0] sm:$0xff]
        %v2740 = vld [vmem:[#allocation2 + $0xb8] sm:$0xff]
        %v2741 = vld [vmem:[#allocation2 + $0xc0] sm:$0xff]
        %v2742 = vld [vmem:[#allocation2 + $0xc8] sm:$0xff]
        %v2743 = vld [vmem:[#allocation2 + $0xd0] sm:$0xff]
        %v2744 = vld [vmem:[#allocation2 + $0xd8] sm:$0xff]
        %v2745 = vld [vmem:[#allocation2 + $0xe0] sm:$0xff]
        %v2746 = vld [vmem:[#allocation2 + $0xe8] sm:$0xff]
        %v2747 = vld [vmem:[#allocation2 + $0xf0] sm:$0xff]
        %v2748 = vld [vmem:[#allocation2 + $0xf8] sm:$0xff]
        %v2749 = vld [vmem:[#allocation2 + $0x100] sm:$0xff]
        %v2750 = vld [vmem:[#allocation2 + $0x108] sm:$0xff]
        %v2751 = vld [vmem:[#allocation2 + $0x110] sm:$0xff]
        %s2752 = scalar_lea.vmem %s2, 256
        %v2753 = vld [vmem:[%s2752] sm:$0xff]
        %v2754 = vld [vmem:[%s2752 + $0x8] sm:$0xff]
        %v2755 = vld [vmem:[%s2752 + $0x10] sm:$0xff]
        %v2756 = vld [vmem:[%s2752 + $0x18] sm:$0xff]
        %v2757 = vld [vmem:[%s2752 + $0x20] sm:$0xff]
        %v2758 = vld [vmem:[%s2752 + $0x28] sm:$0xff]
        %v2759 = vld [vmem:[%s2752 + $0x30] sm:$0xff]
        %v2760 = vld [vmem:[%s2752 + $0x38] sm:$0xff]
        %v2762 = vsel %vm690, %v2720, 0
        %v2765 = vsel %vm690, %v2721, 0
        %v2768 = vsel %vm690, %v2722, 0
        %v2771 = vsel %vm690, %v2723, 0
        %v2774 = vsel %vm690, %v2724, 0
        %v2777 = vsel %vm690, %v2725, 0
        %v2780 = vsel %vm690, %v2726, 0
        %v2783 = vsel %vm690, %v2727, 0
        %v2786 = vsel %vm690, %v2728, 0
        %v2789 = vsel %vm690, %v2729, 0
        %v2792 = vsel %vm690, %v2730, 0
        %v2795 = vsel %vm690, %v2731, 0
        %v2798 = vsel %vm690, %v2732, 0
        %v2801 = vsel %vm690, %v2733, 0
        %v2804 = vsel %vm690, %v2734, 0
        %v2807 = vsel %vm690, %v2735, 0
        %v2810 = vsel %vm690, %v2736, 0
        %v2813 = vsel %vm690, %v2737, 0
        %v2816 = vsel %vm690, %v2738, 0
        %v2819 = vsel %vm690, %v2739, 0
        %v2822 = vsel %vm690, %v2740, 0
        %v2825 = vsel %vm690, %v2741, 0
        %v2828 = vsel %vm690, %v2742, 0
        %v2831 = vsel %vm690, %v2743, 0
        %v2834 = vsel %vm690, %v2744, 0
        %v2837 = vsel %vm690, %v2745, 0
        %v2840 = vsel %vm690, %v2746, 0
        %v2843 = vsel %vm690, %v2747, 0
        %v2846 = vsel %vm690, %v2748, 0
        %v2849 = vsel %vm690, %v2749, 0
        %v2852 = vsel %vm690, %v2750, 0
        %v2855 = vsel %vm690, %v2751, 0
        %2857 = vmatprep.subr.mxu0 0.0
        %2858 = vmatpush1.msra.mxu0 %v2753
        %2859 = vmatprep.subr.mxu0 0.0
        %2860 = vmatpush1.msra.mxu0 %v2754
        %2861 = vmatprep.subr.mxu0 0.0
        %2862 = vmatpush1.msra.mxu0 %v2755
        %2863 = vmatprep.subr.mxu0 0.0
        %2864 = vmatpush1.msra.mxu0 %v2756
        %2865 = vmatprep.subr.mxu0 0.0
        %2866 = vmatpush1.msra.mxu0 %v2757
        %2867 = vmatprep.subr.mxu0 0.0
        %2868 = vmatpush1.msra.mxu0 %v2758
        %2869 = vmatprep.subr.mxu0 0.0
        %2870 = vmatpush1.msra.mxu0 %v2759
        %2871 = vmatprep.subr.mxu0 0.0
        %2872 = vmatpush1.msra.mxu0 %v2760
        %2873 = vmatprep.subr.mxu0 0.0
        %2874 = vmatpush1.msra.mxu0 0.0
        %2875 = vmatprep.subr.mxu0 0.0
        %2876 = vmatpush1.msra.mxu0 0.0
        %2877 = vmatprep.subr.mxu0 0.0
        %2878 = vmatpush1.msra.mxu0 0.0
        %2879 = vmatprep.subr.mxu0 0.0
        %2880 = vmatpush1.msra.mxu0 0.0
        %2881 = vmatprep.subr.mxu0 0.0
        %2882 = vmatpush1.msra.mxu0 0.0
        %2883 = vmatprep.subr.mxu0 0.0
        %2884 = vmatpush1.msra.mxu0 0.0
        %2885 = vmatprep.subr.mxu0 0.0
        %2886 = vmatpush1.msra.mxu0 0.0
        %2887 = vmatprep.subr.mxu0 0.0
        %2888 = vmatpush1.msra.mxu0 0.0
        %2889 = vmatprep.subr.mxu0 0.0
        %2890 = vmatpush1.msra.mxu0 0.0
        %2891 = vmatprep.subr.mxu0 0.0
        %2892 = vmatpush1.msra.mxu0 0.0
        %2893 = vmatprep.subr.mxu0 0.0
        %2894 = vmatpush1.msra.mxu0 0.0
        %2895 = vmatprep.subr.mxu0 0.0
        %2896 = vmatpush1.msra.mxu0 0.0
        %2897 = vmatprep.subr.mxu0 0.0
        %2898 = vmatpush1.msra.mxu0 0.0
        %2899 = vmatprep.subr.mxu0 0.0
        %2900 = vmatpush1.msra.mxu0 0.0
        %2901 = vmatprep.subr.mxu0 0.0
        %2902 = vmatpush1.msra.mxu0 0.0
        %2903 = vmatprep.subr.mxu0 0.0
        %2904 = vmatpush1.msra.mxu0 0.0
        %2905 = vmatprep.subr.mxu0 0.0
        %2906 = vmatpush1.msra.mxu0 0.0
        %2907 = vmatprep.subr.mxu0 0.0
        %2908 = vmatpush1.msra.mxu0 0.0
        %2909 = vmatprep.subr.mxu0 0.0
        %2910 = vmatpush1.msra.mxu0 0.0
        %2911 = vmatprep.subr.mxu0 0.0
        %2912 = vmatpush1.msra.mxu0 0.0
        %2913 = vmatprep.subr.mxu0 0.0
        %2914 = vmatpush1.msra.mxu0 0.0
        %2915 = vmatprep.subr.mxu0 0.0
        %2916 = vmatpush1.msra.mxu0 0.0
        %2917 = vmatprep.subr.mxu0 0.0
        %2918 = vmatpush1.msra.mxu0 0.0
        %2919 = vmatprep.subr.mxu0 0.0
        %2920 = vmatpush1.msra.mxu0 0.0
        %2921 = vmatprep.mubr.f32.mxu0 0.0
        %2922 = vmatmul.mubr.f32.gmra.mrb[0].mxu0 %v2762
        %v2923 = vpop.f32.mrb[0].mxu0
        %v2924 = vadd.f32 0.0, %v2923
        %v2925 = vpop.f32.mrb[0].mxu0
        %2926 = vmatprep.mubr.f32.mxu0 0.0
        %2927 = vmatmul.mubr.f32.gmra.mrb[0].mxu0 %v2765
        %v2928 = vpop.f32.mrb[0].mxu0
        %v2929 = vadd.f32 0.0, %v2928
        %v2930 = vpop.f32.mrb[0].mxu0
        %2931 = vmatprep.mubr.f32.mxu0 0.0
        %2932 = vmatmul.mubr.f32.gmra.mrb[0].mxu0 %v2768
        %v2933 = vpop.f32.mrb[0].mxu0
        %v2934 = vadd.f32 0.0, %v2933
        %v2935 = vpop.f32.mrb[0].mxu0
        %2936 = vmatprep.mubr.f32.mxu0 0.0
        %2937 = vmatmul.mubr.f32.gmra.mrb[0].mxu0 %v2771
        %v2938 = vpop.f32.mrb[0].mxu0
        %v2939 = vadd.f32 0.0, %v2938
        %v2940 = vpop.f32.mrb[0].mxu0
        %2941 = vmatprep.mubr.f32.mxu0 0.0
        %2942 = vmatmul.mubr.f32.gmra.mrb[0].mxu0 %v2774
        %v2943 = vpop.f32.mrb[0].mxu0
        %v2944 = vadd.f32 0.0, %v2943
        %v2945 = vpop.f32.mrb[0].mxu0
        %2946 = vmatprep.mubr.f32.mxu0 0.0
        %2947 = vmatmul.mubr.f32.gmra.mrb[0].mxu0 %v2777
        %v2948 = vpop.f32.mrb[0].mxu0
        %v2949 = vadd.f32 0.0, %v2948
        %v2950 = vpop.f32.mrb[0].mxu0
        %2951 = vmatprep.mubr.f32.mxu0 0.0
        %2952 = vmatmul.mubr.f32.gmra.mrb[0].mxu0 %v2780
        %v2953 = vpop.f32.mrb[0].mxu0
        %v2954 = vadd.f32 0.0, %v2953
        %v2955 = vpop.f32.mrb[0].mxu0
        %2956 = vmatprep.mubr.f32.mxu0 0.0
        %2957 = vmatmul.mubr.f32.gmra.mrb[0].mxu0 %v2783
        %v2958 = vpop.f32.mrb[0].mxu0
        %v2959 = vadd.f32 0.0, %v2958
        %v2960 = vpop.f32.mrb[0].mxu0
        %2961 = vmatprep.mubr.f32.mxu0 0.0
        %2962 = vmatmul.mubr.f32.gmra.mrb[0].mxu0 %v2786
        %v2963 = vpop.f32.mrb[0].mxu0
        %v2964 = vadd.f32 0.0, %v2963
        %v2965 = vpop.f32.mrb[0].mxu0
        %2966 = vmatprep.mubr.f32.mxu0 0.0
        %2967 = vmatmul.mubr.f32.gmra.mrb[0].mxu0 %v2789
        %v2968 = vpop.f32.mrb[0].mxu0
        %v2969 = vadd.f32 0.0, %v2968
        %v2970 = vpop.f32.mrb[0].mxu0
        %2971 = vmatprep.mubr.f32.mxu0 0.0
        %2972 = vmatmul.mubr.f32.gmra.mrb[0].mxu0 %v2792
        %v2973 = vpop.f32.mrb[0].mxu0
        %v2974 = vadd.f32 0.0, %v2973
        %v2975 = vpop.f32.mrb[0].mxu0
        %2976 = vmatprep.mubr.f32.mxu0 0.0
        %2977 = vmatmul.mubr.f32.gmra.mrb[0].mxu0 %v2795
        %v2978 = vpop.f32.mrb[0].mxu0
        %v2979 = vadd.f32 0.0, %v2978
        %v2980 = vpop.f32.mrb[0].mxu0
        %2981 = vmatprep.mubr.f32.mxu0 0.0
        %2982 = vmatmul.mubr.f32.gmra.mrb[0].mxu0 %v2798
        %v2983 = vpop.f32.mrb[0].mxu0
        %v2984 = vadd.f32 0.0, %v2983
        %v2985 = vpop.f32.mrb[0].mxu0
        %2986 = vmatprep.mubr.f32.mxu0 0.0
        %2987 = vmatmul.mubr.f32.gmra.mrb[0].mxu0 %v2801
        %v2988 = vpop.f32.mrb[0].mxu0
        %v2989 = vadd.f32 0.0, %v2988
        %v2990 = vpop.f32.mrb[0].mxu0
        %2991 = vmatprep.mubr.f32.mxu0 0.0
        %2992 = vmatmul.mubr.f32.gmra.mrb[0].mxu0 %v2804
        %v2993 = vpop.f32.mrb[0].mxu0
        %v2994 = vadd.f32 0.0, %v2993
        %v2995 = vpop.f32.mrb[0].mxu0
        %2996 = vmatprep.mubr.f32.mxu0 0.0
        %2997 = vmatmul.mubr.f32.gmra.mrb[0].mxu0 %v2807
        %v2998 = vpop.f32.mrb[0].mxu0
        %v2999 = vadd.f32 0.0, %v2998
        %v3000 = vpop.f32.mrb[0].mxu0
        %3001 = vmatprep.mubr.f32.mxu0 0.0
        %3002 = vmatmul.mubr.f32.gmra.mrb[0].mxu0 %v2810
        %v3003 = vpop.f32.mrb[0].mxu0
        %v3004 = vadd.f32 0.0, %v3003
        %v3005 = vpop.f32.mrb[0].mxu0
        %3006 = vmatprep.mubr.f32.mxu0 0.0
        %3007 = vmatmul.mubr.f32.gmra.mrb[0].mxu0 %v2813
        %v3008 = vpop.f32.mrb[0].mxu0
        %v3009 = vadd.f32 0.0, %v3008
        %v3010 = vpop.f32.mrb[0].mxu0
        %3011 = vmatprep.mubr.f32.mxu0 0.0
        %3012 = vmatmul.mubr.f32.gmra.mrb[0].mxu0 %v2816
        %v3013 = vpop.f32.mrb[0].mxu0
        %v3014 = vadd.f32 0.0, %v3013
        %v3015 = vpop.f32.mrb[0].mxu0
        %3016 = vmatprep.mubr.f32.mxu0 0.0
        %3017 = vmatmul.mubr.f32.gmra.mrb[0].mxu0 %v2819
        %v3018 = vpop.f32.mrb[0].mxu0
        %v3019 = vadd.f32 0.0, %v3018
        %v3020 = vpop.f32.mrb[0].mxu0
        %3021 = vmatprep.mubr.f32.mxu0 0.0
        %3022 = vmatmul.mubr.f32.gmra.mrb[0].mxu0 %v2822
        %v3023 = vpop.f32.mrb[0].mxu0
        %v3024 = vadd.f32 0.0, %v3023
        %v3025 = vpop.f32.mrb[0].mxu0
        %3026 = vmatprep.mubr.f32.mxu0 0.0
        %3027 = vmatmul.mubr.f32.gmra.mrb[0].mxu0 %v2825
        %v3028 = vpop.f32.mrb[0].mxu0
        %v3029 = vadd.f32 0.0, %v3028
        %v3030 = vpop.f32.mrb[0].mxu0
        %3031 = vmatprep.mubr.f32.mxu0 0.0
        %3032 = vmatmul.mubr.f32.gmra.mrb[0].mxu0 %v2828
        %v3033 = vpop.f32.mrb[0].mxu0
        %v3034 = vadd.f32 0.0, %v3033
        %v3035 = vpop.f32.mrb[0].mxu0
        %3036 = vmatprep.mubr.f32.mxu0 0.0
        %3037 = vmatmul.mubr.f32.gmra.mrb[0].mxu0 %v2831
        %v3038 = vpop.f32.mrb[0].mxu0
        %v3039 = vadd.f32 0.0, %v3038
        %v3040 = vpop.f32.mrb[0].mxu0
        %3041 = vmatprep.mubr.f32.mxu0 0.0
        %3042 = vmatmul.mubr.f32.gmra.mrb[0].mxu0 %v2834
        %v3043 = vpop.f32.mrb[0].mxu0
        %v3044 = vadd.f32 0.0, %v3043
        %v3045 = vpop.f32.mrb[0].mxu0
        %3046 = vmatprep.mubr.f32.mxu0 0.0
        %3047 = vmatmul.mubr.f32.gmra.mrb[0].mxu0 %v2837
        %v3048 = vpop.f32.mrb[0].mxu0
        %v3049 = vadd.f32 0.0, %v3048
        %v3050 = vpop.f32.mrb[0].mxu0
        %3051 = vmatprep.mubr.f32.mxu0 0.0
        %3052 = vmatmul.mubr.f32.gmra.mrb[0].mxu0 %v2840
        %v3053 = vpop.f32.mrb[0].mxu0
        %v3054 = vadd.f32 0.0, %v3053
        %v3055 = vpop.f32.mrb[0].mxu0
        %3056 = vmatprep.mubr.f32.mxu0 0.0
        %3057 = vmatmul.mubr.f32.gmra.mrb[0].mxu0 %v2843
        %v3058 = vpop.f32.mrb[0].mxu0
        %v3059 = vadd.f32 0.0, %v3058
        %v3060 = vpop.f32.mrb[0].mxu0
        %3061 = vmatprep.mubr.f32.mxu0 0.0
        %3062 = vmatmul.mubr.f32.gmra.mrb[0].mxu0 %v2846
        %v3063 = vpop.f32.mrb[0].mxu0
        %v3064 = vadd.f32 0.0, %v3063
        %v3065 = vpop.f32.mrb[0].mxu0
        %3066 = vmatprep.mubr.f32.mxu0 0.0
        %3067 = vmatmul.mubr.f32.gmra.mrb[0].mxu0 %v2849
        %v3068 = vpop.f32.mrb[0].mxu0
        %v3069 = vadd.f32 0.0, %v3068
        %v3070 = vpop.f32.mrb[0].mxu0
        %3071 = vmatprep.mubr.f32.mxu0 0.0
        %3072 = vmatmul.mubr.f32.gmra.mrb[0].mxu0 %v2852
        %v3073 = vpop.f32.mrb[0].mxu0
        %v3074 = vadd.f32 0.0, %v3073
        %v3075 = vpop.f32.mrb[0].mxu0
        %3076 = vmatprep.mubr.f32.mxu0 0.0
        %3077 = vmatmul.mubr.f32.gmra.mrb[0].mxu0 %v2855
        %v3078 = vpop.f32.mrb[0].mxu0
        %v3079 = vadd.f32 0.0, %v3078
        %v3080 = vpop.f32.mrb[0].mxu0
        %3081 = vdwg.mxu0
        %v3082 = vadd.f32 %v2688, %v2924
        %v3083 = vadd.f32 %v2689, %v2929
        %v3084 = vadd.f32 %v2690, %v2934
        %v3085 = vadd.f32 %v2691, %v2939
        %v3086 = vadd.f32 %v2692, %v2944
        %v3087 = vadd.f32 %v2693, %v2949
        %v3088 = vadd.f32 %v2694, %v2954
        %v3089 = vadd.f32 %v2695, %v2959
        %v3090 = vadd.f32 %v2696, %v2964
        %v3091 = vadd.f32 %v2697, %v2969
        %v3092 = vadd.f32 %v2698, %v2974
        %v3093 = vadd.f32 %v2699, %v2979
        %v3094 = vadd.f32 %v2700, %v2984
        %v3095 = vadd.f32 %v2701, %v2989
        %v3096 = vadd.f32 %v2702, %v2994
        %v3097 = vadd.f32 %v2703, %v2999
        %v3098 = vadd.f32 %v2704, %v3004
        %v3099 = vadd.f32 %v2705, %v3009
        %v3100 = vadd.f32 %v2706, %v3014
        %v3101 = vadd.f32 %v2707, %v3019
        %v3102 = vadd.f32 %v2708, %v3024
        %v3103 = vadd.f32 %v2709, %v3029
        %v3104 = vadd.f32 %v2710, %v3034
        %v3105 = vadd.f32 %v2711, %v3039
        %v3106 = vadd.f32 %v2712, %v3044
        %v3107 = vadd.f32 %v2713, %v3049
        %v3108 = vadd.f32 %v2714, %v3054
        %v3109 = vadd.f32 %v2715, %v3059
        %v3110 = vadd.f32 %v2716, %v3064
        %v3111 = vadd.f32 %v2717, %v3069
        %v3112 = vadd.f32 %v2718, %v3074
        %v3113 = vadd.f32 %v2719, %v3079
        %v3114 = vld [vmem:[#allocation2 + $0x19] sm:$0xff]
        %v3115 = vld [vmem:[#allocation2 + $0x21] sm:$0xff]
        %v3116 = vld [vmem:[#allocation2 + $0x29] sm:$0xff]
        %v3117 = vld [vmem:[#allocation2 + $0x31] sm:$0xff]
        %v3118 = vld [vmem:[#allocation2 + $0x39] sm:$0xff]
        %v3119 = vld [vmem:[#allocation2 + $0x41] sm:$0xff]
        %v3120 = vld [vmem:[#allocation2 + $0x49] sm:$0xff]
        %v3121 = vld [vmem:[#allocation2 + $0x51] sm:$0xff]
        %v3122 = vld [vmem:[#allocation2 + $0x59] sm:$0xff]
        %v3123 = vld [vmem:[#allocation2 + $0x61] sm:$0xff]
        %v3124 = vld [vmem:[#allocation2 + $0x69] sm:$0xff]
        %v3125 = vld [vmem:[#allocation2 + $0x71] sm:$0xff]
        %v3126 = vld [vmem:[#allocation2 + $0x79] sm:$0xff]
        %v3127 = vld [vmem:[#allocation2 + $0x81] sm:$0xff]
        %v3128 = vld [vmem:[#allocation2 + $0x89] sm:$0xff]
        %v3129 = vld [vmem:[#allocation2 + $0x91] sm:$0xff]
        %v3130 = vld [vmem:[#allocation2 + $0x99] sm:$0xff]
        %v3131 = vld [vmem:[#allocation2 + $0xa1] sm:$0xff]
        %v3132 = vld [vmem:[#allocation2 + $0xa9] sm:$0xff]
        %v3133 = vld [vmem:[#allocation2 + $0xb1] sm:$0xff]
        %v3134 = vld [vmem:[#allocation2 + $0xb9] sm:$0xff]
        %v3135 = vld [vmem:[#allocation2 + $0xc1] sm:$0xff]
        %v3136 = vld [vmem:[#allocation2 + $0xc9] sm:$0xff]
        %v3137 = vld [vmem:[#allocation2 + $0xd1] sm:$0xff]
        %v3138 = vld [vmem:[#allocation2 + $0xd9] sm:$0xff]
        %v3139 = vld [vmem:[#allocation2 + $0xe1] sm:$0xff]
        %v3140 = vld [vmem:[#allocation2 + $0xe9] sm:$0xff]
        %v3141 = vld [vmem:[#allocation2 + $0xf1] sm:$0xff]
        %v3142 = vld [vmem:[#allocation2 + $0xf9] sm:$0xff]
        %v3143 = vld [vmem:[#allocation2 + $0x101] sm:$0xff]
        %v3144 = vld [vmem:[#allocation2 + $0x109] sm:$0xff]
        %v3145 = vld [vmem:[#allocation2 + $0x111] sm:$0xff]
        %v3146 = vmul.f32 %v3114, %v1743
        %v3147 = vmul.f32 %v3115, %v1748
        %v3148 = vmul.f32 %v3116, %v1753
        %v3149 = vmul.f32 %v3117, %v1758
        %v3150 = vmul.f32 %v3118, %v1763
        %v3151 = vmul.f32 %v3119, %v1768
        %v3152 = vmul.f32 %v3120, %v1773
        %v3153 = vmul.f32 %v3121, %v1778
        %v3154 = vmul.f32 %v3122, %v1783
        %v3155 = vmul.f32 %v3123, %v1788
        %v3156 = vmul.f32 %v3124, %v1793
        %v3157 = vmul.f32 %v3125, %v1798
        %v3158 = vmul.f32 %v3126, %v1803
        %v3159 = vmul.f32 %v3127, %v1808
        %v3160 = vmul.f32 %v3128, %v1813
        %v3161 = vmul.f32 %v3129, %v1818
        %v3162 = vmul.f32 %v3130, %v1823
        %v3163 = vmul.f32 %v3131, %v1828
        %v3164 = vmul.f32 %v3132, %v1833
        %v3165 = vmul.f32 %v3133, %v1838
        %v3166 = vmul.f32 %v3134, %v1843
        %v3167 = vmul.f32 %v3135, %v1848
        %v3168 = vmul.f32 %v3136, %v1853
        %v3169 = vmul.f32 %v3137, %v1858
        %v3170 = vmul.f32 %v3138, %v1863
        %v3171 = vmul.f32 %v3139, %v1868
        %v3172 = vmul.f32 %v3140, %v1873
        %v3173 = vmul.f32 %v3141, %v1878
        %v3174 = vmul.f32 %v3142, %v1883
        %v3175 = vmul.f32 %v3143, %v1888
        %v3176 = vmul.f32 %v3144, %v1893
        %v3177 = vmul.f32 %v3145, %v1898
        %s3178 = scalar_lea.vmem %s2, 320
        %v3179 = vld [vmem:[%s3178] sm:$0xff]
        %v3180 = vld [vmem:[%s3178 + $0x8] sm:$0xff]
        %v3181 = vld [vmem:[%s3178 + $0x10] sm:$0xff]
        %v3182 = vld [vmem:[%s3178 + $0x18] sm:$0xff]
        %v3183 = vld [vmem:[%s3178 + $0x20] sm:$0xff]
        %v3184 = vld [vmem:[%s3178 + $0x28] sm:$0xff]
        %v3185 = vld [vmem:[%s3178 + $0x30] sm:$0xff]
        %v3186 = vld [vmem:[%s3178 + $0x38] sm:$0xff]
        %v3188 = vsel %vm690, %v3146, 0
        %v3191 = vsel %vm690, %v3147, 0
        %v3194 = vsel %vm690, %v3148, 0
        %v3197 = vsel %vm690, %v3149, 0
        %v3200 = vsel %vm690, %v3150, 0
        %v3203 = vsel %vm690, %v3151, 0
        %v3206 = vsel %vm690, %v3152, 0
        %v3209 = vsel %vm690, %v3153, 0
        %v3212 = vsel %vm690, %v3154, 0
        %v3215 = vsel %vm690, %v3155, 0
        %v3218 = vsel %vm690, %v3156, 0
        %v3221 = vsel %vm690, %v3157, 0
        %v3224 = vsel %vm690, %v3158, 0
        %v3227 = vsel %vm690, %v3159, 0
        %v3230 = vsel %vm690, %v3160, 0
        %v3233 = vsel %vm690, %v3161, 0
        %v3236 = vsel %vm690, %v3162, 0
        %v3239 = vsel %vm690, %v3163, 0
        %v3242 = vsel %vm690, %v3164, 0
        %v3245 = vsel %vm690, %v3165, 0
        %v3248 = vsel %vm690, %v3166, 0
        %v3251 = vsel %vm690, %v3167, 0
        %v3254 = vsel %vm690, %v3168, 0
        %v3257 = vsel %vm690, %v3169, 0
        %v3260 = vsel %vm690, %v3170, 0
        %v3263 = vsel %vm690, %v3171, 0
        %v3266 = vsel %vm690, %v3172, 0
        %v3269 = vsel %vm690, %v3173, 0
        %v3272 = vsel %vm690, %v3174, 0
        %v3275 = vsel %vm690, %v3175, 0
        %v3278 = vsel %vm690, %v3176, 0
        %v3281 = vsel %vm690, %v3177, 0
        %3283 = vmatprep.subr.mxu0 0.0
        %3284 = vmatpush1.msra.mxu0 %v3179
        %3285 = vmatprep.subr.mxu0 0.0
        %3286 = vmatpush1.msra.mxu0 %v3180
        %3287 = vmatprep.subr.mxu0 0.0
        %3288 = vmatpush1.msra.mxu0 %v3181
        %3289 = vmatprep.subr.mxu0 0.0
        %3290 = vmatpush1.msra.mxu0 %v3182
        %3291 = vmatprep.subr.mxu0 0.0
        %3292 = vmatpush1.msra.mxu0 %v3183
        %3293 = vmatprep.subr.mxu0 0.0
        %3294 = vmatpush1.msra.mxu0 %v3184
        %3295 = vmatprep.subr.mxu0 0.0
        %3296 = vmatpush1.msra.mxu0 %v3185
        %3297 = vmatprep.subr.mxu0 0.0
        %3298 = vmatpush1.msra.mxu0 %v3186
        %3299 = vmatprep.subr.mxu0 0.0
        %3300 = vmatpush1.msra.mxu0 0.0
        %3301 = vmatprep.subr.mxu0 0.0
        %3302 = vmatpush1.msra.mxu0 0.0
        %3303 = vmatprep.subr.mxu0 0.0
        %3304 = vmatpush1.msra.mxu0 0.0
        %3305 = vmatprep.subr.mxu0 0.0
        %3306 = vmatpush1.msra.mxu0 0.0
        %3307 = vmatprep.subr.mxu0 0.0
        %3308 = vmatpush1.msra.mxu0 0.0
        %3309 = vmatprep.subr.mxu0 0.0
        %3310 = vmatpush1.msra.mxu0 0.0
        %3311 = vmatprep.subr.mxu0 0.0
        %3312 = vmatpush1.msra.mxu0 0.0
        %3313 = vmatprep.subr.mxu0 0.0
        %3314 = vmatpush1.msra.mxu0 0.0
        %3315 = vmatprep.subr.mxu0 0.0
        %3316 = vmatpush1.msra.mxu0 0.0
        %3317 = vmatprep.subr.mxu0 0.0
        %3318 = vmatpush1.msra.mxu0 0.0
        %3319 = vmatprep.subr.mxu0 0.0
        %3320 = vmatpush1.msra.mxu0 0.0
        %3321 = vmatprep.subr.mxu0 0.0
        %3322 = vmatpush1.msra.mxu0 0.0
        %3323 = vmatprep.subr.mxu0 0.0
        %3324 = vmatpush1.msra.mxu0 0.0
        %3325 = vmatprep.subr.mxu0 0.0
        %3326 = vmatpush1.msra.mxu0 0.0
        %3327 = vmatprep.subr.mxu0 0.0
        %3328 = vmatpush1.msra.mxu0 0.0
        %3329 = vmatprep.subr.mxu0 0.0
        %3330 = vmatpush1.msra.mxu0 0.0
        %3331 = vmatprep.subr.mxu0 0.0
        %3332 = vmatpush1.msra.mxu0 0.0
        %3333 = vmatprep.subr.mxu0 0.0
        %3334 = vmatpush1.msra.mxu0 0.0
        %3335 = vmatprep.subr.mxu0 0.0
        %3336 = vmatpush1.msra.mxu0 0.0
        %3337 = vmatprep.subr.mxu0 0.0
        %3338 = vmatpush1.msra.mxu0 0.0
        %3339 = vmatprep.subr.mxu0 0.0
        %3340 = vmatpush1.msra.mxu0 0.0
        %3341 = vmatprep.subr.mxu0 0.0
        %3342 = vmatpush1.msra.mxu0 0.0
        %3343 = vmatprep.subr.mxu0 0.0
        %3344 = vmatpush1.msra.mxu0 0.0
        %3345 = vmatprep.subr.mxu0 0.0
        %3346 = vmatpush1.msra.mxu0 0.0
        %3347 = vmatprep.mubr.f32.mxu0 0.0
        %3348 = vmatmul.mubr.f32.gmra.mrb[0].mxu0 %v3188
        %v3349 = vpop.f32.mrb[0].mxu0
        %v3350 = vadd.f32 0.0, %v3349
        %v3351 = vpop.f32.mrb[0].mxu0
        %3352 = vmatprep.mubr.f32.mxu0 0.0
        %3353 = vmatmul.mubr.f32.gmra.mrb[0].mxu0 %v3191
        %v3354 = vpop.f32.mrb[0].mxu0
        %v3355 = vadd.f32 0.0, %v3354
        %v3356 = vpop.f32.mrb[0].mxu0
        %3357 = vmatprep.mubr.f32.mxu0 0.0
        %3358 = vmatmul.mubr.f32.gmra.mrb[0].mxu0 %v3194
        %v3359 = vpop.f32.mrb[0].mxu0
        %v3360 = vadd.f32 0.0, %v3359
        %v3361 = vpop.f32.mrb[0].mxu0
        %3362 = vmatprep.mubr.f32.mxu0 0.0
        %3363 = vmatmul.mubr.f32.gmra.mrb[0].mxu0 %v3197
        %v3364 = vpop.f32.mrb[0].mxu0
        %v3365 = vadd.f32 0.0, %v3364
        %v3366 = vpop.f32.mrb[0].mxu0
        %3367 = vmatprep.mubr.f32.mxu0 0.0
        %3368 = vmatmul.mubr.f32.gmra.mrb[0].mxu0 %v3200
        %v3369 = vpop.f32.mrb[0].mxu0
        %v3370 = vadd.f32 0.0, %v3369
        %v3371 = vpop.f32.mrb[0].mxu0
        %3372 = vmatprep.mubr.f32.mxu0 0.0
        %3373 = vmatmul.mubr.f32.gmra.mrb[0].mxu0 %v3203
        %v3374 = vpop.f32.mrb[0].mxu0
        %v3375 = vadd.f32 0.0, %v3374
        %v3376 = vpop.f32.mrb[0].mxu0
        %3377 = vmatprep.mubr.f32.mxu0 0.0
        %3378 = vmatmul.mubr.f32.gmra.mrb[0].mxu0 %v3206
        %v3379 = vpop.f32.mrb[0].mxu0
        %v3380 = vadd.f32 0.0, %v3379
        %v3381 = vpop.f32.mrb[0].mxu0
        %3382 = vmatprep.mubr.f32.mxu0 0.0
        %3383 = vmatmul.mubr.f32.gmra.mrb[0].mxu0 %v3209
        %v3384 = vpop.f32.mrb[0].mxu0
        %v3385 = vadd.f32 0.0, %v3384
        %v3386 = vpop.f32.mrb[0].mxu0
        %3387 = vmatprep.mubr.f32.mxu0 0.0
        %3388 = vmatmul.mubr.f32.gmra.mrb[0].mxu0 %v3212
        %v3389 = vpop.f32.mrb[0].mxu0
        %v3390 = vadd.f32 0.0, %v3389
        %v3391 = vpop.f32.mrb[0].mxu0
        %3392 = vmatprep.mubr.f32.mxu0 0.0
        %3393 = vmatmul.mubr.f32.gmra.mrb[0].mxu0 %v3215
        %v3394 = vpop.f32.mrb[0].mxu0
        %v3395 = vadd.f32 0.0, %v3394
        %v3396 = vpop.f32.mrb[0].mxu0
        %3397 = vmatprep.mubr.f32.mxu0 0.0
        %3398 = vmatmul.mubr.f32.gmra.mrb[0].mxu0 %v3218
        %v3399 = vpop.f32.mrb[0].mxu0
        %v3400 = vadd.f32 0.0, %v3399
        %v3401 = vpop.f32.mrb[0].mxu0
        %3402 = vmatprep.mubr.f32.mxu0 0.0
        %3403 = vmatmul.mubr.f32.gmra.mrb[0].mxu0 %v3221
        %v3404 = vpop.f32.mrb[0].mxu0
        %v3405 = vadd.f32 0.0, %v3404
        %v3406 = vpop.f32.mrb[0].mxu0
        %3407 = vmatprep.mubr.f32.mxu0 0.0
        %3408 = vmatmul.mubr.f32.gmra.mrb[0].mxu0 %v3224
        %v3409 = vpop.f32.mrb[0].mxu0
        %v3410 = vadd.f32 0.0, %v3409
        %v3411 = vpop.f32.mrb[0].mxu0
        %3412 = vmatprep.mubr.f32.mxu0 0.0
        %3413 = vmatmul.mubr.f32.gmra.mrb[0].mxu0 %v3227
        %v3414 = vpop.f32.mrb[0].mxu0
        %v3415 = vadd.f32 0.0, %v3414
        %v3416 = vpop.f32.mrb[0].mxu0
        %3417 = vmatprep.mubr.f32.mxu0 0.0
        %3418 = vmatmul.mubr.f32.gmra.mrb[0].mxu0 %v3230
        %v3419 = vpop.f32.mrb[0].mxu0
        %v3420 = vadd.f32 0.0, %v3419
        %v3421 = vpop.f32.mrb[0].mxu0
        %3422 = vmatprep.mubr.f32.mxu0 0.0
        %3423 = vmatmul.mubr.f32.gmra.mrb[0].mxu0 %v3233
        %v3424 = vpop.f32.mrb[0].mxu0
        %v3425 = vadd.f32 0.0, %v3424
        %v3426 = vpop.f32.mrb[0].mxu0
        %3427 = vmatprep.mubr.f32.mxu0 0.0
        %3428 = vmatmul.mubr.f32.gmra.mrb[0].mxu0 %v3236
        %v3429 = vpop.f32.mrb[0].mxu0
        %v3430 = vadd.f32 0.0, %v3429
        %v3431 = vpop.f32.mrb[0].mxu0
        %3432 = vmatprep.mubr.f32.mxu0 0.0
        %3433 = vmatmul.mubr.f32.gmra.mrb[0].mxu0 %v3239
        %v3434 = vpop.f32.mrb[0].mxu0
        %v3435 = vadd.f32 0.0, %v3434
        %v3436 = vpop.f32.mrb[0].mxu0
        %3437 = vmatprep.mubr.f32.mxu0 0.0
        %3438 = vmatmul.mubr.f32.gmra.mrb[0].mxu0 %v3242
        %v3439 = vpop.f32.mrb[0].mxu0
        %v3440 = vadd.f32 0.0, %v3439
        %v3441 = vpop.f32.mrb[0].mxu0
        %3442 = vmatprep.mubr.f32.mxu0 0.0
        %3443 = vmatmul.mubr.f32.gmra.mrb[0].mxu0 %v3245
        %v3444 = vpop.f32.mrb[0].mxu0
        %v3445 = vadd.f32 0.0, %v3444
        %v3446 = vpop.f32.mrb[0].mxu0
        %3447 = vmatprep.mubr.f32.mxu0 0.0
        %3448 = vmatmul.mubr.f32.gmra.mrb[0].mxu0 %v3248
        %v3449 = vpop.f32.mrb[0].mxu0
        %v3450 = vadd.f32 0.0, %v3449
        %v3451 = vpop.f32.mrb[0].mxu0
        %3452 = vmatprep.mubr.f32.mxu0 0.0
        %3453 = vmatmul.mubr.f32.gmra.mrb[0].mxu0 %v3251
        %v3454 = vpop.f32.mrb[0].mxu0
        %v3455 = vadd.f32 0.0, %v3454
        %v3456 = vpop.f32.mrb[0].mxu0
        %3457 = vmatprep.mubr.f32.mxu0 0.0
        %3458 = vmatmul.mubr.f32.gmra.mrb[0].mxu0 %v3254
        %v3459 = vpop.f32.mrb[0].mxu0
        %v3460 = vadd.f32 0.0, %v3459
        %v3461 = vpop.f32.mrb[0].mxu0
        %3462 = vmatprep.mubr.f32.mxu0 0.0
        %3463 = vmatmul.mubr.f32.gmra.mrb[0].mxu0 %v3257
        %v3464 = vpop.f32.mrb[0].mxu0
        %v3465 = vadd.f32 0.0, %v3464
        %v3466 = vpop.f32.mrb[0].mxu0
        %3467 = vmatprep.mubr.f32.mxu0 0.0
        %3468 = vmatmul.mubr.f32.gmra.mrb[0].mxu0 %v3260
        %v3469 = vpop.f32.mrb[0].mxu0
        %v3470 = vadd.f32 0.0, %v3469
        %v3471 = vpop.f32.mrb[0].mxu0
        %3472 = vmatprep.mubr.f32.mxu0 0.0
        %3473 = vmatmul.mubr.f32.gmra.mrb[0].mxu0 %v3263
        %v3474 = vpop.f32.mrb[0].mxu0
        %v3475 = vadd.f32 0.0, %v3474
        %v3476 = vpop.f32.mrb[0].mxu0
        %3477 = vmatprep.mubr.f32.mxu0 0.0
        %3478 = vmatmul.mubr.f32.gmra.mrb[0].mxu0 %v3266
        %v3479 = vpop.f32.mrb[0].mxu0
        %v3480 = vadd.f32 0.0, %v3479
        %v3481 = vpop.f32.mrb[0].mxu0
        %3482 = vmatprep.mubr.f32.mxu0 0.0
        %3483 = vmatmul.mubr.f32.gmra.mrb[0].mxu0 %v3269
        %v3484 = vpop.f32.mrb[0].mxu0
        %v3485 = vadd.f32 0.0, %v3484
        %v3486 = vpop.f32.mrb[0].mxu0
        %3487 = vmatprep.mubr.f32.mxu0 0.0
        %3488 = vmatmul.mubr.f32.gmra.mrb[0].mxu0 %v3272
        %v3489 = vpop.f32.mrb[0].mxu0
        %v3490 = vadd.f32 0.0, %v3489
        %v3491 = vpop.f32.mrb[0].mxu0
        %3492 = vmatprep.mubr.f32.mxu0 0.0
        %3493 = vmatmul.mubr.f32.gmra.mrb[0].mxu0 %v3275
        %v3494 = vpop.f32.mrb[0].mxu0
        %v3495 = vadd.f32 0.0, %v3494
        %v3496 = vpop.f32.mrb[0].mxu0
        %3497 = vmatprep.mubr.f32.mxu0 0.0
        %3498 = vmatmul.mubr.f32.gmra.mrb[0].mxu0 %v3278
        %v3499 = vpop.f32.mrb[0].mxu0
        %v3500 = vadd.f32 0.0, %v3499
        %v3501 = vpop.f32.mrb[0].mxu0
        %3502 = vmatprep.mubr.f32.mxu0 0.0
        %3503 = vmatmul.mubr.f32.gmra.mrb[0].mxu0 %v3281
        %v3504 = vpop.f32.mrb[0].mxu0
        %v3505 = vadd.f32 0.0, %v3504
        %v3506 = vpop.f32.mrb[0].mxu0
        %3507 = vdwg.mxu0
        %v3508 = vadd.f32 %v3082, %v3350
        %v3509 = vadd.f32 %v3083, %v3355
        %v3510 = vadd.f32 %v3084, %v3360
        %v3511 = vadd.f32 %v3085, %v3365
        %v3512 = vadd.f32 %v3086, %v3370
        %v3513 = vadd.f32 %v3087, %v3375
        %v3514 = vadd.f32 %v3088, %v3380
        %v3515 = vadd.f32 %v3089, %v3385
        %v3516 = vadd.f32 %v3090, %v3390
        %v3517 = vadd.f32 %v3091, %v3395
        %v3518 = vadd.f32 %v3092, %v3400
        %v3519 = vadd.f32 %v3093, %v3405
        %v3520 = vadd.f32 %v3094, %v3410
        %v3521 = vadd.f32 %v3095, %v3415
        %v3522 = vadd.f32 %v3096, %v3420
        %v3523 = vadd.f32 %v3097, %v3425
        %v3524 = vadd.f32 %v3098, %v3430
        %v3525 = vadd.f32 %v3099, %v3435
        %v3526 = vadd.f32 %v3100, %v3440
        %v3527 = vadd.f32 %v3101, %v3445
        %v3528 = vadd.f32 %v3102, %v3450
        %v3529 = vadd.f32 %v3103, %v3455
        %v3530 = vadd.f32 %v3104, %v3460
        %v3531 = vadd.f32 %v3105, %v3465
        %v3532 = vadd.f32 %v3106, %v3470
        %v3533 = vadd.f32 %v3107, %v3475
        %v3534 = vadd.f32 %v3108, %v3480
        %v3535 = vadd.f32 %v3109, %v3485
        %v3536 = vadd.f32 %v3110, %v3490
        %v3537 = vadd.f32 %v3111, %v3495
        %v3538 = vadd.f32 %v3112, %v3500
        %v3539 = vadd.f32 %v3113, %v3505
        %v3540 = vld [vmem:[#allocation2 + $0x27] sm:$0xff]
        %v3541 = vld [vmem:[#allocation2 + $0x2f] sm:$0xff]
        %v3542 = vld [vmem:[#allocation2 + $0x37] sm:$0xff]
        %v3543 = vld [vmem:[#allocation2 + $0x3f] sm:$0xff]
        %v3544 = vld [vmem:[#allocation2 + $0x47] sm:$0xff]
        %v3545 = vld [vmem:[#allocation2 + $0x4f] sm:$0xff]
        %v3546 = vld [vmem:[#allocation2 + $0x57] sm:$0xff]
        %v3547 = vld [vmem:[#allocation2 + $0x5f] sm:$0xff]
        %v3548 = vld [vmem:[#allocation2 + $0x67] sm:$0xff]
        %v3549 = vld [vmem:[#allocation2 + $0x6f] sm:$0xff]
        %v3550 = vld [vmem:[#allocation2 + $0x77] sm:$0xff]
        %v3551 = vld [vmem:[#allocation2 + $0x7f] sm:$0xff]
        %v3552 = vld [vmem:[#allocation2 + $0x87] sm:$0xff]
        %v3553 = vld [vmem:[#allocation2 + $0x8f] sm:$0xff]
        %v3554 = vld [vmem:[#allocation2 + $0x97] sm:$0xff]
        %v3555 = vld [vmem:[#allocation2 + $0x9f] sm:$0xff]
        %v3556 = vld [vmem:[#allocation2 + $0xa7] sm:$0xff]
        %v3557 = vld [vmem:[#allocation2 + $0xaf] sm:$0xff]
        %v3558 = vld [vmem:[#allocation2 + $0xb7] sm:$0xff]
        %v3559 = vld [vmem:[#allocation2 + $0xbf] sm:$0xff]
        %v3560 = vld [vmem:[#allocation2 + $0xc7] sm:$0xff]
        %v3561 = vld [vmem:[#allocation2 + $0xcf] sm:$0xff]
        %v3562 = vld [vmem:[#allocation2 + $0xd7] sm:$0xff]
        %v3563 = vld [vmem:[#allocation2 + $0xdf] sm:$0xff]
        %v3564 = vld [vmem:[#allocation2 + $0xe7] sm:$0xff]
        %v3565 = vld [vmem:[#allocation2 + $0xef] sm:$0xff]
        %v3566 = vld [vmem:[#allocation2 + $0xf7] sm:$0xff]
        %v3567 = vld [vmem:[#allocation2 + $0xff] sm:$0xff]
        %v3568 = vld [vmem:[#allocation2 + $0x107] sm:$0xff]
        %v3569 = vld [vmem:[#allocation2 + $0x10f] sm:$0xff]
        %v3570 = vld [vmem:[#allocation2 + $0x117] sm:$0xff]
        %v3571 = vld [vmem:[#allocation2 + $0x11f] sm:$0xff]
        %v3572 = vmul.f32 %v3540, %v828
        %v3573 = vmul.f32 %v3541, %v833
        %v3574 = vmul.f32 %v3542, %v838
        %v3575 = vmul.f32 %v3543, %v843
        %v3576 = vmul.f32 %v3544, %v848
        %v3577 = vmul.f32 %v3545, %v853
        %v3578 = vmul.f32 %v3546, %v858
        %v3579 = vmul.f32 %v3547, %v863
        %v3580 = vmul.f32 %v3548, %v868
        %v3581 = vmul.f32 %v3549, %v873
        %v3582 = vmul.f32 %v3550, %v878
        %v3583 = vmul.f32 %v3551, %v883
        %v3584 = vmul.f32 %v3552, %v888
        %v3585 = vmul.f32 %v3553, %v893
        %v3586 = vmul.f32 %v3554, %v898
        %v3587 = vmul.f32 %v3555, %v903
        %v3588 = vmul.f32 %v3556, %v908
        %v3589 = vmul.f32 %v3557, %v913
        %v3590 = vmul.f32 %v3558, %v918
        %v3591 = vmul.f32 %v3559, %v923
        %v3592 = vmul.f32 %v3560, %v928
        %v3593 = vmul.f32 %v3561, %v933
        %v3594 = vmul.f32 %v3562, %v938
        %v3595 = vmul.f32 %v3563, %v943
        %v3596 = vmul.f32 %v3564, %v948
        %v3597 = vmul.f32 %v3565, %v953
        %v3598 = vmul.f32 %v3566, %v958
        %v3599 = vmul.f32 %v3567, %v963
        %v3600 = vmul.f32 %v3568, %v968
        %v3601 = vmul.f32 %v3569, %v973
        %v3602 = vmul.f32 %v3570, %v978
        %v3603 = vmul.f32 %v3571, %v983
        %s3604 = scalar_lea.vmem %s2, 384
        %v3605 = vld [vmem:[%s3604] sm:$0xff]
        %v3606 = vld [vmem:[%s3604 + $0x8] sm:$0xff]
        %v3607 = vld [vmem:[%s3604 + $0x10] sm:$0xff]
        %v3608 = vld [vmem:[%s3604 + $0x18] sm:$0xff]
        %v3609 = vld [vmem:[%s3604 + $0x20] sm:$0xff]
        %v3610 = vld [vmem:[%s3604 + $0x28] sm:$0xff]
        %v3611 = vld [vmem:[%s3604 + $0x30] sm:$0xff]
        %v3612 = vld [vmem:[%s3604 + $0x38] sm:$0xff]
        %v3614 = vsel %vm690, %v3572, 0
        %v3617 = vsel %vm690, %v3573, 0
        %v3620 = vsel %vm690, %v3574, 0
        %v3623 = vsel %vm690, %v3575, 0
        %v3626 = vsel %vm690, %v3576, 0
        %v3629 = vsel %vm690, %v3577, 0
        %v3632 = vsel %vm690, %v3578, 0
        %v3635 = vsel %vm690, %v3579, 0
        %v3638 = vsel %vm690, %v3580, 0
        %v3641 = vsel %vm690, %v3581, 0
        %v3644 = vsel %vm690, %v3582, 0
        %v3647 = vsel %vm690, %v3583, 0
        %v3650 = vsel %vm690, %v3584, 0
        %v3653 = vsel %vm690, %v3585, 0
        %v3656 = vsel %vm690, %v3586, 0
        %v3659 = vsel %vm690, %v3587, 0
        %v3662 = vsel %vm690, %v3588, 0
        %v3665 = vsel %vm690, %v3589, 0
        %v3668 = vsel %vm690, %v3590, 0
        %v3671 = vsel %vm690, %v3591, 0
        %v3674 = vsel %vm690, %v3592, 0
        %v3677 = vsel %vm690, %v3593, 0
        %v3680 = vsel %vm690, %v3594, 0
        %v3683 = vsel %vm690, %v3595, 0
        %v3686 = vsel %vm690, %v3596, 0
        %v3689 = vsel %vm690, %v3597, 0
        %v3692 = vsel %vm690, %v3598, 0
        %v3695 = vsel %vm690, %v3599, 0
        %v3698 = vsel %vm690, %v3600, 0
        %v3701 = vsel %vm690, %v3601, 0
        %v3704 = vsel %vm690, %v3602, 0
        %v3707 = vsel %vm690, %v3603, 0
        %3709 = vmatprep.subr.mxu0 0.0
        %3710 = vmatpush1.msra.mxu0 %v3605
        %3711 = vmatprep.subr.mxu0 0.0
        %3712 = vmatpush1.msra.mxu0 %v3606
        %3713 = vmatprep.subr.mxu0 0.0
        %3714 = vmatpush1.msra.mxu0 %v3607
        %3715 = vmatprep.subr.mxu0 0.0
        %3716 = vmatpush1.msra.mxu0 %v3608
        %3717 = vmatprep.subr.mxu0 0.0
        %3718 = vmatpush1.msra.mxu0 %v3609
        %3719 = vmatprep.subr.mxu0 0.0
        %3720 = vmatpush1.msra.mxu0 %v3610
        %3721 = vmatprep.subr.mxu0 0.0
        %3722 = vmatpush1.msra.mxu0 %v3611
        %3723 = vmatprep.subr.mxu0 0.0
        %3724 = vmatpush1.msra.mxu0 %v3612
        %3725 = vmatprep.subr.mxu0 0.0
        %3726 = vmatpush1.msra.mxu0 0.0
        %3727 = vmatprep.subr.mxu0 0.0
        %3728 = vmatpush1.msra.mxu0 0.0
        %3729 = vmatprep.subr.mxu0 0.0
        %3730 = vmatpush1.msra.mxu0 0.0
        %3731 = vmatprep.subr.mxu0 0.0
        %3732 = vmatpush1.msra.mxu0 0.0
        %3733 = vmatprep.subr.mxu0 0.0
        %3734 = vmatpush1.msra.mxu0 0.0
        %3735 = vmatprep.subr.mxu0 0.0
        %3736 = vmatpush1.msra.mxu0 0.0
        %3737 = vmatprep.subr.mxu0 0.0
        %3738 = vmatpush1.msra.mxu0 0.0
        %3739 = vmatprep.subr.mxu0 0.0
        %3740 = vmatpush1.msra.mxu0 0.0
        %3741 = vmatprep.subr.mxu0 0.0
        %3742 = vmatpush1.msra.mxu0 0.0
        %3743 = vmatprep.subr.mxu0 0.0
        %3744 = vmatpush1.msra.mxu0 0.0
        %3745 = vmatprep.subr.mxu0 0.0
        %3746 = vmatpush1.msra.mxu0 0.0
        %3747 = vmatprep.subr.mxu0 0.0
        %3748 = vmatpush1.msra.mxu0 0.0
        %3749 = vmatprep.subr.mxu0 0.0
        %3750 = vmatpush1.msra.mxu0 0.0
        %3751 = vmatprep.subr.mxu0 0.0
        %3752 = vmatpush1.msra.mxu0 0.0
        %3753 = vmatprep.subr.mxu0 0.0
        %3754 = vmatpush1.msra.mxu0 0.0
        %3755 = vmatprep.subr.mxu0 0.0
        %3756 = vmatpush1.msra.mxu0 0.0
        %3757 = vmatprep.subr.mxu0 0.0
        %3758 = vmatpush1.msra.mxu0 0.0
        %3759 = vmatprep.subr.mxu0 0.0
        %3760 = vmatpush1.msra.mxu0 0.0
        %3761 = vmatprep.subr.mxu0 0.0
        %3762 = vmatpush1.msra.mxu0 0.0
        %3763 = vmatprep.subr.mxu0 0.0
        %3764 = vmatpush1.msra.mxu0 0.0
        %3765 = vmatprep.subr.mxu0 0.0
        %3766 = vmatpush1.msra.mxu0 0.0
        %3767 = vmatprep.subr.mxu0 0.0
        %3768 = vmatpush1.msra.mxu0 0.0
        %3769 = vmatprep.subr.mxu0 0.0
        %3770 = vmatpush1.msra.mxu0 0.0
        %3771 = vmatprep.subr.mxu0 0.0
        %3772 = vmatpush1.msra.mxu0 0.0
        %3773 = vmatprep.mubr.f32.mxu0 0.0
        %3774 = vmatmul.mubr.f32.gmra.mrb[0].mxu0 %v3614
        %v3775 = vpop.f32.mrb[0].mxu0
        %v3776 = vadd.f32 0.0, %v3775
        %v3777 = vpop.f32.mrb[0].mxu0
        %3778 = vmatprep.mubr.f32.mxu0 0.0
        %3779 = vmatmul.mubr.f32.gmra.mrb[0].mxu0 %v3617
        %v3780 = vpop.f32.mrb[0].mxu0
        %v3781 = vadd.f32 0.0, %v3780
        %v3782 = vpop.f32.mrb[0].mxu0
        %3783 = vmatprep.mubr.f32.mxu0 0.0
        %3784 = vmatmul.mubr.f32.gmra.mrb[0].mxu0 %v3620
        %v3785 = vpop.f32.mrb[0].mxu0
        %v3786 = vadd.f32 0.0, %v3785
        %v3787 = vpop.f32.mrb[0].mxu0
        %3788 = vmatprep.mubr.f32.mxu0 0.0
        %3789 = vmatmul.mubr.f32.gmra.mrb[0].mxu0 %v3623
        %v3790 = vpop.f32.mrb[0].mxu0
        %v3791 = vadd.f32 0.0, %v3790
        %v3792 = vpop.f32.mrb[0].mxu0
        %3793 = vmatprep.mubr.f32.mxu0 0.0
        %3794 = vmatmul.mubr.f32.gmra.mrb[0].mxu0 %v3626
        %v3795 = vpop.f32.mrb[0].mxu0
        %v3796 = vadd.f32 0.0, %v3795
        %v3797 = vpop.f32.mrb[0].mxu0
        %3798 = vmatprep.mubr.f32.mxu0 0.0
        %3799 = vmatmul.mubr.f32.gmra.mrb[0].mxu0 %v3629
        %v3800 = vpop.f32.mrb[0].mxu0
        %v3801 = vadd.f32 0.0, %v3800
        %v3802 = vpop.f32.mrb[0].mxu0
        %3803 = vmatprep.mubr.f32.mxu0 0.0
        %3804 = vmatmul.mubr.f32.gmra.mrb[0].mxu0 %v3632
        %v3805 = vpop.f32.mrb[0].mxu0
        %v3806 = vadd.f32 0.0, %v3805
        %v3807 = vpop.f32.mrb[0].mxu0
        %3808 = vmatprep.mubr.f32.mxu0 0.0
        %3809 = vmatmul.mubr.f32.gmra.mrb[0].mxu0 %v3635
        %v3810 = vpop.f32.mrb[0].mxu0
        %v3811 = vadd.f32 0.0, %v3810
        %v3812 = vpop.f32.mrb[0].mxu0
        %3813 = vmatprep.mubr.f32.mxu0 0.0
        %3814 = vmatmul.mubr.f32.gmra.mrb[0].mxu0 %v3638
        %v3815 = vpop.f32.mrb[0].mxu0
        %v3816 = vadd.f32 0.0, %v3815
        %v3817 = vpop.f32.mrb[0].mxu0
        %3818 = vmatprep.mubr.f32.mxu0 0.0
        %3819 = vmatmul.mubr.f32.gmra.mrb[0].mxu0 %v3641
        %v3820 = vpop.f32.mrb[0].mxu0
        %v3821 = vadd.f32 0.0, %v3820
        %v3822 = vpop.f32.mrb[0].mxu0
        %3823 = vmatprep.mubr.f32.mxu0 0.0
        %3824 = vmatmul.mubr.f32.gmra.mrb[0].mxu0 %v3644
        %v3825 = vpop.f32.mrb[0].mxu0
        %v3826 = vadd.f32 0.0, %v3825
        %v3827 = vpop.f32.mrb[0].mxu0
        %3828 = vmatprep.mubr.f32.mxu0 0.0
        %3829 = vmatmul.mubr.f32.gmra.mrb[0].mxu0 %v3647
        %v3830 = vpop.f32.mrb[0].mxu0
        %v3831 = vadd.f32 0.0, %v3830
        %v3832 = vpop.f32.mrb[0].mxu0
        %3833 = vmatprep.mubr.f32.mxu0 0.0
        %3834 = vmatmul.mubr.f32.gmra.mrb[0].mxu0 %v3650
        %v3835 = vpop.f32.mrb[0].mxu0
        %v3836 = vadd.f32 0.0, %v3835
        %v3837 = vpop.f32.mrb[0].mxu0
        %3838 = vmatprep.mubr.f32.mxu0 0.0
        %3839 = vmatmul.mubr.f32.gmra.mrb[0].mxu0 %v3653
        %v3840 = vpop.f32.mrb[0].mxu0
        %v3841 = vadd.f32 0.0, %v3840
        %v3842 = vpop.f32.mrb[0].mxu0
        %3843 = vmatprep.mubr.f32.mxu0 0.0
        %3844 = vmatmul.mubr.f32.gmra.mrb[0].mxu0 %v3656
        %v3845 = vpop.f32.mrb[0].mxu0
        %v3846 = vadd.f32 0.0, %v3845
        %v3847 = vpop.f32.mrb[0].mxu0
        %3848 = vmatprep.mubr.f32.mxu0 0.0
        %3849 = vmatmul.mubr.f32.gmra.mrb[0].mxu0 %v3659
        %v3850 = vpop.f32.mrb[0].mxu0
        %v3851 = vadd.f32 0.0, %v3850
        %v3852 = vpop.f32.mrb[0].mxu0
        %3853 = vmatprep.mubr.f32.mxu0 0.0
        %3854 = vmatmul.mubr.f32.gmra.mrb[0].mxu0 %v3662
        %v3855 = vpop.f32.mrb[0].mxu0
        %v3856 = vadd.f32 0.0, %v3855
        %v3857 = vpop.f32.mrb[0].mxu0
        %3858 = vmatprep.mubr.f32.mxu0 0.0
        %3859 = vmatmul.mubr.f32.gmra.mrb[0].mxu0 %v3665
        %v3860 = vpop.f32.mrb[0].mxu0
        %v3861 = vadd.f32 0.0, %v3860
        %v3862 = vpop.f32.mrb[0].mxu0
        %3863 = vmatprep.mubr.f32.mxu0 0.0
        %3864 = vmatmul.mubr.f32.gmra.mrb[0].mxu0 %v3668
        %v3865 = vpop.f32.mrb[0].mxu0
        %v3866 = vadd.f32 0.0, %v3865
        %v3867 = vpop.f32.mrb[0].mxu0
        %3868 = vmatprep.mubr.f32.mxu0 0.0
        %3869 = vmatmul.mubr.f32.gmra.mrb[0].mxu0 %v3671
        %v3870 = vpop.f32.mrb[0].mxu0
        %v3871 = vadd.f32 0.0, %v3870
        %v3872 = vpop.f32.mrb[0].mxu0
        %3873 = vmatprep.mubr.f32.mxu0 0.0
        %3874 = vmatmul.mubr.f32.gmra.mrb[0].mxu0 %v3674
        %v3875 = vpop.f32.mrb[0].mxu0
        %v3876 = vadd.f32 0.0, %v3875
        %v3877 = vpop.f32.mrb[0].mxu0
        %3878 = vmatprep.mubr.f32.mxu0 0.0
        %3879 = vmatmul.mubr.f32.gmra.mrb[0].mxu0 %v3677
        %v3880 = vpop.f32.mrb[0].mxu0
        %v3881 = vadd.f32 0.0, %v3880
        %v3882 = vpop.f32.mrb[0].mxu0
        %3883 = vmatprep.mubr.f32.mxu0 0.0
        %3884 = vmatmul.mubr.f32.gmra.mrb[0].mxu0 %v3680
        %v3885 = vpop.f32.mrb[0].mxu0
        %v3886 = vadd.f32 0.0, %v3885
        %v3887 = vpop.f32.mrb[0].mxu0
        %3888 = vmatprep.mubr.f32.mxu0 0.0
        %3889 = vmatmul.mubr.f32.gmra.mrb[0].mxu0 %v3683
        %v3890 = vpop.f32.mrb[0].mxu0
        %v3891 = vadd.f32 0.0, %v3890
        %v3892 = vpop.f32.mrb[0].mxu0
        %3893 = vmatprep.mubr.f32.mxu0 0.0
        %3894 = vmatmul.mubr.f32.gmra.mrb[0].mxu0 %v3686
        %v3895 = vpop.f32.mrb[0].mxu0
        %v3896 = vadd.f32 0.0, %v3895
        %v3897 = vpop.f32.mrb[0].mxu0
        %3898 = vmatprep.mubr.f32.mxu0 0.0
        %3899 = vmatmul.mubr.f32.gmra.mrb[0].mxu0 %v3689
        %v3900 = vpop.f32.mrb[0].mxu0
        %v3901 = vadd.f32 0.0, %v3900
        %v3902 = vpop.f32.mrb[0].mxu0
        %3903 = vmatprep.mubr.f32.mxu0 0.0
        %3904 = vmatmul.mubr.f32.gmra.mrb[0].mxu0 %v3692
        %v3905 = vpop.f32.mrb[0].mxu0
        %v3906 = vadd.f32 0.0, %v3905
        %v3907 = vpop.f32.mrb[0].mxu0
        %3908 = vmatprep.mubr.f32.mxu0 0.0
        %3909 = vmatmul.mubr.f32.gmra.mrb[0].mxu0 %v3695
        %v3910 = vpop.f32.mrb[0].mxu0
        %v3911 = vadd.f32 0.0, %v3910
        %v3912 = vpop.f32.mrb[0].mxu0
        %3913 = vmatprep.mubr.f32.mxu0 0.0
        %3914 = vmatmul.mubr.f32.gmra.mrb[0].mxu0 %v3698
        %v3915 = vpop.f32.mrb[0].mxu0
        %v3916 = vadd.f32 0.0, %v3915
        %v3917 = vpop.f32.mrb[0].mxu0
        %3918 = vmatprep.mubr.f32.mxu0 0.0
        %3919 = vmatmul.mubr.f32.gmra.mrb[0].mxu0 %v3701
        %v3920 = vpop.f32.mrb[0].mxu0
        %v3921 = vadd.f32 0.0, %v3920
        %v3922 = vpop.f32.mrb[0].mxu0
        %3923 = vmatprep.mubr.f32.mxu0 0.0
        %3924 = vmatmul.mubr.f32.gmra.mrb[0].mxu0 %v3704
        %v3925 = vpop.f32.mrb[0].mxu0
        %v3926 = vadd.f32 0.0, %v3925
        %v3927 = vpop.f32.mrb[0].mxu0
        %3928 = vmatprep.mubr.f32.mxu0 0.0
        %3929 = vmatmul.mubr.f32.gmra.mrb[0].mxu0 %v3707
        %v3930 = vpop.f32.mrb[0].mxu0
        %v3931 = vadd.f32 0.0, %v3930
        %v3932 = vpop.f32.mrb[0].mxu0
        %3933 = vdwg.mxu0
        %v3934 = vadd.f32 %v3508, %v3776
        %v3935 = vadd.f32 %v3509, %v3781
        %v3936 = vadd.f32 %v3510, %v3786
        %v3937 = vadd.f32 %v3511, %v3791
        %v3938 = vadd.f32 %v3512, %v3796
        %v3939 = vadd.f32 %v3513, %v3801
        %v3940 = vadd.f32 %v3514, %v3806
        %v3941 = vadd.f32 %v3515, %v3811
        %v3942 = vadd.f32 %v3516, %v3816
        %v3943 = vadd.f32 %v3517, %v3821
        %v3944 = vadd.f32 %v3518, %v3826
        %v3945 = vadd.f32 %v3519, %v3831
        %v3946 = vadd.f32 %v3520, %v3836
        %v3947 = vadd.f32 %v3521, %v3841
        %v3948 = vadd.f32 %v3522, %v3846
        %v3949 = vadd.f32 %v3523, %v3851
        %v3950 = vadd.f32 %v3524, %v3856
        %v3951 = vadd.f32 %v3525, %v3861
        %v3952 = vadd.f32 %v3526, %v3866
        %v3953 = vadd.f32 %v3527, %v3871
        %v3954 = vadd.f32 %v3528, %v3876
        %v3955 = vadd.f32 %v3529, %v3881
        %v3956 = vadd.f32 %v3530, %v3886
        %v3957 = vadd.f32 %v3531, %v3891
        %v3958 = vadd.f32 %v3532, %v3896
        %v3959 = vadd.f32 %v3533, %v3901
        %v3960 = vadd.f32 %v3534, %v3906
        %v3961 = vadd.f32 %v3535, %v3911
        %v3962 = vadd.f32 %v3536, %v3916
        %v3963 = vadd.f32 %v3537, %v3921
        %v3964 = vadd.f32 %v3538, %v3926
        %v3965 = vadd.f32 %v3539, %v3931
        %v3966 = vld [vmem:[#allocation2 + $0x28] sm:$0xff]
        %v3967 = vld [vmem:[#allocation2 + $0x30] sm:$0xff]
        %v3968 = vld [vmem:[#allocation2 + $0x38] sm:$0xff]
        %v3969 = vld [vmem:[#allocation2 + $0x40] sm:$0xff]
        %v3970 = vld [vmem:[#allocation2 + $0x48] sm:$0xff]
        %v3971 = vld [vmem:[#allocation2 + $0x50] sm:$0xff]
        %v3972 = vld [vmem:[#allocation2 + $0x58] sm:$0xff]
        %v3973 = vld [vmem:[#allocation2 + $0x60] sm:$0xff]
        %v3974 = vld [vmem:[#allocation2 + $0x68] sm:$0xff]
        %v3975 = vld [vmem:[#allocation2 + $0x70] sm:$0xff]
        %v3976 = vld [vmem:[#allocation2 + $0x78] sm:$0xff]
        %v3977 = vld [vmem:[#allocation2 + $0x80] sm:$0xff]
        %v3978 = vld [vmem:[#allocation2 + $0x88] sm:$0xff]
        %v3979 = vld [vmem:[#allocation2 + $0x90] sm:$0xff]
        %v3980 = vld [vmem:[#allocation2 + $0x98] sm:$0xff]
        %v3981 = vld [vmem:[#allocation2 + $0xa0] sm:$0xff]
        %v3982 = vld [vmem:[#allocation2 + $0xa8] sm:$0xff]
        %v3983 = vld [vmem:[#allocation2 + $0xb0] sm:$0xff]
        %v3984 = vld [vmem:[#allocation2 + $0xb8] sm:$0xff]
        %v3985 = vld [vmem:[#allocation2 + $0xc0] sm:$0xff]
        %v3986 = vld [vmem:[#allocation2 + $0xc8] sm:$0xff]
        %v3987 = vld [vmem:[#allocation2 + $0xd0] sm:$0xff]
        %v3988 = vld [vmem:[#allocation2 + $0xd8] sm:$0xff]
        %v3989 = vld [vmem:[#allocation2 + $0xe0] sm:$0xff]
        %v3990 = vld [vmem:[#allocation2 + $0xe8] sm:$0xff]
        %v3991 = vld [vmem:[#allocation2 + $0xf0] sm:$0xff]
        %v3992 = vld [vmem:[#allocation2 + $0xf8] sm:$0xff]
        %v3993 = vld [vmem:[#allocation2 + $0x100] sm:$0xff]
        %v3994 = vld [vmem:[#allocation2 + $0x108] sm:$0xff]
        %v3995 = vld [vmem:[#allocation2 + $0x110] sm:$0xff]
        %v3996 = vld [vmem:[#allocation2 + $0x118] sm:$0xff]
        %v3997 = vld [vmem:[#allocation2 + $0x120] sm:$0xff]
        %s3998 = scalar_lea.vmem %s2, 448
        %v3999 = vld [vmem:[%s3998] sm:$0xff]
        %v4000 = vld [vmem:[%s3998 + $0x8] sm:$0xff]
        %v4001 = vld [vmem:[%s3998 + $0x10] sm:$0xff]
        %v4002 = vld [vmem:[%s3998 + $0x18] sm:$0xff]
        %v4003 = vld [vmem:[%s3998 + $0x20] sm:$0xff]
        %v4004 = vld [vmem:[%s3998 + $0x28] sm:$0xff]
        %v4005 = vld [vmem:[%s3998 + $0x30] sm:$0xff]
        %v4006 = vld [vmem:[%s3998 + $0x38] sm:$0xff]
        %v4008 = vsel %vm690, %v3966, 0
        %v4011 = vsel %vm690, %v3967, 0
        %v4014 = vsel %vm690, %v3968, 0
        %v4017 = vsel %vm690, %v3969, 0
        %v4020 = vsel %vm690, %v3970, 0
        %v4023 = vsel %vm690, %v3971, 0
        %v4026 = vsel %vm690, %v3972, 0
        %v4029 = vsel %vm690, %v3973, 0
        %v4032 = vsel %vm690, %v3974, 0
        %v4035 = vsel %vm690, %v3975, 0
        %v4038 = vsel %vm690, %v3976, 0
        %v4041 = vsel %vm690, %v3977, 0
        %v4044 = vsel %vm690, %v3978, 0
        %v4047 = vsel %vm690, %v3979, 0
        %v4050 = vsel %vm690, %v3980, 0
        %v4053 = vsel %vm690, %v3981, 0
        %v4056 = vsel %vm690, %v3982, 0
        %v4059 = vsel %vm690, %v3983, 0
        %v4062 = vsel %vm690, %v3984, 0
        %v4065 = vsel %vm690, %v3985, 0
        %v4068 = vsel %vm690, %v3986, 0
        %v4071 = vsel %vm690, %v3987, 0
        %v4074 = vsel %vm690, %v3988, 0
        %v4077 = vsel %vm690, %v3989, 0
        %v4080 = vsel %vm690, %v3990, 0
        %v4083 = vsel %vm690, %v3991, 0
        %v4086 = vsel %vm690, %v3992, 0
        %v4089 = vsel %vm690, %v3993, 0
        %v4092 = vsel %vm690, %v3994, 0
        %v4095 = vsel %vm690, %v3995, 0
        %v4098 = vsel %vm690, %v3996, 0
        %v4101 = vsel %vm690, %v3997, 0
        %4103 = vmatprep.subr.mxu0 0.0
        %4104 = vmatpush1.msra.mxu0 %v3999
        %4105 = vmatprep.subr.mxu0 0.0
        %4106 = vmatpush1.msra.mxu0 %v4000
        %4107 = vmatprep.subr.mxu0 0.0
        %4108 = vmatpush1.msra.mxu0 %v4001
        %4109 = vmatprep.subr.mxu0 0.0
        %4110 = vmatpush1.msra.mxu0 %v4002
        %4111 = vmatprep.subr.mxu0 0.0
        %4112 = vmatpush1.msra.mxu0 %v4003
        %4113 = vmatprep.subr.mxu0 0.0
        %4114 = vmatpush1.msra.mxu0 %v4004
        %4115 = vmatprep.subr.mxu0 0.0
        %4116 = vmatpush1.msra.mxu0 %v4005
        %4117 = vmatprep.subr.mxu0 0.0
        %4118 = vmatpush1.msra.mxu0 %v4006
        %4119 = vmatprep.subr.mxu0 0.0
        %4120 = vmatpush1.msra.mxu0 0.0
        %4121 = vmatprep.subr.mxu0 0.0
        %4122 = vmatpush1.msra.mxu0 0.0
        %4123 = vmatprep.subr.mxu0 0.0
        %4124 = vmatpush1.msra.mxu0 0.0
        %4125 = vmatprep.subr.mxu0 0.0
        %4126 = vmatpush1.msra.mxu0 0.0
        %4127 = vmatprep.subr.mxu0 0.0
        %4128 = vmatpush1.msra.mxu0 0.0
        %4129 = vmatprep.subr.mxu0 0.0
        %4130 = vmatpush1.msra.mxu0 0.0
        %4131 = vmatprep.subr.mxu0 0.0
        %4132 = vmatpush1.msra.mxu0 0.0
        %4133 = vmatprep.subr.mxu0 0.0
        %4134 = vmatpush1.msra.mxu0 0.0
        %4135 = vmatprep.subr.mxu0 0.0
        %4136 = vmatpush1.msra.mxu0 0.0
        %4137 = vmatprep.subr.mxu0 0.0
        %4138 = vmatpush1.msra.mxu0 0.0
        %4139 = vmatprep.subr.mxu0 0.0
        %4140 = vmatpush1.msra.mxu0 0.0
        %4141 = vmatprep.subr.mxu0 0.0
        %4142 = vmatpush1.msra.mxu0 0.0
        %4143 = vmatprep.subr.mxu0 0.0
        %4144 = vmatpush1.msra.mxu0 0.0
        %4145 = vmatprep.subr.mxu0 0.0
        %4146 = vmatpush1.msra.mxu0 0.0
        %4147 = vmatprep.subr.mxu0 0.0
        %4148 = vmatpush1.msra.mxu0 0.0
        %4149 = vmatprep.subr.mxu0 0.0
        %4150 = vmatpush1.msra.mxu0 0.0
        %4151 = vmatprep.subr.mxu0 0.0
        %4152 = vmatpush1.msra.mxu0 0.0
        %4153 = vmatprep.subr.mxu0 0.0
        %4154 = vmatpush1.msra.mxu0 0.0
        %4155 = vmatprep.subr.mxu0 0.0
        %4156 = vmatpush1.msra.mxu0 0.0
        %4157 = vmatprep.subr.mxu0 0.0
        %4158 = vmatpush1.msra.mxu0 0.0
        %4159 = vmatprep.subr.mxu0 0.0
        %4160 = vmatpush1.msra.mxu0 0.0
        %4161 = vmatprep.subr.mxu0 0.0
        %4162 = vmatpush1.msra.mxu0 0.0
        %4163 = vmatprep.subr.mxu0 0.0
        %4164 = vmatpush1.msra.mxu0 0.0
        %4165 = vmatprep.subr.mxu0 0.0
        %4166 = vmatpush1.msra.mxu0 0.0
        %4167 = vmatprep.mubr.f32.mxu0 0.0
        %4168 = vmatmul.mubr.f32.gmra.mrb[0].mxu0 %v4008
        %v4169 = vpop.f32.mrb[0].mxu0
        %v4170 = vadd.f32 0.0, %v4169
        %v4171 = vpop.f32.mrb[0].mxu0
        %4172 = vmatprep.mubr.f32.mxu0 0.0
        %4173 = vmatmul.mubr.f32.gmra.mrb[0].mxu0 %v4011
        %v4174 = vpop.f32.mrb[0].mxu0
        %v4175 = vadd.f32 0.0, %v4174
        %v4176 = vpop.f32.mrb[0].mxu0
        %4177 = vmatprep.mubr.f32.mxu0 0.0
        %4178 = vmatmul.mubr.f32.gmra.mrb[0].mxu0 %v4014
        %v4179 = vpop.f32.mrb[0].mxu0
        %v4180 = vadd.f32 0.0, %v4179
        %v4181 = vpop.f32.mrb[0].mxu0
        %4182 = vmatprep.mubr.f32.mxu0 0.0
        %4183 = vmatmul.mubr.f32.gmra.mrb[0].mxu0 %v4017
        %v4184 = vpop.f32.mrb[0].mxu0
        %v4185 = vadd.f32 0.0, %v4184
        %v4186 = vpop.f32.mrb[0].mxu0
        %4187 = vmatprep.mubr.f32.mxu0 0.0
        %4188 = vmatmul.mubr.f32.gmra.mrb[0].mxu0 %v4020
        %v4189 = vpop.f32.mrb[0].mxu0
        %v4190 = vadd.f32 0.0, %v4189
        %v4191 = vpop.f32.mrb[0].mxu0
        %4192 = vmatprep.mubr.f32.mxu0 0.0
        %4193 = vmatmul.mubr.f32.gmra.mrb[0].mxu0 %v4023
        %v4194 = vpop.f32.mrb[0].mxu0
        %v4195 = vadd.f32 0.0, %v4194
        %v4196 = vpop.f32.mrb[0].mxu0
        %4197 = vmatprep.mubr.f32.mxu0 0.0
        %4198 = vmatmul.mubr.f32.gmra.mrb[0].mxu0 %v4026
        %v4199 = vpop.f32.mrb[0].mxu0
        %v4200 = vadd.f32 0.0, %v4199
        %v4201 = vpop.f32.mrb[0].mxu0
        %4202 = vmatprep.mubr.f32.mxu0 0.0
        %4203 = vmatmul.mubr.f32.gmra.mrb[0].mxu0 %v4029
        %v4204 = vpop.f32.mrb[0].mxu0
        %v4205 = vadd.f32 0.0, %v4204
        %v4206 = vpop.f32.mrb[0].mxu0
        %4207 = vmatprep.mubr.f32.mxu0 0.0
        %4208 = vmatmul.mubr.f32.gmra.mrb[0].mxu0 %v4032
        %v4209 = vpop.f32.mrb[0].mxu0
        %v4210 = vadd.f32 0.0, %v4209
        %v4211 = vpop.f32.mrb[0].mxu0
        %4212 = vmatprep.mubr.f32.mxu0 0.0
        %4213 = vmatmul.mubr.f32.gmra.mrb[0].mxu0 %v4035
        %v4214 = vpop.f32.mrb[0].mxu0
        %v4215 = vadd.f32 0.0, %v4214
        %v4216 = vpop.f32.mrb[0].mxu0
        %4217 = vmatprep.mubr.f32.mxu0 0.0
        %4218 = vmatmul.mubr.f32.gmra.mrb[0].mxu0 %v4038
        %v4219 = vpop.f32.mrb[0].mxu0
        %v4220 = vadd.f32 0.0, %v4219
        %v4221 = vpop.f32.mrb[0].mxu0
        %4222 = vmatprep.mubr.f32.mxu0 0.0
        %4223 = vmatmul.mubr.f32.gmra.mrb[0].mxu0 %v4041
        %v4224 = vpop.f32.mrb[0].mxu0
        %v4225 = vadd.f32 0.0, %v4224
        %v4226 = vpop.f32.mrb[0].mxu0
        %4227 = vmatprep.mubr.f32.mxu0 0.0
        %4228 = vmatmul.mubr.f32.gmra.mrb[0].mxu0 %v4044
        %v4229 = vpop.f32.mrb[0].mxu0
        %v4230 = vadd.f32 0.0, %v4229
        %v4231 = vpop.f32.mrb[0].mxu0
        %4232 = vmatprep.mubr.f32.mxu0 0.0
        %4233 = vmatmul.mubr.f32.gmra.mrb[0].mxu0 %v4047
        %v4234 = vpop.f32.mrb[0].mxu0
        %v4235 = vadd.f32 0.0, %v4234
        %v4236 = vpop.f32.mrb[0].mxu0
        %4237 = vmatprep.mubr.f32.mxu0 0.0
        %4238 = vmatmul.mubr.f32.gmra.mrb[0].mxu0 %v4050
        %v4239 = vpop.f32.mrb[0].mxu0
        %v4240 = vadd.f32 0.0, %v4239
        %v4241 = vpop.f32.mrb[0].mxu0
        %4242 = vmatprep.mubr.f32.mxu0 0.0
        %4243 = vmatmul.mubr.f32.gmra.mrb[0].mxu0 %v4053
        %v4244 = vpop.f32.mrb[0].mxu0
        %v4245 = vadd.f32 0.0, %v4244
        %v4246 = vpop.f32.mrb[0].mxu0
        %4247 = vmatprep.mubr.f32.mxu0 0.0
        %4248 = vmatmul.mubr.f32.gmra.mrb[0].mxu0 %v4056
        %v4249 = vpop.f32.mrb[0].mxu0
        %v4250 = vadd.f32 0.0, %v4249
        %v4251 = vpop.f32.mrb[0].mxu0
        %4252 = vmatprep.mubr.f32.mxu0 0.0
        %4253 = vmatmul.mubr.f32.gmra.mrb[0].mxu0 %v4059
        %v4254 = vpop.f32.mrb[0].mxu0
        %v4255 = vadd.f32 0.0, %v4254
        %v4256 = vpop.f32.mrb[0].mxu0
        %4257 = vmatprep.mubr.f32.mxu0 0.0
        %4258 = vmatmul.mubr.f32.gmra.mrb[0].mxu0 %v4062
        %v4259 = vpop.f32.mrb[0].mxu0
        %v4260 = vadd.f32 0.0, %v4259
        %v4261 = vpop.f32.mrb[0].mxu0
        %4262 = vmatprep.mubr.f32.mxu0 0.0
        %4263 = vmatmul.mubr.f32.gmra.mrb[0].mxu0 %v4065
        %v4264 = vpop.f32.mrb[0].mxu0
        %v4265 = vadd.f32 0.0, %v4264
        %v4266 = vpop.f32.mrb[0].mxu0
        %4267 = vmatprep.mubr.f32.mxu0 0.0
        %4268 = vmatmul.mubr.f32.gmra.mrb[0].mxu0 %v4068
        %v4269 = vpop.f32.mrb[0].mxu0
        %v4270 = vadd.f32 0.0, %v4269
        %v4271 = vpop.f32.mrb[0].mxu0
        %4272 = vmatprep.mubr.f32.mxu0 0.0
        %4273 = vmatmul.mubr.f32.gmra.mrb[0].mxu0 %v4071
        %v4274 = vpop.f32.mrb[0].mxu0
        %v4275 = vadd.f32 0.0, %v4274
        %v4276 = vpop.f32.mrb[0].mxu0
        %4277 = vmatprep.mubr.f32.mxu0 0.0
        %4278 = vmatmul.mubr.f32.gmra.mrb[0].mxu0 %v4074
        %v4279 = vpop.f32.mrb[0].mxu0
        %v4280 = vadd.f32 0.0, %v4279
        %v4281 = vpop.f32.mrb[0].mxu0
        %4282 = vmatprep.mubr.f32.mxu0 0.0
        %4283 = vmatmul.mubr.f32.gmra.mrb[0].mxu0 %v4077
        %v4284 = vpop.f32.mrb[0].mxu0
        %v4285 = vadd.f32 0.0, %v4284
        %v4286 = vpop.f32.mrb[0].mxu0
        %4287 = vmatprep.mubr.f32.mxu0 0.0
        %4288 = vmatmul.mubr.f32.gmra.mrb[0].mxu0 %v4080
        %v4289 = vpop.f32.mrb[0].mxu0
        %v4290 = vadd.f32 0.0, %v4289
        %v4291 = vpop.f32.mrb[0].mxu0
        %4292 = vmatprep.mubr.f32.mxu0 0.0
        %4293 = vmatmul.mubr.f32.gmra.mrb[0].mxu0 %v4083
        %v4294 = vpop.f32.mrb[0].mxu0
        %v4295 = vadd.f32 0.0, %v4294
        %v4296 = vpop.f32.mrb[0].mxu0
        %4297 = vmatprep.mubr.f32.mxu0 0.0
        %4298 = vmatmul.mubr.f32.gmra.mrb[0].mxu0 %v4086
        %v4299 = vpop.f32.mrb[0].mxu0
        %v4300 = vadd.f32 0.0, %v4299
        %v4301 = vpop.f32.mrb[0].mxu0
        %4302 = vmatprep.mubr.f32.mxu0 0.0
        %4303 = vmatmul.mubr.f32.gmra.mrb[0].mxu0 %v4089
        %v4304 = vpop.f32.mrb[0].mxu0
        %v4305 = vadd.f32 0.0, %v4304
        %v4306 = vpop.f32.mrb[0].mxu0
        %4307 = vmatprep.mubr.f32.mxu0 0.0
        %4308 = vmatmul.mubr.f32.gmra.mrb[0].mxu0 %v4092
        %v4309 = vpop.f32.mrb[0].mxu0
        %v4310 = vadd.f32 0.0, %v4309
        %v4311 = vpop.f32.mrb[0].mxu0
        %4312 = vmatprep.mubr.f32.mxu0 0.0
        %4313 = vmatmul.mubr.f32.gmra.mrb[0].mxu0 %v4095
        %v4314 = vpop.f32.mrb[0].mxu0
        %v4315 = vadd.f32 0.0, %v4314
        %v4316 = vpop.f32.mrb[0].mxu0
        %4317 = vmatprep.mubr.f32.mxu0 0.0
        %4318 = vmatmul.mubr.f32.gmra.mrb[0].mxu0 %v4098
        %v4319 = vpop.f32.mrb[0].mxu0
        %v4320 = vadd.f32 0.0, %v4319
        %v4321 = vpop.f32.mrb[0].mxu0
        %4322 = vmatprep.mubr.f32.mxu0 0.0
        %4323 = vmatmul.mubr.f32.gmra.mrb[0].mxu0 %v4101
        %v4324 = vpop.f32.mrb[0].mxu0
        %v4325 = vadd.f32 0.0, %v4324
        %v4326 = vpop.f32.mrb[0].mxu0
        %4327 = vdwg.mxu0
        %v4328 = vadd.f32 %v3934, %v4170
        %v4329 = vadd.f32 %v3935, %v4175
        %v4330 = vadd.f32 %v3936, %v4180
        %v4331 = vadd.f32 %v3937, %v4185
        %v4332 = vadd.f32 %v3938, %v4190
        %v4333 = vadd.f32 %v3939, %v4195
        %v4334 = vadd.f32 %v3940, %v4200
        %v4335 = vadd.f32 %v3941, %v4205
        %v4336 = vadd.f32 %v3942, %v4210
        %v4337 = vadd.f32 %v3943, %v4215
        %v4338 = vadd.f32 %v3944, %v4220
        %v4339 = vadd.f32 %v3945, %v4225
        %v4340 = vadd.f32 %v3946, %v4230
        %v4341 = vadd.f32 %v3947, %v4235
        %v4342 = vadd.f32 %v3948, %v4240
        %v4343 = vadd.f32 %v3949, %v4245
        %v4344 = vadd.f32 %v3950, %v4250
        %v4345 = vadd.f32 %v3951, %v4255
        %v4346 = vadd.f32 %v3952, %v4260
        %v4347 = vadd.f32 %v3953, %v4265
        %v4348 = vadd.f32 %v3954, %v4270
        %v4349 = vadd.f32 %v3955, %v4275
        %v4350 = vadd.f32 %v3956, %v4280
        %v4351 = vadd.f32 %v3957, %v4285
        %v4352 = vadd.f32 %v3958, %v4290
        %v4353 = vadd.f32 %v3959, %v4295
        %v4354 = vadd.f32 %v3960, %v4300
        %v4355 = vadd.f32 %v3961, %v4305
        %v4356 = vadd.f32 %v3962, %v4310
        %v4357 = vadd.f32 %v3963, %v4315
        %v4358 = vadd.f32 %v3964, %v4320
        %v4359 = vadd.f32 %v3965, %v4325
        %v4360 = vld [vmem:[#allocation2 + $0x29] sm:$0xff]
        %v4361 = vld [vmem:[#allocation2 + $0x31] sm:$0xff]
        %v4362 = vld [vmem:[#allocation2 + $0x39] sm:$0xff]
        %v4363 = vld [vmem:[#allocation2 + $0x41] sm:$0xff]
        %v4364 = vld [vmem:[#allocation2 + $0x49] sm:$0xff]
        %v4365 = vld [vmem:[#allocation2 + $0x51] sm:$0xff]
        %v4366 = vld [vmem:[#allocation2 + $0x59] sm:$0xff]
        %v4367 = vld [vmem:[#allocation2 + $0x61] sm:$0xff]
        %v4368 = vld [vmem:[#allocation2 + $0x69] sm:$0xff]
        %v4369 = vld [vmem:[#allocation2 + $0x71] sm:$0xff]
        %v4370 = vld [vmem:[#allocation2 + $0x79] sm:$0xff]
        %v4371 = vld [vmem:[#allocation2 + $0x81] sm:$0xff]
        %v4372 = vld [vmem:[#allocation2 + $0x89] sm:$0xff]
        %v4373 = vld [vmem:[#allocation2 + $0x91] sm:$0xff]
        %v4374 = vld [vmem:[#allocation2 + $0x99] sm:$0xff]
        %v4375 = vld [vmem:[#allocation2 + $0xa1] sm:$0xff]
        %v4376 = vld [vmem:[#allocation2 + $0xa9] sm:$0xff]
        %v4377 = vld [vmem:[#allocation2 + $0xb1] sm:$0xff]
        %v4378 = vld [vmem:[#allocation2 + $0xb9] sm:$0xff]
        %v4379 = vld [vmem:[#allocation2 + $0xc1] sm:$0xff]
        %v4380 = vld [vmem:[#allocation2 + $0xc9] sm:$0xff]
        %v4381 = vld [vmem:[#allocation2 + $0xd1] sm:$0xff]
        %v4382 = vld [vmem:[#allocation2 + $0xd9] sm:$0xff]
        %v4383 = vld [vmem:[#allocation2 + $0xe1] sm:$0xff]
        %v4384 = vld [vmem:[#allocation2 + $0xe9] sm:$0xff]
        %v4385 = vld [vmem:[#allocation2 + $0xf1] sm:$0xff]
        %v4386 = vld [vmem:[#allocation2 + $0xf9] sm:$0xff]
        %v4387 = vld [vmem:[#allocation2 + $0x101] sm:$0xff]
        %v4388 = vld [vmem:[#allocation2 + $0x109] sm:$0xff]
        %v4389 = vld [vmem:[#allocation2 + $0x111] sm:$0xff]
        %v4390 = vld [vmem:[#allocation2 + $0x119] sm:$0xff]
        %v4391 = vld [vmem:[#allocation2 + $0x121] sm:$0xff]
        %v4392 = vmul.f32 %v4360, %v1743
        %v4393 = vmul.f32 %v4361, %v1748
        %v4394 = vmul.f32 %v4362, %v1753
        %v4395 = vmul.f32 %v4363, %v1758
        %v4396 = vmul.f32 %v4364, %v1763
        %v4397 = vmul.f32 %v4365, %v1768
        %v4398 = vmul.f32 %v4366, %v1773
        %v4399 = vmul.f32 %v4367, %v1778
        %v4400 = vmul.f32 %v4368, %v1783
        %v4401 = vmul.f32 %v4369, %v1788
        %v4402 = vmul.f32 %v4370, %v1793
        %v4403 = vmul.f32 %v4371, %v1798
        %v4404 = vmul.f32 %v4372, %v1803
        %v4405 = vmul.f32 %v4373, %v1808
        %v4406 = vmul.f32 %v4374, %v1813
        %v4407 = vmul.f32 %v4375, %v1818
        %v4408 = vmul.f32 %v4376, %v1823
        %v4409 = vmul.f32 %v4377, %v1828
        %v4410 = vmul.f32 %v4378, %v1833
        %v4411 = vmul.f32 %v4379, %v1838
        %v4412 = vmul.f32 %v4380, %v1843
        %v4413 = vmul.f32 %v4381, %v1848
        %v4414 = vmul.f32 %v4382, %v1853
        %v4415 = vmul.f32 %v4383, %v1858
        %v4416 = vmul.f32 %v4384, %v1863
        %v4417 = vmul.f32 %v4385, %v1868
        %v4418 = vmul.f32 %v4386, %v1873
        %v4419 = vmul.f32 %v4387, %v1878
        %v4420 = vmul.f32 %v4388, %v1883
        %v4421 = vmul.f32 %v4389, %v1888
        %v4422 = vmul.f32 %v4390, %v1893
        %v4423 = vmul.f32 %v4391, %v1898
        %s4424 = scalar_lea.vmem %s2, 512
        %v4425 = vld [vmem:[%s4424] sm:$0xff]
        %v4426 = vld [vmem:[%s4424 + $0x8] sm:$0xff]
        %v4427 = vld [vmem:[%s4424 + $0x10] sm:$0xff]
        %v4428 = vld [vmem:[%s4424 + $0x18] sm:$0xff]
        %v4429 = vld [vmem:[%s4424 + $0x20] sm:$0xff]
        %v4430 = vld [vmem:[%s4424 + $0x28] sm:$0xff]
        %v4431 = vld [vmem:[%s4424 + $0x30] sm:$0xff]
        %v4432 = vld [vmem:[%s4424 + $0x38] sm:$0xff]
        %v4434 = vsel %vm690, %v4392, 0
        %v4437 = vsel %vm690, %v4393, 0
        %v4440 = vsel %vm690, %v4394, 0
        %v4443 = vsel %vm690, %v4395, 0
        %v4446 = vsel %vm690, %v4396, 0
        %v4449 = vsel %vm690, %v4397, 0
        %v4452 = vsel %vm690, %v4398, 0
        %v4455 = vsel %vm690, %v4399, 0
        %v4458 = vsel %vm690, %v4400, 0
        %v4461 = vsel %vm690, %v4401, 0
        %v4464 = vsel %vm690, %v4402, 0
        %v4467 = vsel %vm690, %v4403, 0
        %v4470 = vsel %vm690, %v4404, 0
        %v4473 = vsel %vm690, %v4405, 0
        %v4476 = vsel %vm690, %v4406, 0
        %v4479 = vsel %vm690, %v4407, 0
        %v4482 = vsel %vm690, %v4408, 0
        %v4485 = vsel %vm690, %v4409, 0
        %v4488 = vsel %vm690, %v4410, 0
        %v4491 = vsel %vm690, %v4411, 0
        %v4494 = vsel %vm690, %v4412, 0
        %v4497 = vsel %vm690, %v4413, 0
        %v4500 = vsel %vm690, %v4414, 0
        %v4503 = vsel %vm690, %v4415, 0
        %v4506 = vsel %vm690, %v4416, 0
        %v4509 = vsel %vm690, %v4417, 0
        %v4512 = vsel %vm690, %v4418, 0
        %v4515 = vsel %vm690, %v4419, 0
        %v4518 = vsel %vm690, %v4420, 0
        %v4521 = vsel %vm690, %v4421, 0
        %v4524 = vsel %vm690, %v4422, 0
        %v4527 = vsel %vm690, %v4423, 0
        %4529 = vmatprep.subr.mxu0 0.0
        %4530 = vmatpush1.msra.mxu0 %v4425
        %4531 = vmatprep.subr.mxu0 0.0
        %4532 = vmatpush1.msra.mxu0 %v4426
        %4533 = vmatprep.subr.mxu0 0.0
        %4534 = vmatpush1.msra.mxu0 %v4427
        %4535 = vmatprep.subr.mxu0 0.0
        %4536 = vmatpush1.msra.mxu0 %v4428
        %4537 = vmatprep.subr.mxu0 0.0
        %4538 = vmatpush1.msra.mxu0 %v4429
        %4539 = vmatprep.subr.mxu0 0.0
        %4540 = vmatpush1.msra.mxu0 %v4430
        %4541 = vmatprep.subr.mxu0 0.0
        %4542 = vmatpush1.msra.mxu0 %v4431
        %4543 = vmatprep.subr.mxu0 0.0
        %4544 = vmatpush1.msra.mxu0 %v4432
        %4545 = vmatprep.subr.mxu0 0.0
        %4546 = vmatpush1.msra.mxu0 0.0
        %4547 = vmatprep.subr.mxu0 0.0
        %4548 = vmatpush1.msra.mxu0 0.0
        %4549 = vmatprep.subr.mxu0 0.0
        %4550 = vmatpush1.msra.mxu0 0.0
        %4551 = vmatprep.subr.mxu0 0.0
        %4552 = vmatpush1.msra.mxu0 0.0
        %4553 = vmatprep.subr.mxu0 0.0
        %4554 = vmatpush1.msra.mxu0 0.0
        %4555 = vmatprep.subr.mxu0 0.0
        %4556 = vmatpush1.msra.mxu0 0.0
        %4557 = vmatprep.subr.mxu0 0.0
        %4558 = vmatpush1.msra.mxu0 0.0
        %4559 = vmatprep.subr.mxu0 0.0
        %4560 = vmatpush1.msra.mxu0 0.0
        %4561 = vmatprep.subr.mxu0 0.0
        %4562 = vmatpush1.msra.mxu0 0.0
        %4563 = vmatprep.subr.mxu0 0.0
        %4564 = vmatpush1.msra.mxu0 0.0
        %4565 = vmatprep.subr.mxu0 0.0
        %4566 = vmatpush1.msra.mxu0 0.0
        %4567 = vmatprep.subr.mxu0 0.0
        %4568 = vmatpush1.msra.mxu0 0.0
        %4569 = vmatprep.subr.mxu0 0.0
        %4570 = vmatpush1.msra.mxu0 0.0
        %4571 = vmatprep.subr.mxu0 0.0
        %4572 = vmatpush1.msra.mxu0 0.0
        %4573 = vmatprep.subr.mxu0 0.0
        %4574 = vmatpush1.msra.mxu0 0.0
        %4575 = vmatprep.subr.mxu0 0.0
        %4576 = vmatpush1.msra.mxu0 0.0
        %4577 = vmatprep.subr.mxu0 0.0
        %4578 = vmatpush1.msra.mxu0 0.0
        %4579 = vmatprep.subr.mxu0 0.0
        %4580 = vmatpush1.msra.mxu0 0.0
        %4581 = vmatprep.subr.mxu0 0.0
        %4582 = vmatpush1.msra.mxu0 0.0
        %4583 = vmatprep.subr.mxu0 0.0
        %4584 = vmatpush1.msra.mxu0 0.0
        %4585 = vmatprep.subr.mxu0 0.0
        %4586 = vmatpush1.msra.mxu0 0.0
        %4587 = vmatprep.subr.mxu0 0.0
        %4588 = vmatpush1.msra.mxu0 0.0
        %4589 = vmatprep.subr.mxu0 0.0
        %4590 = vmatpush1.msra.mxu0 0.0
        %4591 = vmatprep.subr.mxu0 0.0
        %4592 = vmatpush1.msra.mxu0 0.0
        %4593 = vmatprep.mubr.f32.mxu0 0.0
        %4594 = vmatmul.mubr.f32.gmra.mrb[0].mxu0 %v4434
        %v4595 = vpop.f32.mrb[0].mxu0
        %v4596 = vadd.f32 0.0, %v4595
        %v4597 = vpop.f32.mrb[0].mxu0
        %4598 = vmatprep.mubr.f32.mxu0 0.0
        %4599 = vmatmul.mubr.f32.gmra.mrb[0].mxu0 %v4437
        %v4600 = vpop.f32.mrb[0].mxu0
        %v4601 = vadd.f32 0.0, %v4600
        %v4602 = vpop.f32.mrb[0].mxu0
        %4603 = vmatprep.mubr.f32.mxu0 0.0
        %4604 = vmatmul.mubr.f32.gmra.mrb[0].mxu0 %v4440
        %v4605 = vpop.f32.mrb[0].mxu0
        %v4606 = vadd.f32 0.0, %v4605
        %v4607 = vpop.f32.mrb[0].mxu0
        %4608 = vmatprep.mubr.f32.mxu0 0.0
        %4609 = vmatmul.mubr.f32.gmra.mrb[0].mxu0 %v4443
        %v4610 = vpop.f32.mrb[0].mxu0
        %v4611 = vadd.f32 0.0, %v4610
        %v4612 = vpop.f32.mrb[0].mxu0
        %4613 = vmatprep.mubr.f32.mxu0 0.0
        %4614 = vmatmul.mubr.f32.gmra.mrb[0].mxu0 %v4446
        %v4615 = vpop.f32.mrb[0].mxu0
        %v4616 = vadd.f32 0.0, %v4615
        %v4617 = vpop.f32.mrb[0].mxu0
        %4618 = vmatprep.mubr.f32.mxu0 0.0
        %4619 = vmatmul.mubr.f32.gmra.mrb[0].mxu0 %v4449
        %v4620 = vpop.f32.mrb[0].mxu0
        %v4621 = vadd.f32 0.0, %v4620
        %v4622 = vpop.f32.mrb[0].mxu0
        %4623 = vmatprep.mubr.f32.mxu0 0.0
        %4624 = vmatmul.mubr.f32.gmra.mrb[0].mxu0 %v4452
        %v4625 = vpop.f32.mrb[0].mxu0
        %v4626 = vadd.f32 0.0, %v4625
        %v4627 = vpop.f32.mrb[0].mxu0
        %4628 = vmatprep.mubr.f32.mxu0 0.0
        %4629 = vmatmul.mubr.f32.gmra.mrb[0].mxu0 %v4455
        %v4630 = vpop.f32.mrb[0].mxu0
        %v4631 = vadd.f32 0.0, %v4630
        %v4632 = vpop.f32.mrb[0].mxu0
        %4633 = vmatprep.mubr.f32.mxu0 0.0
        %4634 = vmatmul.mubr.f32.gmra.mrb[0].mxu0 %v4458
        %v4635 = vpop.f32.mrb[0].mxu0
        %v4636 = vadd.f32 0.0, %v4635
        %v4637 = vpop.f32.mrb[0].mxu0
        %4638 = vmatprep.mubr.f32.mxu0 0.0
        %4639 = vmatmul.mubr.f32.gmra.mrb[0].mxu0 %v4461
        %v4640 = vpop.f32.mrb[0].mxu0
        %v4641 = vadd.f32 0.0, %v4640
        %v4642 = vpop.f32.mrb[0].mxu0
        %4643 = vmatprep.mubr.f32.mxu0 0.0
        %4644 = vmatmul.mubr.f32.gmra.mrb[0].mxu0 %v4464
        %v4645 = vpop.f32.mrb[0].mxu0
        %v4646 = vadd.f32 0.0, %v4645
        %v4647 = vpop.f32.mrb[0].mxu0
        %4648 = vmatprep.mubr.f32.mxu0 0.0
        %4649 = vmatmul.mubr.f32.gmra.mrb[0].mxu0 %v4467
        %v4650 = vpop.f32.mrb[0].mxu0
        %v4651 = vadd.f32 0.0, %v4650
        %v4652 = vpop.f32.mrb[0].mxu0
        %4653 = vmatprep.mubr.f32.mxu0 0.0
        %4654 = vmatmul.mubr.f32.gmra.mrb[0].mxu0 %v4470
        %v4655 = vpop.f32.mrb[0].mxu0
        %v4656 = vadd.f32 0.0, %v4655
        %v4657 = vpop.f32.mrb[0].mxu0
        %4658 = vmatprep.mubr.f32.mxu0 0.0
        %4659 = vmatmul.mubr.f32.gmra.mrb[0].mxu0 %v4473
        %v4660 = vpop.f32.mrb[0].mxu0
        %v4661 = vadd.f32 0.0, %v4660
        %v4662 = vpop.f32.mrb[0].mxu0
        %4663 = vmatprep.mubr.f32.mxu0 0.0
        %4664 = vmatmul.mubr.f32.gmra.mrb[0].mxu0 %v4476
        %v4665 = vpop.f32.mrb[0].mxu0
        %v4666 = vadd.f32 0.0, %v4665
        %v4667 = vpop.f32.mrb[0].mxu0
        %4668 = vmatprep.mubr.f32.mxu0 0.0
        %4669 = vmatmul.mubr.f32.gmra.mrb[0].mxu0 %v4479
        %v4670 = vpop.f32.mrb[0].mxu0
        %v4671 = vadd.f32 0.0, %v4670
        %v4672 = vpop.f32.mrb[0].mxu0
        %4673 = vmatprep.mubr.f32.mxu0 0.0
        %4674 = vmatmul.mubr.f32.gmra.mrb[0].mxu0 %v4482
        %v4675 = vpop.f32.mrb[0].mxu0
        %v4676 = vadd.f32 0.0, %v4675
        %v4677 = vpop.f32.mrb[0].mxu0
        %4678 = vmatprep.mubr.f32.mxu0 0.0
        %4679 = vmatmul.mubr.f32.gmra.mrb[0].mxu0 %v4485
        %v4680 = vpop.f32.mrb[0].mxu0
        %v4681 = vadd.f32 0.0, %v4680
        %v4682 = vpop.f32.mrb[0].mxu0
        %4683 = vmatprep.mubr.f32.mxu0 0.0
        %4684 = vmatmul.mubr.f32.gmra.mrb[0].mxu0 %v4488
        %v4685 = vpop.f32.mrb[0].mxu0
        %v4686 = vadd.f32 0.0, %v4685
        %v4687 = vpop.f32.mrb[0].mxu0
        %4688 = vmatprep.mubr.f32.mxu0 0.0
        %4689 = vmatmul.mubr.f32.gmra.mrb[0].mxu0 %v4491
        %v4690 = vpop.f32.mrb[0].mxu0
        %v4691 = vadd.f32 0.0, %v4690
        %v4692 = vpop.f32.mrb[0].mxu0
        %4693 = vmatprep.mubr.f32.mxu0 0.0
        %4694 = vmatmul.mubr.f32.gmra.mrb[0].mxu0 %v4494
        %v4695 = vpop.f32.mrb[0].mxu0
        %v4696 = vadd.f32 0.0, %v4695
        %v4697 = vpop.f32.mrb[0].mxu0
        %4698 = vmatprep.mubr.f32.mxu0 0.0
        %4699 = vmatmul.mubr.f32.gmra.mrb[0].mxu0 %v4497
        %v4700 = vpop.f32.mrb[0].mxu0
        %v4701 = vadd.f32 0.0, %v4700
        %v4702 = vpop.f32.mrb[0].mxu0
        %4703 = vmatprep.mubr.f32.mxu0 0.0
        %4704 = vmatmul.mubr.f32.gmra.mrb[0].mxu0 %v4500
        %v4705 = vpop.f32.mrb[0].mxu0
        %v4706 = vadd.f32 0.0, %v4705
        %v4707 = vpop.f32.mrb[0].mxu0
        %4708 = vmatprep.mubr.f32.mxu0 0.0
        %4709 = vmatmul.mubr.f32.gmra.mrb[0].mxu0 %v4503
        %v4710 = vpop.f32.mrb[0].mxu0
        %v4711 = vadd.f32 0.0, %v4710
        %v4712 = vpop.f32.mrb[0].mxu0
        %4713 = vmatprep.mubr.f32.mxu0 0.0
        %4714 = vmatmul.mubr.f32.gmra.mrb[0].mxu0 %v4506
        %v4715 = vpop.f32.mrb[0].mxu0
        %v4716 = vadd.f32 0.0, %v4715
        %v4717 = vpop.f32.mrb[0].mxu0
        %4718 = vmatprep.mubr.f32.mxu0 0.0
        %4719 = vmatmul.mubr.f32.gmra.mrb[0].mxu0 %v4509
        %v4720 = vpop.f32.mrb[0].mxu0
        %v4721 = vadd.f32 0.0, %v4720
        %v4722 = vpop.f32.mrb[0].mxu0
        %4723 = vmatprep.mubr.f32.mxu0 0.0
        %4724 = vmatmul.mubr.f32.gmra.mrb[0].mxu0 %v4512
        %v4725 = vpop.f32.mrb[0].mxu0
        %v4726 = vadd.f32 0.0, %v4725
        %v4727 = vpop.f32.mrb[0].mxu0
        %4728 = vmatprep.mubr.f32.mxu0 0.0
        %4729 = vmatmul.mubr.f32.gmra.mrb[0].mxu0 %v4515
        %v4730 = vpop.f32.mrb[0].mxu0
        %v4731 = vadd.f32 0.0, %v4730
        %v4732 = vpop.f32.mrb[0].mxu0
        %4733 = vmatprep.mubr.f32.mxu0 0.0
        %4734 = vmatmul.mubr.f32.gmra.mrb[0].mxu0 %v4518
        %v4735 = vpop.f32.mrb[0].mxu0
        %v4736 = vadd.f32 0.0, %v4735
        %v4737 = vpop.f32.mrb[0].mxu0
        %4738 = vmatprep.mubr.f32.mxu0 0.0
        %4739 = vmatmul.mubr.f32.gmra.mrb[0].mxu0 %v4521
        %v4740 = vpop.f32.mrb[0].mxu0
        %v4741 = vadd.f32 0.0, %v4740
        %v4742 = vpop.f32.mrb[0].mxu0
        %4743 = vmatprep.mubr.f32.mxu0 0.0
        %4744 = vmatmul.mubr.f32.gmra.mrb[0].mxu0 %v4524
        %v4745 = vpop.f32.mrb[0].mxu0
        %v4746 = vadd.f32 0.0, %v4745
        %v4747 = vpop.f32.mrb[0].mxu0
        %4748 = vmatprep.mubr.f32.mxu0 0.0
        %4749 = vmatmul.mubr.f32.gmra.mrb[0].mxu0 %v4527
        %v4750 = vpop.f32.mrb[0].mxu0
        %v4751 = vadd.f32 0.0, %v4750
        %v4752 = vpop.f32.mrb[0].mxu0
        %4753 = vdwg.mxu0
        %v4754 = vadd.f32 %v4328, %v4596
        %v4755 = vadd.f32 %v4329, %v4601
        %v4756 = vadd.f32 %v4330, %v4606
        %v4757 = vadd.f32 %v4331, %v4611
        %v4758 = vadd.f32 %v4332, %v4616
        %v4759 = vadd.f32 %v4333, %v4621
        %v4760 = vadd.f32 %v4334, %v4626
        %v4761 = vadd.f32 %v4335, %v4631
        %v4762 = vadd.f32 %v4336, %v4636
        %v4763 = vadd.f32 %v4337, %v4641
        %v4764 = vadd.f32 %v4338, %v4646
        %v4765 = vadd.f32 %v4339, %v4651
        %v4766 = vadd.f32 %v4340, %v4656
        %v4767 = vadd.f32 %v4341, %v4661
        %v4768 = vadd.f32 %v4342, %v4666
        %v4769 = vadd.f32 %v4343, %v4671
        %v4770 = vadd.f32 %v4344, %v4676
        %v4771 = vadd.f32 %v4345, %v4681
        %v4772 = vadd.f32 %v4346, %v4686
        %v4773 = vadd.f32 %v4347, %v4691
        %v4774 = vadd.f32 %v4348, %v4696
        %v4775 = vadd.f32 %v4349, %v4701
        %v4776 = vadd.f32 %v4350, %v4706
        %v4777 = vadd.f32 %v4351, %v4711
        %v4778 = vadd.f32 %v4352, %v4716
        %v4779 = vadd.f32 %v4353, %v4721
        %v4780 = vadd.f32 %v4354, %v4726
        %v4781 = vadd.f32 %v4355, %v4731
        %v4782 = vadd.f32 %v4356, %v4736
        %v4783 = vadd.f32 %v4357, %v4741
        %v4784 = vadd.f32 %v4358, %v4746
        %v4785 = vadd.f32 %v4359, %v4751
        %v4786 = vld [vmem:[%s3] sm:$0x1]
        %v4788 = vlaneseq
        %v4789 = vshrl.u32 %v4788, 7
        %v4790 = vsub.s32 0, %v4789
        %v4791 = vrot.slane %v4786, %v4790
        %v4793 = vadd.f32 %v4754, %v4791
        %v4794 = vadd.f32 %v4755, %v4791
        %v4795 = vadd.f32 %v4756, %v4791
        %v4796 = vadd.f32 %v4757, %v4791
        %v4797 = vadd.f32 %v4758, %v4791
        %v4798 = vadd.f32 %v4759, %v4791
        %v4799 = vadd.f32 %v4760, %v4791
        %v4800 = vadd.f32 %v4761, %v4791
        %v4801 = vadd.f32 %v4762, %v4791
        %v4802 = vadd.f32 %v4763, %v4791
        %v4803 = vadd.f32 %v4764, %v4791
        %v4804 = vadd.f32 %v4765, %v4791
        %v4805 = vadd.f32 %v4766, %v4791
        %v4806 = vadd.f32 %v4767, %v4791
        %v4807 = vadd.f32 %v4768, %v4791
        %v4808 = vadd.f32 %v4769, %v4791
        %v4809 = vadd.f32 %v4770, %v4791
        %v4810 = vadd.f32 %v4771, %v4791
        %v4811 = vadd.f32 %v4772, %v4791
        %v4812 = vadd.f32 %v4773, %v4791
        %v4813 = vadd.f32 %v4774, %v4791
        %v4814 = vadd.f32 %v4775, %v4791
        %v4815 = vadd.f32 %v4776, %v4791
        %v4816 = vadd.f32 %v4777, %v4791
        %v4817 = vadd.f32 %v4778, %v4791
        %v4818 = vadd.f32 %v4779, %v4791
        %v4819 = vadd.f32 %v4780, %v4791
        %v4820 = vadd.f32 %v4781, %v4791
        %v4821 = vadd.f32 %v4782, %v4791
        %v4822 = vadd.f32 %v4783, %v4791
        %v4823 = vadd.f32 %v4784, %v4791
        %v4824 = vadd.f32 %v4785, %v4791
        %v4825 = vmax.f32 %v4793, 0.0
        %v4826 = vmax.f32 %v4794, 0.0
        %v4827 = vmax.f32 %v4795, 0.0
        %v4828 = vmax.f32 %v4796, 0.0
        %v4829 = vmax.f32 %v4797, 0.0
        %v4830 = vmax.f32 %v4798, 0.0
        %v4831 = vmax.f32 %v4799, 0.0
        %v4832 = vmax.f32 %v4800, 0.0
        %v4833 = vmax.f32 %v4801, 0.0
        %v4834 = vmax.f32 %v4802, 0.0
        %v4835 = vmax.f32 %v4803, 0.0
        %v4836 = vmax.f32 %v4804, 0.0
        %v4837 = vmax.f32 %v4805, 0.0
        %v4838 = vmax.f32 %v4806, 0.0
        %v4839 = vmax.f32 %v4807, 0.0
        %v4840 = vmax.f32 %v4808, 0.0
        %v4841 = vmax.f32 %v4809, 0.0
        %v4842 = vmax.f32 %v4810, 0.0
        %v4843 = vmax.f32 %v4811, 0.0
        %v4844 = vmax.f32 %v4812, 0.0
        %v4845 = vmax.f32 %v4813, 0.0
        %v4846 = vmax.f32 %v4814, 0.0
        %v4847 = vmax.f32 %v4815, 0.0
        %v4848 = vmax.f32 %v4816, 0.0
        %v4849 = vmax.f32 %v4817, 0.0
        %v4850 = vmax.f32 %v4818, 0.0
        %v4851 = vmax.f32 %v4819, 0.0
        %v4852 = vmax.f32 %v4820, 0.0
        %v4853 = vmax.f32 %v4821, 0.0
        %v4854 = vmax.f32 %v4822, 0.0
        %v4855 = vmax.f32 %v4823, 0.0
        %v4856 = vmax.f32 %v4824, 0.0
        %v4857 = vadd.f32 %v4825, %v4826
        %v4858 = vadd.f32 %v4857, %v4827
        %v4859 = vadd.f32 %v4858, %v4828
        %v4860 = vadd.f32 %v4859, %v4829
        %v4861 = vadd.f32 %v4860, %v4830
        %v4862 = vadd.f32 %v4861, %v4831
        %v4863 = vadd.f32 %v4862, %v4832
        %v4864 = vadd.f32 %v4863, %v4833
        %v4865 = vadd.f32 %v4864, %v4834
        %v4866 = vadd.f32 %v4865, %v4835
        %v4867 = vadd.f32 %v4866, %v4836
        %v4868 = vadd.f32 %v4867, %v4837
        %v4869 = vadd.f32 %v4868, %v4838
        %v4870 = vadd.f32 %v4869, %v4839
        %v4871 = vadd.f32 %v4870, %v4840
        %v4872 = vadd.f32 %v4871, %v4841
        %v4873 = vadd.f32 %v4872, %v4842
        %v4874 = vadd.f32 %v4873, %v4843
        %v4875 = vadd.f32 %v4874, %v4844
        %v4876 = vadd.f32 %v4875, %v4845
        %v4877 = vadd.f32 %v4876, %v4846
        %v4878 = vadd.f32 %v4877, %v4847
        %v4879 = vadd.f32 %v4878, %v4848
        %v4880 = vadd.f32 %v4879, %v4849
        %v4881 = vadd.f32 %v4880, %v4850
        %v4882 = vadd.f32 %v4881, %v4851
        %v4883 = vadd.f32 %v4882, %v4852
        %v4884 = vadd.f32 %v4883, %v4853
        %v4885 = vadd.f32 %v4884, %v4854
        %v4886 = vadd.f32 %v4885, %v4855
        %v4887 = vadd.f32 %v4886, %v4856
        %v4888 = vrot.slane %v4887, 4
        %v4889 = vadd.f32 %v4887, %v4888
        %v4890 = vrot.slane %v4889, 2
        %v4891 = vadd.f32 %v4889, %v4890
        %v4892 = vrot.slane %v4891, 1
        %v4893 = vadd.f32 %v4891, %v4892
        %v4894 = vmul.f32 %v4893, 0.00390625
        %v4895 = vld [vmem:[%s4] sm:$0xff]
        %v4896 = vld [vmem:[%s4 + $0x8] sm:$0xff]
        %v4897 = vld [vmem:[%s4 + $0x10] sm:$0xff]
        %v4898 = vld [vmem:[%s4 + $0x18] sm:$0xff]
        %v4899 = vld [vmem:[%s4 + $0x20] sm:$0xff]
        %v4900 = vld [vmem:[%s4 + $0x28] sm:$0xff]
        %v4901 = vld [vmem:[%s4 + $0x30] sm:$0xff]
        %v4902 = vld [vmem:[%s4 + $0x38] sm:$0xff]
        %v4903 = vld [vmem:[%s4 + $0x40] sm:$0xff]
        %v4904 = vld [vmem:[%s4 + $0x48] sm:$0xff]
        %v4905 = vld [vmem:[%s4 + $0x50] sm:$0xff]
        %v4906 = vld [vmem:[%s4 + $0x58] sm:$0xff]
        %v4907 = vld [vmem:[%s4 + $0x60] sm:$0xff]
        %v4908 = vld [vmem:[%s4 + $0x68] sm:$0xff]
        %v4909 = vld [vmem:[%s4 + $0x70] sm:$0xff]
        %v4910 = vld [vmem:[%s4 + $0x78] sm:$0xff]
        %v4911 = vld [vmem:[%s5] sm:$0x1]
        %4912 = vmatprep.subr.mxu0 0.0
        %4913 = vmatpush1.msra.mxu0 %v4895
        %4914 = vmatprep.subr.mxu0 0.0
        %4915 = vmatpush1.msra.mxu0 %v4896
        %4916 = vmatprep.subr.mxu0 0.0
        %4917 = vmatpush1.msra.mxu0 %v4897
        %4918 = vmatprep.subr.mxu0 0.0
        %4919 = vmatpush1.msra.mxu0 %v4898
        %4920 = vmatprep.subr.mxu0 0.0
        %4921 = vmatpush1.msra.mxu0 %v4899
        %4922 = vmatprep.subr.mxu0 0.0
        %4923 = vmatpush1.msra.mxu0 %v4900
        %4924 = vmatprep.subr.mxu0 0.0
        %4925 = vmatpush1.msra.mxu0 %v4901
        %4926 = vmatprep.subr.mxu0 0.0
        %4927 = vmatpush1.msra.mxu0 %v4902
        %4928 = vmatprep.subr.mxu0 0.0
        %4929 = vmatpush1.msra.mxu0 %v4903
        %4930 = vmatprep.subr.mxu0 0.0
        %4931 = vmatpush1.msra.mxu0 %v4904
        %4932 = vmatprep.subr.mxu0 0.0
        %4933 = vmatpush1.msra.mxu0 %v4905
        %4934 = vmatprep.subr.mxu0 0.0
        %4935 = vmatpush1.msra.mxu0 %v4906
        %4936 = vmatprep.subr.mxu0 0.0
        %4937 = vmatpush1.msra.mxu0 %v4907
        %4938 = vmatprep.subr.mxu0 0.0
        %4939 = vmatpush1.msra.mxu0 %v4908
        %4940 = vmatprep.subr.mxu0 0.0
        %4941 = vmatpush1.msra.mxu0 %v4909
        %4942 = vmatprep.subr.mxu0 0.0
        %4943 = vmatpush1.msra.mxu0 %v4910
        %4944 = vmatprep.subr.mxu0 0.0
        %4945 = vmatpush1.msra.mxu0 0.0
        %4946 = vmatprep.subr.mxu0 0.0
        %4947 = vmatpush1.msra.mxu0 0.0
        %4948 = vmatprep.subr.mxu0 0.0
        %4949 = vmatpush1.msra.mxu0 0.0
        %4950 = vmatprep.subr.mxu0 0.0
        %4951 = vmatpush1.msra.mxu0 0.0
        %4952 = vmatprep.subr.mxu0 0.0
        %4953 = vmatpush1.msra.mxu0 0.0
        %4954 = vmatprep.subr.mxu0 0.0
        %4955 = vmatpush1.msra.mxu0 0.0
        %4956 = vmatprep.subr.mxu0 0.0
        %4957 = vmatpush1.msra.mxu0 0.0
        %4958 = vmatprep.subr.mxu0 0.0
        %4959 = vmatpush1.msra.mxu0 0.0
        %4960 = vmatprep.subr.mxu0 0.0
        %4961 = vmatpush1.msra.mxu0 0.0
        %4962 = vmatprep.subr.mxu0 0.0
        %4963 = vmatpush1.msra.mxu0 0.0
        %4964 = vmatprep.subr.mxu0 0.0
        %4965 = vmatpush1.msra.mxu0 0.0
        %4966 = vmatprep.subr.mxu0 0.0
        %4967 = vmatpush1.msra.mxu0 0.0
        %4968 = vmatprep.subr.mxu0 0.0
        %4969 = vmatpush1.msra.mxu0 0.0
        %4970 = vmatprep.subr.mxu0 0.0
        %4971 = vmatpush1.msra.mxu0 0.0
        %4972 = vmatprep.subr.mxu0 0.0
        %4973 = vmatpush1.msra.mxu0 0.0
        %4974 = vmatprep.subr.mxu0 0.0
        %4975 = vmatpush1.msra.mxu0 0.0
        %4976 = vmatprep.mubr.f32.mxu0 0.0
        %4977 = vmatmul.mubr.f32.gmra.mrb[0].mxu0 %v4894
        %v4978 = vpop.f32.mrb[0].mxu0
        %v4979 = vadd.f32 %v4911, %v4978
        %v4980 = vpop.f32.mrb[0].mxu0
        %4981 = vdwg.mxu0
        %v4982 = vmax.f32 %v4979, 0.0
        %v4983 = vld [vmem:[%s6] sm:$0xff]
        %v4984 = vld [vmem:[%s6 + $0x8] sm:$0xff]
        %v4985 = vld [vmem:[%s6 + $0x10] sm:$0xff]
        %v4986 = vld [vmem:[%s6 + $0x18] sm:$0xff]
        %v4987 = vld [vmem:[%s6 + $0x20] sm:$0xff]
        %v4988 = vld [vmem:[%s6 + $0x28] sm:$0xff]
        %v4989 = vld [vmem:[%s6 + $0x30] sm:$0xff]
        %v4990 = vld [vmem:[%s6 + $0x38] sm:$0xff]
        %v4991 = vld [vmem:[%s7] sm:$0x1]
        %v4993 = vsel %vm690, %v4982, 0
        %4995 = vmatprep.subr.mxu0 0.0
        %4996 = vmatpush1.msra.mxu0 %v4983
        %4997 = vmatprep.subr.mxu0 0.0
        %4998 = vmatpush1.msra.mxu0 %v4984
        %4999 = vmatprep.subr.mxu0 0.0
        %5000 = vmatpush1.msra.mxu0 %v4985
        %5001 = vmatprep.subr.mxu0 0.0
        %5002 = vmatpush1.msra.mxu0 %v4986
        %5003 = vmatprep.subr.mxu0 0.0
        %5004 = vmatpush1.msra.mxu0 %v4987
        %5005 = vmatprep.subr.mxu0 0.0
        %5006 = vmatpush1.msra.mxu0 %v4988
        %5007 = vmatprep.subr.mxu0 0.0
        %5008 = vmatpush1.msra.mxu0 %v4989
        %5009 = vmatprep.subr.mxu0 0.0
        %5010 = vmatpush1.msra.mxu0 %v4990
        %5011 = vmatprep.subr.mxu0 0.0
        %5012 = vmatpush1.msra.mxu0 0.0
        %5013 = vmatprep.subr.mxu0 0.0
        %5014 = vmatpush1.msra.mxu0 0.0
        %5015 = vmatprep.subr.mxu0 0.0
        %5016 = vmatpush1.msra.mxu0 0.0
        %5017 = vmatprep.subr.mxu0 0.0
        %5018 = vmatpush1.msra.mxu0 0.0
        %5019 = vmatprep.subr.mxu0 0.0
        %5020 = vmatpush1.msra.mxu0 0.0
        %5021 = vmatprep.subr.mxu0 0.0
        %5022 = vmatpush1.msra.mxu0 0.0
        %5023 = vmatprep.subr.mxu0 0.0
        %5024 = vmatpush1.msra.mxu0 0.0
        %5025 = vmatprep.subr.mxu0 0.0
        %5026 = vmatpush1.msra.mxu0 0.0
        %5027 = vmatprep.subr.mxu0 0.0
        %5028 = vmatpush1.msra.mxu0 0.0
        %5029 = vmatprep.subr.mxu0 0.0
        %5030 = vmatpush1.msra.mxu0 0.0
        %5031 = vmatprep.subr.mxu0 0.0
        %5032 = vmatpush1.msra.mxu0 0.0
        %5033 = vmatprep.subr.mxu0 0.0
        %5034 = vmatpush1.msra.mxu0 0.0
        %5035 = vmatprep.subr.mxu0 0.0
        %5036 = vmatpush1.msra.mxu0 0.0
        %5037 = vmatprep.subr.mxu0 0.0
        %5038 = vmatpush1.msra.mxu0 0.0
        %5039 = vmatprep.subr.mxu0 0.0
        %5040 = vmatpush1.msra.mxu0 0.0
        %5041 = vmatprep.subr.mxu0 0.0
        %5042 = vmatpush1.msra.mxu0 0.0
        %5043 = vmatprep.subr.mxu0 0.0
        %5044 = vmatpush1.msra.mxu0 0.0
        %5045 = vmatprep.subr.mxu0 0.0
        %5046 = vmatpush1.msra.mxu0 0.0
        %5047 = vmatprep.subr.mxu0 0.0
        %5048 = vmatpush1.msra.mxu0 0.0
        %5049 = vmatprep.subr.mxu0 0.0
        %5050 = vmatpush1.msra.mxu0 0.0
        %5051 = vmatprep.subr.mxu0 0.0
        %5052 = vmatpush1.msra.mxu0 0.0
        %5053 = vmatprep.subr.mxu0 0.0
        %5054 = vmatpush1.msra.mxu0 0.0
        %5055 = vmatprep.subr.mxu0 0.0
        %5056 = vmatpush1.msra.mxu0 0.0
        %5057 = vmatprep.subr.mxu0 0.0
        %5058 = vmatpush1.msra.mxu0 0.0
        %5059 = vmatprep.mubr.f32.mxu0 0.0
        %5060 = vmatmul.mubr.f32.gmra.mrb[0].mxu0 %v4993
        %v5061 = vpop.f32.mrb[0].mxu0
        %v5062 = vadd.f32 %v4991, %v5061
        %v5063 = vpop.f32.mrb[0].mxu0
        %5064 = vdwg.mxu0
        %s5065 = scalar_lea.vmem %s6, 64
        %v5066 = vld [vmem:[%s5065] sm:$0xff]
        %v5067 = vld [vmem:[%s5065 + $0x8] sm:$0xff]
        %v5068 = vld [vmem:[%s5065 + $0x10] sm:$0xff]
        %v5069 = vld [vmem:[%s5065 + $0x18] sm:$0xff]
        %v5070 = vld [vmem:[%s5065 + $0x20] sm:$0xff]
        %v5071 = vld [vmem:[%s5065 + $0x28] sm:$0xff]
        %v5072 = vld [vmem:[%s5065 + $0x30] sm:$0xff]
        %v5073 = vld [vmem:[%s5065 + $0x38] sm:$0xff]
        %s5074 = scalar_lea.vmem %s7, 1
        %v5075 = vld [vmem:[%s5074] sm:$0x1]
        %5076 = vmatprep.subr.mxu0 0.0
        %5077 = vmatpush1.msra.mxu0 %v5066
        %5078 = vmatprep.subr.mxu0 0.0
        %5079 = vmatpush1.msra.mxu0 %v5067
        %5080 = vmatprep.subr.mxu0 0.0
        %5081 = vmatpush1.msra.mxu0 %v5068
        %5082 = vmatprep.subr.mxu0 0.0
        %5083 = vmatpush1.msra.mxu0 %v5069
        %5084 = vmatprep.subr.mxu0 0.0
        %5085 = vmatpush1.msra.mxu0 %v5070
        %5086 = vmatprep.subr.mxu0 0.0
        %5087 = vmatpush1.msra.mxu0 %v5071
        %5088 = vmatprep.subr.mxu0 0.0
        %5089 = vmatpush1.msra.mxu0 %v5072
        %5090 = vmatprep.subr.mxu0 0.0
        %5091 = vmatpush1.msra.mxu0 %v5073
        %5092 = vmatprep.subr.mxu0 0.0
        %5093 = vmatpush1.msra.mxu0 0.0
        %5094 = vmatprep.subr.mxu0 0.0
        %5095 = vmatpush1.msra.mxu0 0.0
        %5096 = vmatprep.subr.mxu0 0.0
        %5097 = vmatpush1.msra.mxu0 0.0
        %5098 = vmatprep.subr.mxu0 0.0
        %5099 = vmatpush1.msra.mxu0 0.0
        %5100 = vmatprep.subr.mxu0 0.0
        %5101 = vmatpush1.msra.mxu0 0.0
        %5102 = vmatprep.subr.mxu0 0.0
        %5103 = vmatpush1.msra.mxu0 0.0
        %5104 = vmatprep.subr.mxu0 0.0
        %5105 = vmatpush1.msra.mxu0 0.0
        %5106 = vmatprep.subr.mxu0 0.0
        %5107 = vmatpush1.msra.mxu0 0.0
        %5108 = vmatprep.subr.mxu0 0.0
        %5109 = vmatpush1.msra.mxu0 0.0
        %5110 = vmatprep.subr.mxu0 0.0
        %5111 = vmatpush1.msra.mxu0 0.0
        %5112 = vmatprep.subr.mxu0 0.0
        %5113 = vmatpush1.msra.mxu0 0.0
        %5114 = vmatprep.subr.mxu0 0.0
        %5115 = vmatpush1.msra.mxu0 0.0
        %5116 = vmatprep.subr.mxu0 0.0
        %5117 = vmatpush1.msra.mxu0 0.0
        %5118 = vmatprep.subr.mxu0 0.0
        %5119 = vmatpush1.msra.mxu0 0.0
        %5120 = vmatprep.subr.mxu0 0.0
        %5121 = vmatpush1.msra.mxu0 0.0
        %5122 = vmatprep.subr.mxu0 0.0
        %5123 = vmatpush1.msra.mxu0 0.0
        %5124 = vmatprep.subr.mxu0 0.0
        %5125 = vmatpush1.msra.mxu0 0.0
        %5126 = vmatprep.subr.mxu0 0.0
        %5127 = vmatpush1.msra.mxu0 0.0
        %5128 = vmatprep.subr.mxu0 0.0
        %5129 = vmatpush1.msra.mxu0 0.0
        %5130 = vmatprep.subr.mxu0 0.0
        %5131 = vmatpush1.msra.mxu0 0.0
        %5132 = vmatprep.subr.mxu0 0.0
        %5133 = vmatpush1.msra.mxu0 0.0
        %5134 = vmatprep.subr.mxu0 0.0
        %5135 = vmatpush1.msra.mxu0 0.0
        %5136 = vmatprep.subr.mxu0 0.0
        %5137 = vmatpush1.msra.mxu0 0.0
        %5138 = vmatprep.subr.mxu0 0.0
        %5139 = vmatpush1.msra.mxu0 0.0
        %5140 = vmatprep.mubr.f32.mxu0 0.0
        %5141 = vmatmul.mubr.f32.gmra.mrb[0].mxu0 %v4993
        %v5142 = vpop.f32.mrb[0].mxu0
        %v5143 = vadd.f32 %v5075, %v5142
        %v5144 = vpop.f32.mrb[0].mxu0
        %5145 = vdwg.mxu0
        %v5146 = vmax.f32 %v5062, %v5143
        %v5147 = vsub.f32 %v5062, %v5146
        %v5148 = vmul.f32 %v5147, 1.442695
        %v5149 = vpow.pop %v5148
        %v5150 = vsub.f32 %v5143, %v5146
        %v5151 = vmul.f32 %v5150, 1.442695
        %v5152 = vpow.pop %v5151
        %v5153 = vadd.f32 %v5149, %v5152
        %v5154 = vrcp.pop %v5153
        %v5155 = vmul.f32 %v5149, %v5154
        %v5156 = vlaneseq
        %v5157 = vshrl.u32 %v5156, 7
        %v5158 = vsub.s32 0, %v5157
        %v5159 = vrot.slane %v5155, %v5158
        %v5160 = vmul.f32 %v4825, %v5159
        %v5161 = vmul.f32 %v4826, %v5159
        %v5162 = vmul.f32 %v4827, %v5159
        %v5163 = vmul.f32 %v4828, %v5159
        %v5164 = vmul.f32 %v4829, %v5159
        %v5165 = vmul.f32 %v4830, %v5159
        %v5166 = vmul.f32 %v4831, %v5159
        %v5167 = vmul.f32 %v4832, %v5159
        %v5168 = vmul.f32 %v4833, %v5159
        %v5169 = vmul.f32 %v4834, %v5159
        %v5170 = vmul.f32 %v4835, %v5159
        %v5171 = vmul.f32 %v4836, %v5159
        %v5172 = vmul.f32 %v4837, %v5159
        %v5173 = vmul.f32 %v4838, %v5159
        %v5174 = vmul.f32 %v4839, %v5159
        %v5175 = vmul.f32 %v4840, %v5159
        %v5176 = vmul.f32 %v4841, %v5159
        %v5177 = vmul.f32 %v4842, %v5159
        %v5178 = vmul.f32 %v4843, %v5159
        %v5179 = vmul.f32 %v4844, %v5159
        %v5180 = vmul.f32 %v4845, %v5159
        %v5181 = vmul.f32 %v4846, %v5159
        %v5182 = vmul.f32 %v4847, %v5159
        %v5183 = vmul.f32 %v4848, %v5159
        %v5184 = vmul.f32 %v4849, %v5159
        %v5185 = vmul.f32 %v4850, %v5159
        %v5186 = vmul.f32 %v4851, %v5159
        %v5187 = vmul.f32 %v4852, %v5159
        %v5188 = vmul.f32 %v4853, %v5159
        %v5189 = vmul.f32 %v4854, %v5159
        %v5190 = vmul.f32 %v4855, %v5159
        %v5191 = vmul.f32 %v4856, %v5159
        %v5192 = vld [vmem:[%s8] sm:$0xff]
        %v5193 = vld [vmem:[%s8 + $0x8] sm:$0xff]
        %v5194 = vld [vmem:[%s8 + $0x10] sm:$0xff]
        %v5195 = vld [vmem:[%s8 + $0x18] sm:$0xff]
        %v5196 = vld [vmem:[%s8 + $0x20] sm:$0xff]
        %v5197 = vld [vmem:[%s8 + $0x28] sm:$0xff]
        %v5198 = vld [vmem:[%s8 + $0x30] sm:$0xff]
        %v5199 = vld [vmem:[%s8 + $0x38] sm:$0xff]
        %v5200 = vld [vmem:[%s8 + $0x40] sm:$0xff]
        %v5201 = vld [vmem:[%s8 + $0x48] sm:$0xff]
        %v5202 = vld [vmem:[%s8 + $0x50] sm:$0xff]
        %v5203 = vld [vmem:[%s8 + $0x58] sm:$0xff]
        %v5204 = vld [vmem:[%s8 + $0x60] sm:$0xff]
        %v5205 = vld [vmem:[%s8 + $0x68] sm:$0xff]
        %v5206 = vld [vmem:[%s8 + $0x70] sm:$0xff]
        %v5207 = vld [vmem:[%s8 + $0x78] sm:$0xff]
        %5208 = vmatprep.subr.mxu0 0.0
        %5209 = vmatpush1.msra.mxu0 %v5192
        %5210 = vmatprep.subr.mxu0 0.0
        %5211 = vmatpush1.msra.mxu0 %v5193
        %5212 = vmatprep.subr.mxu0 0.0
        %5213 = vmatpush1.msra.mxu0 %v5194
        %5214 = vmatprep.subr.mxu0 0.0
        %5215 = vmatpush1.msra.mxu0 %v5195
        %5216 = vmatprep.subr.mxu0 0.0
        %5217 = vmatpush1.msra.mxu0 %v5196
        %5218 = vmatprep.subr.mxu0 0.0
        %5219 = vmatpush1.msra.mxu0 %v5197
        %5220 = vmatprep.subr.mxu0 0.0
        %5221 = vmatpush1.msra.mxu0 %v5198
        %5222 = vmatprep.subr.mxu0 0.0
        %5223 = vmatpush1.msra.mxu0 %v5199
        %5224 = vmatprep.subr.mxu0 0.0
        %5225 = vmatpush1.msra.mxu0 %v5200
        %5226 = vmatprep.subr.mxu0 0.0
        %5227 = vmatpush1.msra.mxu0 %v5201
        %5228 = vmatprep.subr.mxu0 0.0
        %5229 = vmatpush1.msra.mxu0 %v5202
        %5230 = vmatprep.subr.mxu0 0.0
        %5231 = vmatpush1.msra.mxu0 %v5203
        %5232 = vmatprep.subr.mxu0 0.0
        %5233 = vmatpush1.msra.mxu0 %v5204
        %5234 = vmatprep.subr.mxu0 0.0
        %5235 = vmatpush1.msra.mxu0 %v5205
        %5236 = vmatprep.subr.mxu0 0.0
        %5237 = vmatpush1.msra.mxu0 %v5206
        %5238 = vmatprep.subr.mxu0 0.0
        %5239 = vmatpush1.msra.mxu0 %v5207
        %5240 = vmatprep.subr.mxu0 0.0
        %5241 = vmatpush1.msra.mxu0 0.0
        %5242 = vmatprep.subr.mxu0 0.0
        %5243 = vmatpush1.msra.mxu0 0.0
        %5244 = vmatprep.subr.mxu0 0.0
        %5245 = vmatpush1.msra.mxu0 0.0
        %5246 = vmatprep.subr.mxu0 0.0
        %5247 = vmatpush1.msra.mxu0 0.0
        %5248 = vmatprep.subr.mxu0 0.0
        %5249 = vmatpush1.msra.mxu0 0.0
        %5250 = vmatprep.subr.mxu0 0.0
        %5251 = vmatpush1.msra.mxu0 0.0
        %5252 = vmatprep.subr.mxu0 0.0
        %5253 = vmatpush1.msra.mxu0 0.0
        %5254 = vmatprep.subr.mxu0 0.0
        %5255 = vmatpush1.msra.mxu0 0.0
        %5256 = vmatprep.subr.mxu0 0.0
        %5257 = vmatpush1.msra.mxu0 0.0
        %5258 = vmatprep.subr.mxu0 0.0
        %5259 = vmatpush1.msra.mxu0 0.0
        %5260 = vmatprep.subr.mxu0 0.0
        %5261 = vmatpush1.msra.mxu0 0.0
        %5262 = vmatprep.subr.mxu0 0.0
        %5263 = vmatpush1.msra.mxu0 0.0
        %5264 = vmatprep.subr.mxu0 0.0
        %5265 = vmatpush1.msra.mxu0 0.0
        %5266 = vmatprep.subr.mxu0 0.0
        %5267 = vmatpush1.msra.mxu0 0.0
        %5268 = vmatprep.subr.mxu0 0.0
        %5269 = vmatpush1.msra.mxu0 0.0
        %5270 = vmatprep.subr.mxu0 0.0
        %5271 = vmatpush1.msra.mxu0 0.0
        %5272 = vmatprep.mubr.f32.mxu0 0.0
        %5273 = vmatmul.mubr.f32.gmra.mrb[0].mxu0 %v5160
        %v5274 = vpop.f32.mrb[0].mxu0
        %v5275 = vadd.f32 %v385, %v5274
        %v5276 = vpop.f32.mrb[0].mxu0
        %5277 = vmatprep.mubr.f32.mxu0 0.0
        %5278 = vmatmul.mubr.f32.gmra.mrb[0].mxu0 %v5161
        %v5279 = vpop.f32.mrb[0].mxu0
        %v5280 = vadd.f32 %v386, %v5279
        %v5281 = vpop.f32.mrb[0].mxu0
        %5282 = vmatprep.mubr.f32.mxu0 0.0
        %5283 = vmatmul.mubr.f32.gmra.mrb[0].mxu0 %v5162
        %v5284 = vpop.f32.mrb[0].mxu0
        %v5285 = vadd.f32 %v387, %v5284
        %v5286 = vpop.f32.mrb[0].mxu0
        %5287 = vmatprep.mubr.f32.mxu0 0.0
        %5288 = vmatmul.mubr.f32.gmra.mrb[0].mxu0 %v5163
        %v5289 = vpop.f32.mrb[0].mxu0
        %v5290 = vadd.f32 %v388, %v5289
        %v5291 = vpop.f32.mrb[0].mxu0
        %5292 = vmatprep.mubr.f32.mxu0 0.0
        %5293 = vmatmul.mubr.f32.gmra.mrb[0].mxu0 %v5164
        %v5294 = vpop.f32.mrb[0].mxu0
        %v5295 = vadd.f32 %v389, %v5294
        %v5296 = vpop.f32.mrb[0].mxu0
        %5297 = vmatprep.mubr.f32.mxu0 0.0
        %5298 = vmatmul.mubr.f32.gmra.mrb[0].mxu0 %v5165
        %v5299 = vpop.f32.mrb[0].mxu0
        %v5300 = vadd.f32 %v390, %v5299
        %v5301 = vpop.f32.mrb[0].mxu0
        %5302 = vmatprep.mubr.f32.mxu0 0.0
        %5303 = vmatmul.mubr.f32.gmra.mrb[0].mxu0 %v5166
        %v5304 = vpop.f32.mrb[0].mxu0
        %v5305 = vadd.f32 %v391, %v5304
        %v5306 = vpop.f32.mrb[0].mxu0
        %5307 = vmatprep.mubr.f32.mxu0 0.0
        %5308 = vmatmul.mubr.f32.gmra.mrb[0].mxu0 %v5167
        %v5309 = vpop.f32.mrb[0].mxu0
        %v5310 = vadd.f32 %v392, %v5309
        %v5311 = vpop.f32.mrb[0].mxu0
        %5312 = vmatprep.mubr.f32.mxu0 0.0
        %5313 = vmatmul.mubr.f32.gmra.mrb[0].mxu0 %v5168
        %v5314 = vpop.f32.mrb[0].mxu0
        %v5315 = vadd.f32 %v393, %v5314
        %v5316 = vpop.f32.mrb[0].mxu0
        %5317 = vmatprep.mubr.f32.mxu0 0.0
        %5318 = vmatmul.mubr.f32.gmra.mrb[0].mxu0 %v5169
        %v5319 = vpop.f32.mrb[0].mxu0
        %v5320 = vadd.f32 %v394, %v5319
        %v5321 = vpop.f32.mrb[0].mxu0
        %5322 = vmatprep.mubr.f32.mxu0 0.0
        %5323 = vmatmul.mubr.f32.gmra.mrb[0].mxu0 %v5170
        %v5324 = vpop.f32.mrb[0].mxu0
        %v5325 = vadd.f32 %v395, %v5324
        %v5326 = vpop.f32.mrb[0].mxu0
        %5327 = vmatprep.mubr.f32.mxu0 0.0
        %5328 = vmatmul.mubr.f32.gmra.mrb[0].mxu0 %v5171
        %v5329 = vpop.f32.mrb[0].mxu0
        %v5330 = vadd.f32 %v396, %v5329
        %v5331 = vpop.f32.mrb[0].mxu0
        %5332 = vmatprep.mubr.f32.mxu0 0.0
        %5333 = vmatmul.mubr.f32.gmra.mrb[0].mxu0 %v5172
        %v5334 = vpop.f32.mrb[0].mxu0
        %v5335 = vadd.f32 %v397, %v5334
        %v5336 = vpop.f32.mrb[0].mxu0
        %5337 = vmatprep.mubr.f32.mxu0 0.0
        %5338 = vmatmul.mubr.f32.gmra.mrb[0].mxu0 %v5173
        %v5339 = vpop.f32.mrb[0].mxu0
        %v5340 = vadd.f32 %v398, %v5339
        %v5341 = vpop.f32.mrb[0].mxu0
        %5342 = vmatprep.mubr.f32.mxu0 0.0
        %5343 = vmatmul.mubr.f32.gmra.mrb[0].mxu0 %v5174
        %v5344 = vpop.f32.mrb[0].mxu0
        %v5345 = vadd.f32 %v399, %v5344
        %v5346 = vpop.f32.mrb[0].mxu0
        %5347 = vmatprep.mubr.f32.mxu0 0.0
        %5348 = vmatmul.mubr.f32.gmra.mrb[0].mxu0 %v5175
        %v5349 = vpop.f32.mrb[0].mxu0
        %v5350 = vadd.f32 %v400, %v5349
        %v5351 = vpop.f32.mrb[0].mxu0
        %5352 = vmatprep.mubr.f32.mxu0 0.0
        %5353 = vmatmul.mubr.f32.gmra.mrb[0].mxu0 %v5176
        %v5354 = vpop.f32.mrb[0].mxu0
        %v5355 = vadd.f32 %v401, %v5354
        %v5356 = vpop.f32.mrb[0].mxu0
        %5357 = vmatprep.mubr.f32.mxu0 0.0
        %5358 = vmatmul.mubr.f32.gmra.mrb[0].mxu0 %v5177
        %v5359 = vpop.f32.mrb[0].mxu0
        %v5360 = vadd.f32 %v402, %v5359
        %v5361 = vpop.f32.mrb[0].mxu0
        %5362 = vmatprep.mubr.f32.mxu0 0.0
        %5363 = vmatmul.mubr.f32.gmra.mrb[0].mxu0 %v5178
        %v5364 = vpop.f32.mrb[0].mxu0
        %v5365 = vadd.f32 %v403, %v5364
        %v5366 = vpop.f32.mrb[0].mxu0
        %5367 = vmatprep.mubr.f32.mxu0 0.0
        %5368 = vmatmul.mubr.f32.gmra.mrb[0].mxu0 %v5179
        %v5369 = vpop.f32.mrb[0].mxu0
        %v5370 = vadd.f32 %v404, %v5369
        %v5371 = vpop.f32.mrb[0].mxu0
        %5372 = vmatprep.mubr.f32.mxu0 0.0
        %5373 = vmatmul.mubr.f32.gmra.mrb[0].mxu0 %v5180
        %v5374 = vpop.f32.mrb[0].mxu0
        %v5375 = vadd.f32 %v405, %v5374
        %v5376 = vpop.f32.mrb[0].mxu0
        %5377 = vmatprep.mubr.f32.mxu0 0.0
        %5378 = vmatmul.mubr.f32.gmra.mrb[0].mxu0 %v5181
        %v5379 = vpop.f32.mrb[0].mxu0
        %v5380 = vadd.f32 %v406, %v5379
        %v5381 = vpop.f32.mrb[0].mxu0
        %5382 = vmatprep.mubr.f32.mxu0 0.0
        %5383 = vmatmul.mubr.f32.gmra.mrb[0].mxu0 %v5182
        %v5384 = vpop.f32.mrb[0].mxu0
        %v5385 = vadd.f32 %v407, %v5384
        %v5386 = vpop.f32.mrb[0].mxu0
        %5387 = vmatprep.mubr.f32.mxu0 0.0
        %5388 = vmatmul.mubr.f32.gmra.mrb[0].mxu0 %v5183
        %v5389 = vpop.f32.mrb[0].mxu0
        %v5390 = vadd.f32 %v408, %v5389
        %v5391 = vpop.f32.mrb[0].mxu0
        %5392 = vmatprep.mubr.f32.mxu0 0.0
        %5393 = vmatmul.mubr.f32.gmra.mrb[0].mxu0 %v5184
        %v5394 = vpop.f32.mrb[0].mxu0
        %v5395 = vadd.f32 %v409, %v5394
        %v5396 = vpop.f32.mrb[0].mxu0
        %5397 = vmatprep.mubr.f32.mxu0 0.0
        %5398 = vmatmul.mubr.f32.gmra.mrb[0].mxu0 %v5185
        %v5399 = vpop.f32.mrb[0].mxu0
        %v5400 = vadd.f32 %v410, %v5399
        %v5401 = vpop.f32.mrb[0].mxu0
        %5402 = vmatprep.mubr.f32.mxu0 0.0
        %5403 = vmatmul.mubr.f32.gmra.mrb[0].mxu0 %v5186
        %v5404 = vpop.f32.mrb[0].mxu0
        %v5405 = vadd.f32 %v411, %v5404
        %v5406 = vpop.f32.mrb[0].mxu0
        %5407 = vmatprep.mubr.f32.mxu0 0.0
        %5408 = vmatmul.mubr.f32.gmra.mrb[0].mxu0 %v5187
        %v5409 = vpop.f32.mrb[0].mxu0
        %v5410 = vadd.f32 %v412, %v5409
        %v5411 = vpop.f32.mrb[0].mxu0
        %5412 = vmatprep.mubr.f32.mxu0 0.0
        %5413 = vmatmul.mubr.f32.gmra.mrb[0].mxu0 %v5188
        %v5414 = vpop.f32.mrb[0].mxu0
        %v5415 = vadd.f32 %v413, %v5414
        %v5416 = vpop.f32.mrb[0].mxu0
        %5417 = vmatprep.mubr.f32.mxu0 0.0
        %5418 = vmatmul.mubr.f32.gmra.mrb[0].mxu0 %v5189
        %v5419 = vpop.f32.mrb[0].mxu0
        %v5420 = vadd.f32 %v414, %v5419
        %v5421 = vpop.f32.mrb[0].mxu0
        %5422 = vmatprep.mubr.f32.mxu0 0.0
        %5423 = vmatmul.mubr.f32.gmra.mrb[0].mxu0 %v5190
        %v5424 = vpop.f32.mrb[0].mxu0
        %v5425 = vadd.f32 %v415, %v5424
        %v5426 = vpop.f32.mrb[0].mxu0
        %5427 = vmatprep.mubr.f32.mxu0 0.0
        %5428 = vmatmul.mubr.f32.gmra.mrb[0].mxu0 %v5191
        %v5429 = vpop.f32.mrb[0].mxu0
        %v5430 = vadd.f32 %v416, %v5429
        %v5431 = vpop.f32.mrb[0].mxu0
        %5432 = vdwg.mxu0
        %5433 = vst [vmem:[%s379] sm:$0xff] %v5275
        %5434 = vst [vmem:[%s379 + $0x8] sm:$0xff] %v5280
        %5435 = vst [vmem:[%s379 + $0x10] sm:$0xff] %v5285
        %5436 = vst [vmem:[%s379 + $0x18] sm:$0xff] %v5290
        %5437 = vst [vmem:[%s379 + $0x20] sm:$0xff] %v5295
        %5438 = vst [vmem:[%s379 + $0x28] sm:$0xff] %v5300
        %5439 = vst [vmem:[%s379 + $0x30] sm:$0xff] %v5305
        %5440 = vst [vmem:[%s379 + $0x38] sm:$0xff] %v5310
        %5441 = vst [vmem:[%s379 + $0x40] sm:$0xff] %v5315
        %5442 = vst [vmem:[%s379 + $0x48] sm:$0xff] %v5320
        %5443 = vst [vmem:[%s379 + $0x50] sm:$0xff] %v5325
        %5444 = vst [vmem:[%s379 + $0x58] sm:$0xff] %v5330
        %5445 = vst [vmem:[%s379 + $0x60] sm:$0xff] %v5335
        %5446 = vst [vmem:[%s379 + $0x68] sm:$0xff] %v5340
        %5447 = vst [vmem:[%s379 + $0x70] sm:$0xff] %v5345
        %5448 = vst [vmem:[%s379 + $0x78] sm:$0xff] %v5350
        %5449 = vst [vmem:[%s379 + $0x80] sm:$0xff] %v5355
        %5450 = vst [vmem:[%s379 + $0x88] sm:$0xff] %v5360
        %5451 = vst [vmem:[%s379 + $0x90] sm:$0xff] %v5365
        %5452 = vst [vmem:[%s379 + $0x98] sm:$0xff] %v5370
        %5453 = vst [vmem:[%s379 + $0xa0] sm:$0xff] %v5375
        %5454 = vst [vmem:[%s379 + $0xa8] sm:$0xff] %v5380
        %5455 = vst [vmem:[%s379 + $0xb0] sm:$0xff] %v5385
        %5456 = vst [vmem:[%s379 + $0xb8] sm:$0xff] %v5390
        %5457 = vst [vmem:[%s379 + $0xc0] sm:$0xff] %v5395
        %5458 = vst [vmem:[%s379 + $0xc8] sm:$0xff] %v5400
        %5459 = vst [vmem:[%s379 + $0xd0] sm:$0xff] %v5405
        %5460 = vst [vmem:[%s379 + $0xd8] sm:$0xff] %v5410
        %5461 = vst [vmem:[%s379 + $0xe0] sm:$0xff] %v5415
        %5462 = vst [vmem:[%s379 + $0xe8] sm:$0xff] %v5420
        %5463 = vst [vmem:[%s379 + $0xf0] sm:$0xff] %v5425
        %5464 = vst [vmem:[%s379 + $0xf8] sm:$0xff] %v5430
        %s5465 = sand.u32 %s269, 1
        %s5466 = scalar_lea.sflag [#allocation4], %s5465
        %s5467 = sand.u32 %s269, 1
        %s5468 = smul.addr %s5467, 256
        %s5469 = scalar_lea.vmem [#allocation3], %s5468
        // Predicated region
        $region65: #{splat_block_pallas.1} parent=63 // pred_check
          %p5470 = pneg %p279
        $region66: #{splat_block_pallas.1} parent=63 // pred_check_branch
          %5472 = sbr.rel (%p5470) target = $region68
        $region67: #{splat_block_pallas.1} parent=63 // pred_region
          %s5474 = ssub.s32 4096, 4096
          %5475 = vsyncadd %s5466, %s5474
          %s5476 = smul.addr %s25, 32
          %s5477 = smul.addr %s5476, 128
          %s5478 = scalar_lea.hbm %s11, %s5477
          %s5479 = sshll.u32 %s5469, 4
          %s5480 = int_to_ptr.vmem [resolvable:$true] %s5479
          %5485 = dma.vmem_to_hbm [thread:$0]  %s5480, 4096, %s5478, %s5466, 128, 128, 8
        $region68: #{splat_block_pallas.1} parent=63 // pred_fallthru
          _
      $region64: #{splat_block_pallas.1} parent=5 // pred_fallthru
        _
      %p5486 = scmp.le.s32.totalorder 2, %s20
      // Predicated region
      $region69: #{splat_block_pallas.1} parent=5 // pred_check
        %p5487 = pneg %p5486
      $region70: #{splat_block_pallas.1} parent=5 // pred_check_branch
        %5489 = sbr.rel (%p5487) target = $region72
      $region71: #{splat_block_pallas.1} parent=5 // pred_region
        %s5490 = ssub.s32 %s20, 2
        // Predicated region
        $region73: #{splat_block_pallas.1} parent=71 // pred_check
          %p5491 = pneg %p285
        $region74: #{splat_block_pallas.1} parent=71 // pred_check_branch
          %5493 = sbr.rel (%p5491) target = $region76
        $region75: #{splat_block_pallas.1} parent=71 // pred_region
          %s5494 = sand.u32 %s270, 1
          %s5495 = scalar_lea.sflag [#allocation4], %s5494
          %s5496 = sand.u32 %s270, 1
          %s5497 = smul.addr %s5496, 256
          %s5498 = scalar_lea.vmem [#allocation3], %s5497
          %5499 = dma.done %s5495, 4096
        $region76: #{splat_block_pallas.1} parent=71 // pred_fallthru
          _
      $region72: #{splat_block_pallas.1} parent=5 // pred_fallthru
        _
    $region6: #{splat_block_pallas.1} parent=1 // loop_footer
      %s24 = sadd.s32 1, %s20
    $region7: #{splat_block_pallas.1} parent=1 // loop_footer_branch
      %19 = sbr.rel target = $region3
    $region8: #{splat_block_pallas.1} parent=1 // loop_exit
      _
    %5500 = vsyncpa [#allocation4], 1
    %s5501 = scalar_lea.sflag [#allocation4], 1
    %5502 = vsyncpa %s5501, 1

</llo_original>
